<compile_context>
chip_gen: v7x
topology: tpu7x:2x2x1
jax: 0.10.0
libtpu: 0.0.40
codegen_flags: <defaults>
</compile_context>

<pallas_src>
import functools

import jax
import jax.numpy as jnp
from jax import lax
from jax.experimental import pallas as pl
from jax.experimental.pallas import tpu as pltpu

_BN_EPS = 1e-5
_LANE = 128


def _rup(x, m):
    return ((x + m - 1) // m) * m


@functools.lru_cache(maxsize=1)
def _vmem_limit_bytes():
    try:
        cap = int(pltpu.get_tpu_info().vmem_capacity_bytes)
    except Exception:  # pragma: no cover - interpret / unknown backend fallback
        cap = 64 * 1024 * 1024
    # keep >= 16 MiB headroom (matters on v7x's 64 MiB VMEM), never below 32 MiB.
    return max(32 * 1024 * 1024, min((cap * 3) // 4, cap - 16 * 1024 * 1024))


# ----------------------------------------------------------------------------
# Fused Conv3d kernel: shifted-matmul accumulation over a padded, flattened plane.
# ----------------------------------------------------------------------------
@functools.lru_cache(maxsize=None)
def _build_conv_call(n_in, k, stride, batch, d_out, rows, m_rows, w_pad,
                     cins, cout_p, relu, out_dtype):
    """Builds the pallas_call for one conv configuration.

    grid = (N, D_out).  Per step the kernel accumulates all n_in * k^3 taps into a single
    chained f32 value (one store per step).  Weights/bias use constant index maps so they
    are fetched into VMEM once per call; each depth tap of each input gets its own
    BlockSpec of the same array (rectangular, auto-pipelined plane DMAs).
    """
    k2 = k * k
    k3 = k2 * k
    # Static per-tap (packed-row base, channel-parity) offsets for the in-plane taps.
    taps = []
    for t in range(k2):
        kh, kw = divmod(t, k)
        c = kh * w_pad + kw
        taps.append((c // stride, c % stride))

    n_x = n_in * k

    def kernel(*refs):
        x_refs = refs[:n_x]
        w_refs = refs[n_x:n_x + n_in]
        b_ref = refs[n_x + n_in]
        o_ref = refs[n_x + n_in + 1]

        acc = None
        for i in range(n_in):
            cin = cins[i]
            w_ref = w_refs[i]
            for kd in range(k):
                xr = x_refs[i * k + kd]
                for t in range(k2):
                    rb, half = taps[t]
                    v = xr[pl.ds(rb, m_rows), pl.ds(half * cin, cin)]
                    p = jnp.dot(v, w_ref[kd * k2 + t],
                                preferred_element_type=jnp.float32)
                    acc = p if acc is None else acc + p
        acc = acc + b_ref[...]
        if relu:
            acc = jnp.maximum(acc, 0.0)
        o_ref[...] = acc.astype(o_ref.dtype)

    x_specs = []
    for cin in cins:
        for kd in range(k):
            x_specs.append(
                pl.BlockSpec((None, None, rows, stride * cin),
                             lambda n, d, kd=kd: (n, stride * d + kd, 0, 0)))
    # Full weight / bias blocks with constant index maps -> fetched once, VMEM-resident.
    w_specs = [pl.BlockSpec((k3, cin, cout_p), lambda n, d: (0, 0, 0)) for cin in cins]
    b_spec = pl.BlockSpec((1, cout_p), lambda n, d: (0, 0))
    out_spec = pl.BlockSpec((None, None, m_rows, cout_p), lambda n, d: (n, d, 0, 0))

    return pl.pallas_call(
        kernel,
        out_shape=jax.ShapeDtypeStruct((batch, d_out, m_rows, cout_p), out_dtype),
        grid=(batch, d_out),
        in_specs=x_specs + w_specs + [b_spec],
        out_specs=out_spec,
        compiler_params=pltpu.CompilerParams(
            dimension_semantics=("parallel", "parallel"),
            vmem_limit_bytes=_vmem_limit_bytes(),
        ),
    )


def conv3d(xs, ws, bias, *, k, stride, relu, out_dtype=jnp.bfloat16):
    """Fused Conv3d(+folded BN)+bias(+ReLU) over one or two inputs.

    Two inputs == channel-concat fused into the GEMM (split-K accumulation).
    xs   : list of NDHWC tensors (identical spatial dims, channels padded to 128).
    ws   : list of packed weights (k^3, Cin_p, Cout_p) bf16 (BN scale folded in).
    bias : (1, Cout_p) float32 (BN folded).
    Returns (N, Do, Ho, Wo, Cout_p) in out_dtype.
    """
    n, d, h, w = xs[0].shape[:4]
    pad = k // 2
    d_out = (d + 2 * pad - k) // stride + 1
    h_out = (h + 2 * pad - k) // stride + 1
    w_out = (w + 2 * pad - k) // stride + 1
    d_pad = d + 2 * pad
    w_pad = w + 2 * pad
    h_pad = h + 2 * pad + (1 if k == 3 else 0)
    m_rows = h_out * w_pad                      # acc rows per depth slice (incl. junk cols)
    rb_max = ((k - 1) * w_pad + (k - 1)) // stride
    # ensure the flattened plane is stride-divisible and all (incl. junk) reads in-bounds
    while (h_pad * w_pad) % stride != 0 or (h_pad * w_pad) // stride < rb_max + m_rows:
        h_pad += 1
    rows = (h_pad * w_pad) // stride
    cout_p = ws[0].shape[-1]
    cins = tuple(int(wi.shape[1]) for wi in ws)

    args = []
    for x, cin in zip(xs, cins):
        assert x.shape[-1] == cin, (x.shape, cin)
        # TODO(synk): this pad copy (and the post-conv junk-column strip below) could be
        #             fused into the kernel to remove two HBM round trips per conv.
        xp = jnp.pad(x.astype(jnp.bfloat16),
                     ((0, 0), (pad, pad), (pad, h_pad - h - pad), (pad, pad), (0, 0)))
        # flatten the padded (Hp, Wp) plane and fold the stride into the channel dim
        xp = xp.reshape(n, d_pad, rows, stride * cin)
        args.extend([xp] * k)                   # one BlockSpec per depth tap (same array)

    call = _build_conv_call(len(xs), k, stride, n, d_out, rows, m_rows, w_pad,
                            cins, cout_p, bool(relu), out_dtype)
    out = call(*args, *ws, bias)
    # strip the junk columns (Wp-padded rows) -> dense (N, Do, Ho, Wo, Cout_p)
    return out.reshape(n, d_out, h_out, w_pad, cout_p)[:, :, :, :w_out, :]


# ----------------------------------------------------------------------------
# Trilinear upsampling (align_corners=False)
# ----------------------------------------------------------------------------
def _up2_axis(x, axis):
    n = x.shape[axis]
    first = lax.slice_in_dim(x, 0, 1, axis=axis)
    last = lax.slice_in_dim(x, n - 1, n, axis=axis)
    prev = jnp.concatenate([first, lax.slice_in_dim(x, 0, n - 1, axis=axis)], axis=axis)
    nxt = jnp.concatenate([lax.slice_in_dim(x, 1, n, axis=axis), last], axis=axis)
    even = 0.25 * prev + 0.75 * x
    odd = 0.75 * x + 0.25 * nxt
    y = jnp.stack([even, odd], axis=axis + 1)
    shp = list(x.shape)
    shp[axis] = 2 * n
    return y.reshape(shp).astype(x.dtype)


def upsample2x(x):
    """Scale-2 trilinear upsample (align_corners=False) as reshape + fixed lerp."""
    for axis in (1, 2, 3):
        x = _up2_axis(x, axis)
    return x


def _upsample_linear_axis(x, axis, scale):
    n_in = x.shape[axis]
    n_out = n_in * scale
    src = (jnp.arange(n_out, dtype=jnp.float32) + 0.5) / scale - 0.5
    src = jnp.maximum(src, 0.0)
    lo = jnp.minimum(jnp.floor(src).astype(jnp.int32), n_in - 1)
    hi = jnp.minimum(lo + 1, n_in - 1)
    frac = (src - lo.astype(jnp.float32))
    x_lo = jnp.take(x, lo, axis=axis)
    x_hi = jnp.take(x, hi, axis=axis)
    shp = [1] * x.ndim
    shp[axis] = n_out
    frac = frac.reshape(shp).astype(x.dtype)
    return x_lo * (1 - frac) + x_hi * frac


def upsample_trilinear(x, scale):
    """Generic integer-scale trilinear upsample (used for the x4/x8/x16 spp heads)."""
    for axis in (1, 2, 3):
        x = _upsample_linear_axis(x, axis, scale)
    return x


def _pad_channels(x, mult=_LANE):
    c = x.shape[-1]
    cp = _rup(c, mult)
    if cp == c:
        return x
    return jnp.pad(x, ((0, 0),) * (x.ndim - 1) + ((0, cp - c),))


# ----------------------------------------------------------------------------
# Deterministic parameter initialization (mirrors the PyTorch module structure)
# ----------------------------------------------------------------------------
class _KeyGen:
    def __init__(self, key):
        self._key = key

    def __call__(self):
        self._key, sub = jax.random.split(self._key)
        return sub


def _init_conv(kg, cout, cin, k):
    return 0.1 * jax.random.normal(kg(), (cout, cin, k, k, k), jnp.float32)


def _init_bias(kg, c):
    return 0.01 * jax.random.normal(kg(), (c,), jnp.float32)


def _init_bn(kg, c):
    return dict(
        gamma=1.0 + 0.1 * jax.random.normal(kg(), (c,), jnp.float32),
        beta=0.05 * jax.random.normal(kg(), (c,), jnp.float32),
        mean=0.02 * jax.random.normal(kg(), (c,), jnp.float32),
        var=1.0 + 0.1 * jnp.abs(jax.random.normal(kg(), (c,), jnp.float32)),
    )


def _init_double_conv(kg, in_ch, out_ch, k=3):
    return dict(
        w1=_init_conv(kg, out_ch, in_ch, k), b1=_init_bias(kg, out_ch),
        bn1=_init_bn(kg, out_ch),
        w2=_init_conv(kg, out_ch, out_ch, 3), b2=_init_bias(kg, out_ch),
        bn2=_init_bn(kg, out_ch),
    )


def _init_basic_block(kg, inplanes, planes, downsample):
    p = dict(
        w1=_init_conv(kg, planes, inplanes, 3), bn1=_init_bn(kg, planes),
        w2=_init_conv(kg, planes, planes, 3), bn2=_init_bn(kg, planes),
    )
    if downsample:
        p["dw"] = _init_conv(kg, planes, inplanes, 1)
        p["dbn"] = _init_bn(kg, planes)
    return p


def _init_res_layer(kg, inplanes, planes, blocks):
    layers = [_init_basic_block(kg, inplanes, planes, True)]
    for _ in range(1, blocks):
        layers.append(_init_basic_block(kg, planes, planes, False))
    return layers


def init_resunet_spp_params(in_ch, channels, blocks, key):
    kg = _KeyGen(key)
    c = channels
    return dict(
        layer1=_init_double_conv(kg, in_ch, c, k=3),
        layer2=_init_res_layer(kg, c * 1, c * 2, blocks),
        layer3=_init_res_layer(kg, c * 2, c * 4, blocks),
        layer4=_init_res_layer(kg, c * 4, c * 8, blocks),
        layer5=_init_res_layer(kg, c * 8, c * 8, blocks),
        mconv4=_init_double_conv(kg, c * 16, c * 4),
        mconv3=_init_double_conv(kg, c * 8, c * 2),
        mconv2=_init_double_conv(kg, c * 4, c * 1),
        mconv1=_init_double_conv(kg, c * 2, c * 1),
        spp1=_init_conv(kg, c, c, 1),
        spp2=_init_conv(kg, c, c, 1),
        spp3=_init_conv(kg, c, c * 2, 1),
        spp4=_init_conv(kg, c, c * 4, 1),
        spp5=_init_conv(kg, c, c * 8, 1),
    )


# ----------------------------------------------------------------------------
# One-time parameter packing: fold BN, transpose, pad to lane-dense, cast bf16.
# ----------------------------------------------------------------------------
def pack_params(params, in_ch, channels):
    c = channels

    def fold(bn, cout, conv_bias):
        if bn is None:
            scale = jnp.ones((cout,), jnp.float32)
            bias = jnp.zeros((cout,), jnp.float32)
        else:
            scale = bn["gamma"] * lax.rsqrt(bn["var"] + _BN_EPS)
            bias = bn["beta"] - scale * bn["mean"]
        if conv_bias is not None:
            bias = bias + scale * conv_bias
        return scale, bias

    def pack_conv(w, conv_bias, bn, splits=None):
        cout, cin, k = int(w.shape[0]), int(w.shape[1]), int(w.shape[2])
        if splits is None:
            splits = (cin,)
        scale, bias = fold(bn, cout, conv_bias)
        cout_p = _rup(cout, _LANE)
        wf = w * scale[:, None, None, None, None]
        wt = jnp.transpose(wf, (2, 3, 4, 1, 0)).reshape(k * k * k, cin, cout)
        ws = []
        start = 0
        for s in splits:
            part = wt[:, start:start + s, :]
            cin_p = _rup(s, _LANE)
            part = jnp.pad(part, ((0, 0), (0, cin_p - s), (0, cout_p - cout)))
            ws.append(part.astype(jnp.bfloat16))
            start += s
        b = jnp.pad(bias, (0, cout_p - cout)).reshape(1, cout_p).astype(jnp.float32)
        return ws, b

    def pack_double(p, splits=None):
        w1, b1 = pack_conv(p["w1"], p["b1"], p["bn1"], splits)
        w2, b2 = pack_conv(p["w2"], p["b2"], p["bn2"])
        return dict(w1=w1, b1=b1, w2=w2, b2=b2)

    def pack_block(p):
        out = {}
        out["w1"], out["b1"] = pack_conv(p["w1"], None, p["bn1"])
        out["w2"], out["b2"] = pack_conv(p["w2"], None, p["bn2"])
        if "dw" in p:
            out["wd"], out["bd"] = pack_conv(p["dw"], None, p["dbn"])
        return out

    packed = dict(
        layer1=pack_double(params["layer1"], (in_ch,)),
        layer2=[pack_block(b) for b in params["layer2"]],
        layer3=[pack_block(b) for b in params["layer3"]],
        layer4=[pack_block(b) for b in params["layer4"]],
        layer5=[pack_block(b) for b in params["layer5"]],
        mconv4=pack_double(params["mconv4"], (c * 8, c * 8)),
        mconv3=pack_double(params["mconv3"], (c * 4, c * 4)),
        mconv2=pack_double(params["mconv2"], (c * 2, c * 2)),
        mconv1=pack_double(params["mconv1"], (c * 1, c * 1)),
    )
    for name in ("spp1", "spp2", "spp3", "spp4", "spp5"):
        ws, b = pack_conv(params[name], None, None)
        packed[name] = dict(w=ws, b=b)
    return packed


# ----------------------------------------------------------------------------
# Forward pass (NDHWC internally, channels padded to 128)
# ----------------------------------------------------------------------------
def double_conv_fwd(p, xs, stride=1):
    x = conv3d(xs, p["w1"], p["b1"], k=3, stride=stride, relu=True)
    x = conv3d([x], p["w2"], p["b2"], k=3, stride=1, relu=True)
    return x


def basic_block_fwd(p, x, stride):
    out = conv3d([x], p["w1"], p["b1"], k=3, stride=stride, relu=True)
    out = conv3d([out], p["w2"], p["b2"], k=3, stride=1, relu=False)
    if "wd" in p:
        identity = conv3d([x], p["wd"], p["bd"], k=1, stride=stride, relu=False)
    else:
        identity = x
    return jnp.maximum(out + identity.astype(out.dtype), 0.0)


def res_layer_fwd(ps, x, stride):
    x = basic_block_fwd(ps[0], x, stride)
    for bp in ps[1:]:
        x = basic_block_fwd(bp, x, 1)
    return x


def resunet_spp_forward(packed, x_ncdhw, *, channels):
    x = jnp.transpose(x_ncdhw, (0, 2, 3, 4, 1))           # NCDHW -> NDHWC
    x = _pad_channels(x.astype(jnp.bfloat16))

    c1 = double_conv_fwd(packed["layer1"], [x], stride=1)
    c2 = res_layer_fwd(packed["layer2"], c1, 2)
    c3 = res_layer_fwd(packed["layer3"], c2, 2)
    c4 = res_layer_fwd(packed["layer4"], c3, 2)
    c5 = res_layer_fwd(packed["layer5"], c4, 2)

    # decoder: concat(upsample, skip) fused into the conv as a two-input split-K GEMM
    m4 = double_conv_fwd(packed["mconv4"], [upsample2x(c5), c4])
    m3 = double_conv_fwd(packed["mconv3"], [upsample2x(m4), c3])
    m2 = double_conv_fwd(packed["mconv2"], [upsample2x(m3), c2])
    m1 = double_conv_fwd(packed["mconv1"], [upsample2x(m2), c1])

    def spp(p, t):
        return conv3d([t], p["w"], p["b"], k=1, stride=1, relu=False)

    # 128-lane channel padding is kept through the upsamples (lane-dense stores);
    # channel slicing, concat and the NCDHW relayout happen exactly once at the end.
    out1 = spp(packed["spp1"], m1)
    out2 = upsample2x(spp(packed["spp2"], m2))
    out3 = upsample_trilinear(spp(packed["spp3"], m3), 4)
    out4 = upsample_trilinear(spp(packed["spp4"], m4), 8)
    out5 = upsample_trilinear(spp(packed["spp5"], c5), 16)

    out = jnp.concatenate([o[..., :channels] for o in (out1, out2, out3, out4, out5)],
                          axis=-1)
    return jnp.transpose(out, (0, 4, 1, 2, 3)).astype(jnp.float32)  # NDHWC -> NCDHW


# ----------------------------------------------------------------------------
# Numerical validation of the fused conv kernel against XLA's conv.
# ----------------------------------------------------------------------------
def _check_conv_against_xla():
    def ref_conv(xs, ws, bias, k, stride, relu):
        x = jnp.concatenate([xi.astype(jnp.float32) for xi in xs], axis=-1)
        w = jnp.concatenate([wi.astype(jnp.float32) for wi in ws], axis=1)
        w = w.reshape(k, k, k, w.shape[1], w.shape[2])
        p = k // 2
        y = lax.conv_general_dilated(
            x, w, window_strides=(stride,) * 3, padding=[(p, p)] * 3,
            dimension_numbers=("NDHWC", "DHWIO", "NDHWC"))
        y = y + bias.reshape(1, 1, 1, 1, -1)
        if relu:
            y = jnp.maximum(y, 0.0)
        return y

    key = jax.random.PRNGKey(7)
    for k, stride, n_in in ((3, 1, 1), (3, 2, 1), (1, 2, 1), (3, 1, 2)):
        keys = jax.random.split(key, 2 * n_in + 2)
        key = keys[-1]
        xs = [(0.5 * jax.random.normal(keys[i], (1, 8, 8, 8, 128))
               ).astype(jnp.bfloat16) for i in range(n_in)]
        ws = [(0.1 * jax.random.normal(keys[n_in + i], (k ** 3, 128, 128))
               ).astype(jnp.bfloat16) for i in range(n_in)]
        bias = (0.1 * jax.random.normal(keys[2 * n_in], (1, 128))).astype(jnp.float32)
        got = conv3d(xs, ws, bias, k=k, stride=stride, relu=True).astype(jnp.float32)
        want = ref_conv(xs, ws, bias, k, stride, True)
        assert got.shape == want.shape, (got.shape, want.shape)
        err = float(jnp.max(jnp.abs(got - want)))
        scale = float(jnp.max(jnp.abs(want))) + 1e-6
        assert err <= 0.03 * scale + 1e-2, ("conv mismatch", k, stride, n_in, err, scale)


# ----------------------------------------------------------------------------
if __name__ == "__main__":
    IN_CH, CHANNELS, BLOCKS = 1, 4, 2
    N, D, H, W = 2, 16, 16, 16   # spatial must be divisible by 16 (4 stride-2 stages)

    _check_conv_against_xla()                 # validate the fused conv kernel numerically

    key = jax.random.PRNGKey(0)
    kp, kx = jax.random.split(key)
    raw_params = init_resunet_spp_params(IN_CH, CHANNELS, BLOCKS, kp)
    packed = pack_params(raw_params, IN_CH, CHANNELS)        # one-time weight prep
    x = jax.random.normal(kx, (N, IN_CH, D, H, W), jnp.float32)   # NCDHW like PyTorch

    fwd = jax.jit(functools.partial(resunet_spp_forward, channels=CHANNELS))
    out = jax.block_until_ready(fwd(packed, x))

    expected = (N, CHANNELS * 5, D, H, W)
    assert out.shape == expected, (out.shape, expected)
    assert bool(jnp.all(jnp.isfinite(out)))
    print("KERNEL_OK")
</pallas_src>

<mosaic_0001>
module attributes {stable_mosaic.version = 11 : i64} {
  func.func @kernel(%arg0: i32, %arg1: i32, %arg2: memref<1x1x110x128xbf16, #tpu.memory_space<vmem>>, %arg3: memref<1x1x110x128xbf16, #tpu.memory_space<vmem>>, %arg4: memref<1x1x110x128xbf16, #tpu.memory_space<vmem>>, %arg5: memref<27x128x128xbf16, #tpu.memory_space<vmem>>, %arg6: memref<1x128xf32, #tpu.memory_space<vmem>>, %arg7: memref<1x1x80x128xbf16, #tpu.memory_space<vmem>>) attributes {dimension_semantics = [#tpu.dimension_semantics<parallel>, #tpu.dimension_semantics<parallel>], iteration_bounds = array<i64: 1, 8>, scalar_prefetch = 0 : i64, scratch_operands = 0 : i64, tpu.core_type = #tpu.core_type<tc>, window_params = [{transform_indices = @transform_0, window_bounds = array<i64: 1, 1, 110, 128>}, {transform_indices = @transform_1, window_bounds = array<i64: 1, 1, 110, 128>}, {transform_indices = @transform_2, window_bounds = array<i64: 1, 1, 110, 128>}, {pipeline_mode = #tpu.pipeline_mode<synchronous>, transform_indices = @transform_3, window_bounds = array<i64: 27, 128, 128>}, {pipeline_mode = #tpu.pipeline_mode<synchronous>, transform_indices = @transform_4, window_bounds = array<i64: 1, 128>}, {transform_indices = @transform_5, window_bounds = array<i64: 1, 1, 80, 128>}]} {
    %c0 = arith.constant 0 : index
    %c0_0 = arith.constant 0 : index
    %c0_1 = arith.constant 0 : index
    %c0_2 = arith.constant 0 : index
    %0 = vector.load %arg2[%c0, %c0_0, %c0_1, %c0_2] : memref<1x1x110x128xbf16, #tpu.memory_space<vmem>>, vector<1x1x80x128xbf16>
    %1 = vector.shape_cast %0 : vector<1x1x80x128xbf16> to vector<80x128xbf16>
    %c0_3 = arith.constant 0 : index
    %c0_4 = arith.constant 0 : index
    %c0_5 = arith.constant 0 : index
    %2 = vector.load %arg5[%c0_3, %c0_4, %c0_5] : memref<27x128x128xbf16, #tpu.memory_space<vmem>>, vector<1x128x128xbf16>
    %3 = vector.shape_cast %2 : vector<1x128x128xbf16> to vector<128x128xbf16>
    %cst = arith.constant dense<0.000000e+00> : vector<80x128xf32>
    %4 = tpu.matmul %1, %3, %cst {dimension_numbers = #tpu.dot_dimension_numbers<[1], [0], [0], [1], [0, 0, 1, 1], [], []>} : vector<80x128xbf16>, vector<128x128xbf16>, vector<80x128xf32> -> vector<80x128xf32>
    %c0_6 = arith.constant 0 : index
    %c0_7 = arith.constant 0 : index
    %c1 = arith.constant 1 : index
    %c0_8 = arith.constant 0 : index
    %5 = vector.load %arg2[%c0_6, %c0_7, %c1, %c0_8] : memref<1x1x110x128xbf16, #tpu.memory_space<vmem>>, vector<1x1x80x128xbf16>
    %6 = vector.shape_cast %5 : vector<1x1x80x128xbf16> to vector<80x128xbf16>
    %c1_9 = arith.constant 1 : index
    %c0_10 = arith.constant 0 : index
    %c0_11 = arith.constant 0 : index
    %7 = vector.load %arg5[%c1_9, %c0_10, %c0_11] : memref<27x128x128xbf16, #tpu.memory_space<vmem>>, vector<1x128x128xbf16>
    %8 = vector.shape_cast %7 : vector<1x128x128xbf16> to vector<128x128xbf16>
    %cst_12 = arith.constant dense<0.000000e+00> : vector<80x128xf32>
    %9 = tpu.matmul %6, %8, %cst_12 {dimension_numbers = #tpu.dot_dimension_numbers<[1], [0], [0], [1], [0, 0, 1, 1], [], []>} : vector<80x128xbf16>, vector<128x128xbf16>, vector<80x128xf32> -> vector<80x128xf32>
    %10 = arith.addf %4, %9 : vector<80x128xf32>
    %c0_13 = arith.constant 0 : index
    %c0_14 = arith.constant 0 : index
    %c2 = arith.constant 2 : index
    %c0_15 = arith.constant 0 : index
    %11 = vector.load %arg2[%c0_13, %c0_14, %c2, %c0_15] : memref<1x1x110x128xbf16, #tpu.memory_space<vmem>>, vector<1x1x80x128xbf16>
    %12 = vector.shape_cast %11 : vector<1x1x80x128xbf16> to vector<80x128xbf16>
    %c2_16 = arith.constant 2 : index
    %c0_17 = arith.constant 0 : index
    %c0_18 = arith.constant 0 : index
    %13 = vector.load %arg5[%c2_16, %c0_17, %c0_18] : memref<27x128x128xbf16, #tpu.memory_space<vmem>>, vector<1x128x128xbf16>
    %14 = vector.shape_cast %13 : vector<1x128x128xbf16> to vector<128x128xbf16>
    %cst_19 = arith.constant dense<0.000000e+00> : vector<80x128xf32>
    %15 = tpu.matmul %12, %14, %cst_19 {dimension_numbers = #tpu.dot_dimension_numbers<[1], [0], [0], [1], [0, 0, 1, 1], [], []>} : vector<80x128xbf16>, vector<128x128xbf16>, vector<80x128xf32> -> vector<80x128xf32>
    %16 = arith.addf %10, %15 : vector<80x128xf32>
    %c0_20 = arith.constant 0 : index
    %c0_21 = arith.constant 0 : index
    %c10 = arith.constant 10 : index
    %c0_22 = arith.constant 0 : index
    %17 = vector.load %arg2[%c0_20, %c0_21, %c10, %c0_22] : memref<1x1x110x128xbf16, #tpu.memory_space<vmem>>, vector<1x1x80x128xbf16>
    %18 = vector.shape_cast %17 : vector<1x1x80x128xbf16> to vector<80x128xbf16>
    %c3 = arith.constant 3 : index
    %c0_23 = arith.constant 0 : index
    %c0_24 = arith.constant 0 : index
    %19 = vector.load %arg5[%c3, %c0_23, %c0_24] : memref<27x128x128xbf16, #tpu.memory_space<vmem>>, vector<1x128x128xbf16>
    %20 = vector.shape_cast %19 : vector<1x128x128xbf16> to vector<128x128xbf16>
    %cst_25 = arith.constant dense<0.000000e+00> : vector<80x128xf32>
    %21 = tpu.matmul %18, %20, %cst_25 {dimension_numbers = #tpu.dot_dimension_numbers<[1], [0], [0], [1], [0, 0, 1, 1], [], []>} : vector<80x128xbf16>, vector<128x128xbf16>, vector<80x128xf32> -> vector<80x128xf32>
    %22 = arith.addf %16, %21 : vector<80x128xf32>
    %c0_26 = arith.constant 0 : index
    %c0_27 = arith.constant 0 : index
    %c11 = arith.constant 11 : index
    %c0_28 = arith.constant 0 : index
    %23 = vector.load %arg2[%c0_26, %c0_27, %c11, %c0_28] : memref<1x1x110x128xbf16, #tpu.memory_space<vmem>>, vector<1x1x80x128xbf16>
    %24 = vector.shape_cast %23 : vector<1x1x80x128xbf16> to vector<80x128xbf16>
    %c4 = arith.constant 4 : index
    %c0_29 = arith.constant 0 : index
    %c0_30 = arith.constant 0 : index
    %25 = vector.load %arg5[%c4, %c0_29, %c0_30] : memref<27x128x128xbf16, #tpu.memory_space<vmem>>, vector<1x128x128xbf16>
    %26 = vector.shape_cast %25 : vector<1x128x128xbf16> to vector<128x128xbf16>
    %cst_31 = arith.constant dense<0.000000e+00> : vector<80x128xf32>
    %27 = tpu.matmul %24, %26, %cst_31 {dimension_numbers = #tpu.dot_dimension_numbers<[1], [0], [0], [1], [0, 0, 1, 1], [], []>} : vector<80x128xbf16>, vector<128x128xbf16>, vector<80x128xf32> -> vector<80x128xf32>
    %28 = arith.addf %22, %27 : vector<80x128xf32>
    %c0_32 = arith.constant 0 : index
    %c0_33 = arith.constant 0 : index
    %c12 = arith.constant 12 : index
    %c0_34 = arith.constant 0 : index
    %29 = vector.load %arg2[%c0_32, %c0_33, %c12, %c0_34] : memref<1x1x110x128xbf16, #tpu.memory_space<vmem>>, vector<1x1x80x128xbf16>
    %30 = vector.shape_cast %29 : vector<1x1x80x128xbf16> to vector<80x128xbf16>
    %c5 = arith.constant 5 : index
    %c0_35 = arith.constant 0 : index
    %c0_36 = arith.constant 0 : index
    %31 = vector.load %arg5[%c5, %c0_35, %c0_36] : memref<27x128x128xbf16, #tpu.memory_space<vmem>>, vector<1x128x128xbf16>
    %32 = vector.shape_cast %31 : vector<1x128x128xbf16> to vector<128x128xbf16>
    %cst_37 = arith.constant dense<0.000000e+00> : vector<80x128xf32>
    %33 = tpu.matmul %30, %32, %cst_37 {dimension_numbers = #tpu.dot_dimension_numbers<[1], [0], [0], [1], [0, 0, 1, 1], [], []>} : vector<80x128xbf16>, vector<128x128xbf16>, vector<80x128xf32> -> vector<80x128xf32>
    %34 = arith.addf %28, %33 : vector<80x128xf32>
    %c0_38 = arith.constant 0 : index
    %c0_39 = arith.constant 0 : index
    %c20 = arith.constant 20 : index
    %c0_40 = arith.constant 0 : index
    %35 = vector.load %arg2[%c0_38, %c0_39, %c20, %c0_40] : memref<1x1x110x128xbf16, #tpu.memory_space<vmem>>, vector<1x1x80x128xbf16>
    %36 = vector.shape_cast %35 : vector<1x1x80x128xbf16> to vector<80x128xbf16>
    %c6 = arith.constant 6 : index
    %c0_41 = arith.constant 0 : index
    %c0_42 = arith.constant 0 : index
    %37 = vector.load %arg5[%c6, %c0_41, %c0_42] : memref<27x128x128xbf16, #tpu.memory_space<vmem>>, vector<1x128x128xbf16>
    %38 = vector.shape_cast %37 : vector<1x128x128xbf16> to vector<128x128xbf16>
    %cst_43 = arith.constant dense<0.000000e+00> : vector<80x128xf32>
    %39 = tpu.matmul %36, %38, %cst_43 {dimension_numbers = #tpu.dot_dimension_numbers<[1], [0], [0], [1], [0, 0, 1, 1], [], []>} : vector<80x128xbf16>, vector<128x128xbf16>, vector<80x128xf32> -> vector<80x128xf32>
    %40 = arith.addf %34, %39 : vector<80x128xf32>
    %c0_44 = arith.constant 0 : index
    %c0_45 = arith.constant 0 : index
    %c21 = arith.constant 21 : index
    %c0_46 = arith.constant 0 : index
    %41 = vector.load %arg2[%c0_44, %c0_45, %c21, %c0_46] : memref<1x1x110x128xbf16, #tpu.memory_space<vmem>>, vector<1x1x80x128xbf16>
    %42 = vector.shape_cast %41 : vector<1x1x80x128xbf16> to vector<80x128xbf16>
    %c7 = arith.constant 7 : index
    %c0_47 = arith.constant 0 : index
    %c0_48 = arith.constant 0 : index
    %43 = vector.load %arg5[%c7, %c0_47, %c0_48] : memref<27x128x128xbf16, #tpu.memory_space<vmem>>, vector<1x128x128xbf16>
    %44 = vector.shape_cast %43 : vector<1x128x128xbf16> to vector<128x128xbf16>
    %cst_49 = arith.constant dense<0.000000e+00> : vector<80x128xf32>
    %45 = tpu.matmul %42, %44, %cst_49 {dimension_numbers = #tpu.dot_dimension_numbers<[1], [0], [0], [1], [0, 0, 1, 1], [], []>} : vector<80x128xbf16>, vector<128x128xbf16>, vector<80x128xf32> -> vector<80x128xf32>
    %46 = arith.addf %40, %45 : vector<80x128xf32>
    %c0_50 = arith.constant 0 : index
    %c0_51 = arith.constant 0 : index
    %c22 = arith.constant 22 : index
    %c0_52 = arith.constant 0 : index
    %47 = vector.load %arg2[%c0_50, %c0_51, %c22, %c0_52] : memref<1x1x110x128xbf16, #tpu.memory_space<vmem>>, vector<1x1x80x128xbf16>
    %48 = vector.shape_cast %47 : vector<1x1x80x128xbf16> to vector<80x128xbf16>
    %c8 = arith.constant 8 : index
    %c0_53 = arith.constant 0 : index
    %c0_54 = arith.constant 0 : index
    %49 = vector.load %arg5[%c8, %c0_53, %c0_54] : memref<27x128x128xbf16, #tpu.memory_space<vmem>>, vector<1x128x128xbf16>
    %50 = vector.shape_cast %49 : vector<1x128x128xbf16> to vector<128x128xbf16>
    %cst_55 = arith.constant dense<0.000000e+00> : vector<80x128xf32>
    %51 = tpu.matmul %48, %50, %cst_55 {dimension_numbers = #tpu.dot_dimension_numbers<[1], [0], [0], [1], [0, 0, 1, 1], [], []>} : vector<80x128xbf16>, vector<128x128xbf16>, vector<80x128xf32> -> vector<80x128xf32>
    %52 = arith.addf %46, %51 : vector<80x128xf32>
    %c0_56 = arith.constant 0 : index
    %c0_57 = arith.constant 0 : index
    %c0_58 = arith.constant 0 : index
    %c0_59 = arith.constant 0 : index
    %53 = vector.load %arg3[%c0_56, %c0_57, %c0_58, %c0_59] : memref<1x1x110x128xbf16, #tpu.memory_space<vmem>>, vector<1x1x80x128xbf16>
    %54 = vector.shape_cast %53 : vector<1x1x80x128xbf16> to vector<80x128xbf16>
    %c9 = arith.constant 9 : index
    %c0_60 = arith.constant 0 : index
    %c0_61 = arith.constant 0 : index
    %55 = vector.load %arg5[%c9, %c0_60, %c0_61] : memref<27x128x128xbf16, #tpu.memory_space<vmem>>, vector<1x128x128xbf16>
    %56 = vector.shape_cast %55 : vector<1x128x128xbf16> to vector<128x128xbf16>
    %cst_62 = arith.constant dense<0.000000e+00> : vector<80x128xf32>
    %57 = tpu.matmul %54, %56, %cst_62 {dimension_numbers = #tpu.dot_dimension_numbers<[1], [0], [0], [1], [0, 0, 1, 1], [], []>} : vector<80x128xbf16>, vector<128x128xbf16>, vector<80x128xf32> -> vector<80x128xf32>
    %58 = arith.addf %52, %57 : vector<80x128xf32>
    %c0_63 = arith.constant 0 : index
    %c0_64 = arith.constant 0 : index
    %c1_65 = arith.constant 1 : index
    %c0_66 = arith.constant 0 : index
    %59 = vector.load %arg3[%c0_63, %c0_64, %c1_65, %c0_66] : memref<1x1x110x128xbf16, #tpu.memory_space<vmem>>, vector<1x1x80x128xbf16>
    %60 = vector.shape_cast %59 : vector<1x1x80x128xbf16> to vector<80x128xbf16>
    %c10_67 = arith.constant 10 : index
    %c0_68 = arith.constant 0 : index
    %c0_69 = arith.constant 0 : index
    %61 = vector.load %arg5[%c10_67, %c0_68, %c0_69] : memref<27x128x128xbf16, #tpu.memory_space<vmem>>, vector<1x128x128xbf16>
    %62 = vector.shape_cast %61 : vector<1x128x128xbf16> to vector<128x128xbf16>
    %cst_70 = arith.constant dense<0.000000e+00> : vector<80x128xf32>
    %63 = tpu.matmul %60, %62, %cst_70 {dimension_numbers = #tpu.dot_dimension_numbers<[1], [0], [0], [1], [0, 0, 1, 1], [], []>} : vector<80x128xbf16>, vector<128x128xbf16>, vector<80x128xf32> -> vector<80x128xf32>
    %64 = arith.addf %58, %63 : vector<80x128xf32>
    %c0_71 = arith.constant 0 : index
    %c0_72 = arith.constant 0 : index
    %c2_73 = arith.constant 2 : index
    %c0_74 = arith.constant 0 : index
    %65 = vector.load %arg3[%c0_71, %c0_72, %c2_73, %c0_74] : memref<1x1x110x128xbf16, #tpu.memory_space<vmem>>, vector<1x1x80x128xbf16>
    %66 = vector.shape_cast %65 : vector<1x1x80x128xbf16> to vector<80x128xbf16>
    %c11_75 = arith.constant 11 : index
    %c0_76 = arith.constant 0 : index
    %c0_77 = arith.constant 0 : index
    %67 = vector.load %arg5[%c11_75, %c0_76, %c0_77] : memref<27x128x128xbf16, #tpu.memory_space<vmem>>, vector<1x128x128xbf16>
    %68 = vector.shape_cast %67 : vector<1x128x128xbf16> to vector<128x128xbf16>
    %cst_78 = arith.constant dense<0.000000e+00> : vector<80x128xf32>
    %69 = tpu.matmul %66, %68, %cst_78 {dimension_numbers = #tpu.dot_dimension_numbers<[1], [0], [0], [1], [0, 0, 1, 1], [], []>} : vector<80x128xbf16>, vector<128x128xbf16>, vector<80x128xf32> -> vector<80x128xf32>
    %70 = arith.addf %64, %69 : vector<80x128xf32>
    %c0_79 = arith.constant 0 : index
    %c0_80 = arith.constant 0 : index
    %c10_81 = arith.constant 10 : index
    %c0_82 = arith.constant 0 : index
    %71 = vector.load %arg3[%c0_79, %c0_80, %c10_81, %c0_82] : memref<1x1x110x128xbf16, #tpu.memory_space<vmem>>, vector<1x1x80x128xbf16>
    %72 = vector.shape_cast %71 : vector<1x1x80x128xbf16> to vector<80x128xbf16>
    %c12_83 = arith.constant 12 : index
    %c0_84 = arith.constant 0 : index
    %c0_85 = arith.constant 0 : index
    %73 = vector.load %arg5[%c12_83, %c0_84, %c0_85] : memref<27x128x128xbf16, #tpu.memory_space<vmem>>, vector<1x128x128xbf16>
    %74 = vector.shape_cast %73 : vector<1x128x128xbf16> to vector<128x128xbf16>
    %cst_86 = arith.constant dense<0.000000e+00> : vector<80x128xf32>
    %75 = tpu.matmul %72, %74, %cst_86 {dimension_numbers = #tpu.dot_dimension_numbers<[1], [0], [0], [1], [0, 0, 1, 1], [], []>} : vector<80x128xbf16>, vector<128x128xbf16>, vector<80x128xf32> -> vector<80x128xf32>
    %76 = arith.addf %70, %75 : vector<80x128xf32>
    %c0_87 = arith.constant 0 : index
    %c0_88 = arith.constant 0 : index
    %c11_89 = arith.constant 11 : index
    %c0_90 = arith.constant 0 : index
    %77 = vector.load %arg3[%c0_87, %c0_88, %c11_89, %c0_90] : memref<1x1x110x128xbf16, #tpu.memory_space<vmem>>, vector<1x1x80x128xbf16>
    %78 = vector.shape_cast %77 : vector<1x1x80x128xbf16> to vector<80x128xbf16>
    %c13 = arith.constant 13 : index
    %c0_91 = arith.constant 0 : index
    %c0_92 = arith.constant 0 : index
    %79 = vector.load %arg5[%c13, %c0_91, %c0_92] : memref<27x128x128xbf16, #tpu.memory_space<vmem>>, vector<1x128x128xbf16>
    %80 = vector.shape_cast %79 : vector<1x128x128xbf16> to vector<128x128xbf16>
    %cst_93 = arith.constant dense<0.000000e+00> : vector<80x128xf32>
    %81 = tpu.matmul %78, %80, %cst_93 {dimension_numbers = #tpu.dot_dimension_numbers<[1], [0], [0], [1], [0, 0, 1, 1], [], []>} : vector<80x128xbf16>, vector<128x128xbf16>, vector<80x128xf32> -> vector<80x128xf32>
    %82 = arith.addf %76, %81 : vector<80x128xf32>
    %c0_94 = arith.constant 0 : index
    %c0_95 = arith.constant 0 : index
    %c12_96 = arith.constant 12 : index
    %c0_97 = arith.constant 0 : index
    %83 = vector.load %arg3[%c0_94, %c0_95, %c12_96, %c0_97] : memref<1x1x110x128xbf16, #tpu.memory_space<vmem>>, vector<1x1x80x128xbf16>
    %84 = vector.shape_cast %83 : vector<1x1x80x128xbf16> to vector<80x128xbf16>
    %c14 = arith.constant 14 : index
    %c0_98 = arith.constant 0 : index
    %c0_99 = arith.constant 0 : index
    %85 = vector.load %arg5[%c14, %c0_98, %c0_99] : memref<27x128x128xbf16, #tpu.memory_space<vmem>>, vector<1x128x128xbf16>
    %86 = vector.shape_cast %85 : vector<1x128x128xbf16> to vector<128x128xbf16>
    %cst_100 = arith.constant dense<0.000000e+00> : vector<80x128xf32>
    %87 = tpu.matmul %84, %86, %cst_100 {dimension_numbers = #tpu.dot_dimension_numbers<[1], [0], [0], [1], [0, 0, 1, 1], [], []>} : vector<80x128xbf16>, vector<128x128xbf16>, vector<80x128xf32> -> vector<80x128xf32>
    %88 = arith.addf %82, %87 : vector<80x128xf32>
    %c0_101 = arith.constant 0 : index
    %c0_102 = arith.constant 0 : index
    %c20_103 = arith.constant 20 : index
    %c0_104 = arith.constant 0 : index
    %89 = vector.load %arg3[%c0_101, %c0_102, %c20_103, %c0_104] : memref<1x1x110x128xbf16, #tpu.memory_space<vmem>>, vector<1x1x80x128xbf16>
    %90 = vector.shape_cast %89 : vector<1x1x80x128xbf16> to vector<80x128xbf16>
    %c15 = arith.constant 15 : index
    %c0_105 = arith.constant 0 : index
    %c0_106 = arith.constant 0 : index
    %91 = vector.load %arg5[%c15, %c0_105, %c0_106] : memref<27x128x128xbf16, #tpu.memory_space<vmem>>, vector<1x128x128xbf16>
    %92 = vector.shape_cast %91 : vector<1x128x128xbf16> to vector<128x128xbf16>
    %cst_107 = arith.constant dense<0.000000e+00> : vector<80x128xf32>
    %93 = tpu.matmul %90, %92, %cst_107 {dimension_numbers = #tpu.dot_dimension_numbers<[1], [0], [0], [1], [0, 0, 1, 1], [], []>} : vector<80x128xbf16>, vector<128x128xbf16>, vector<80x128xf32> -> vector<80x128xf32>
    %94 = arith.addf %88, %93 : vector<80x128xf32>
    %c0_108 = arith.constant 0 : index
    %c0_109 = arith.constant 0 : index
    %c21_110 = arith.constant 21 : index
    %c0_111 = arith.constant 0 : index
    %95 = vector.load %arg3[%c0_108, %c0_109, %c21_110, %c0_111] : memref<1x1x110x128xbf16, #tpu.memory_space<vmem>>, vector<1x1x80x128xbf16>
    %96 = vector.shape_cast %95 : vector<1x1x80x128xbf16> to vector<80x128xbf16>
    %c16 = arith.constant 16 : index
    %c0_112 = arith.constant 0 : index
    %c0_113 = arith.constant 0 : index
    %97 = vector.load %arg5[%c16, %c0_112, %c0_113] : memref<27x128x128xbf16, #tpu.memory_space<vmem>>, vector<1x128x128xbf16>
    %98 = vector.shape_cast %97 : vector<1x128x128xbf16> to vector<128x128xbf16>
    %cst_114 = arith.constant dense<0.000000e+00> : vector<80x128xf32>
    %99 = tpu.matmul %96, %98, %cst_114 {dimension_numbers = #tpu.dot_dimension_numbers<[1], [0], [0], [1], [0, 0, 1, 1], [], []>} : vector<80x128xbf16>, vector<128x128xbf16>, vector<80x128xf32> -> vector<80x128xf32>
    %100 = arith.addf %94, %99 : vector<80x128xf32>
    %c0_115 = arith.constant 0 : index
    %c0_116 = arith.constant 0 : index
    %c22_117 = arith.constant 22 : index
    %c0_118 = arith.constant 0 : index
    %101 = vector.load %arg3[%c0_115, %c0_116, %c22_117, %c0_118] : memref<1x1x110x128xbf16, #tpu.memory_space<vmem>>, vector<1x1x80x128xbf16>
    %102 = vector.shape_cast %101 : vector<1x1x80x128xbf16> to vector<80x128xbf16>
    %c17 = arith.constant 17 : index
    %c0_119 = arith.constant 0 : index
    %c0_120 = arith.constant 0 : index
    %103 = vector.load %arg5[%c17, %c0_119, %c0_120] : memref<27x128x128xbf16, #tpu.memory_space<vmem>>, vector<1x128x128xbf16>
    %104 = vector.shape_cast %103 : vector<1x128x128xbf16> to vector<128x128xbf16>
    %cst_121 = arith.constant dense<0.000000e+00> : vector<80x128xf32>
    %105 = tpu.matmul %102, %104, %cst_121 {dimension_numbers = #tpu.dot_dimension_numbers<[1], [0], [0], [1], [0, 0, 1, 1], [], []>} : vector<80x128xbf16>, vector<128x128xbf16>, vector<80x128xf32> -> vector<80x128xf32>
    %106 = arith.addf %100, %105 : vector<80x128xf32>
    %c0_122 = arith.constant 0 : index
    %c0_123 = arith.constant 0 : index
    %c0_124 = arith.constant 0 : index
    %c0_125 = arith.constant 0 : index
    %107 = vector.load %arg4[%c0_122, %c0_123, %c0_124, %c0_125] : memref<1x1x110x128xbf16, #tpu.memory_space<vmem>>, vector<1x1x80x128xbf16>
    %108 = vector.shape_cast %107 : vector<1x1x80x128xbf16> to vector<80x128xbf16>
    %c18 = arith.constant 18 : index
    %c0_126 = arith.constant 0 : index
    %c0_127 = arith.constant 0 : index
    %109 = vector.load %arg5[%c18, %c0_126, %c0_127] : memref<27x128x128xbf16, #tpu.memory_space<vmem>>, vector<1x128x128xbf16>
    %110 = vector.shape_cast %109 : vector<1x128x128xbf16> to vector<128x128xbf16>
    %cst_128 = arith.constant dense<0.000000e+00> : vector<80x128xf32>
    %111 = tpu.matmul %108, %110, %cst_128 {dimension_numbers = #tpu.dot_dimension_numbers<[1], [0], [0], [1], [0, 0, 1, 1], [], []>} : vector<80x128xbf16>, vector<128x128xbf16>, vector<80x128xf32> -> vector<80x128xf32>
    %112 = arith.addf %106, %111 : vector<80x128xf32>
    %c0_129 = arith.constant 0 : index
    %c0_130 = arith.constant 0 : index
    %c1_131 = arith.constant 1 : index
    %c0_132 = arith.constant 0 : index
    %113 = vector.load %arg4[%c0_129, %c0_130, %c1_131, %c0_132] : memref<1x1x110x128xbf16, #tpu.memory_space<vmem>>, vector<1x1x80x128xbf16>
    %114 = vector.shape_cast %113 : vector<1x1x80x128xbf16> to vector<80x128xbf16>
    %c19 = arith.constant 19 : index
    %c0_133 = arith.constant 0 : index
    %c0_134 = arith.constant 0 : index
    %115 = vector.load %arg5[%c19, %c0_133, %c0_134] : memref<27x128x128xbf16, #tpu.memory_space<vmem>>, vector<1x128x128xbf16>
    %116 = vector.shape_cast %115 : vector<1x128x128xbf16> to vector<128x128xbf16>
    %cst_135 = arith.constant dense<0.000000e+00> : vector<80x128xf32>
    %117 = tpu.matmul %114, %116, %cst_135 {dimension_numbers = #tpu.dot_dimension_numbers<[1], [0], [0], [1], [0, 0, 1, 1], [], []>} : vector<80x128xbf16>, vector<128x128xbf16>, vector<80x128xf32> -> vector<80x128xf32>
    %118 = arith.addf %112, %117 : vector<80x128xf32>
    %c0_136 = arith.constant 0 : index
    %c0_137 = arith.constant 0 : index
    %c2_138 = arith.constant 2 : index
    %c0_139 = arith.constant 0 : index
    %119 = vector.load %arg4[%c0_136, %c0_137, %c2_138, %c0_139] : memref<1x1x110x128xbf16, #tpu.memory_space<vmem>>, vector<1x1x80x128xbf16>
    %120 = vector.shape_cast %119 : vector<1x1x80x128xbf16> to vector<80x128xbf16>
    %c20_140 = arith.constant 20 : index
    %c0_141 = arith.constant 0 : index
    %c0_142 = arith.constant 0 : index
    %121 = vector.load %arg5[%c20_140, %c0_141, %c0_142] : memref<27x128x128xbf16, #tpu.memory_space<vmem>>, vector<1x128x128xbf16>
    %122 = vector.shape_cast %121 : vector<1x128x128xbf16> to vector<128x128xbf16>
    %cst_143 = arith.constant dense<0.000000e+00> : vector<80x128xf32>
    %123 = tpu.matmul %120, %122, %cst_143 {dimension_numbers = #tpu.dot_dimension_numbers<[1], [0], [0], [1], [0, 0, 1, 1], [], []>} : vector<80x128xbf16>, vector<128x128xbf16>, vector<80x128xf32> -> vector<80x128xf32>
    %124 = arith.addf %118, %123 : vector<80x128xf32>
    %c0_144 = arith.constant 0 : index
    %c0_145 = arith.constant 0 : index
    %c10_146 = arith.constant 10 : index
    %c0_147 = arith.constant 0 : index
    %125 = vector.load %arg4[%c0_144, %c0_145, %c10_146, %c0_147] : memref<1x1x110x128xbf16, #tpu.memory_space<vmem>>, vector<1x1x80x128xbf16>
    %126 = vector.shape_cast %125 : vector<1x1x80x128xbf16> to vector<80x128xbf16>
    %c21_148 = arith.constant 21 : index
    %c0_149 = arith.constant 0 : index
    %c0_150 = arith.constant 0 : index
    %127 = vector.load %arg5[%c21_148, %c0_149, %c0_150] : memref<27x128x128xbf16, #tpu.memory_space<vmem>>, vector<1x128x128xbf16>
    %128 = vector.shape_cast %127 : vector<1x128x128xbf16> to vector<128x128xbf16>
    %cst_151 = arith.constant dense<0.000000e+00> : vector<80x128xf32>
    %129 = tpu.matmul %126, %128, %cst_151 {dimension_numbers = #tpu.dot_dimension_numbers<[1], [0], [0], [1], [0, 0, 1, 1], [], []>} : vector<80x128xbf16>, vector<128x128xbf16>, vector<80x128xf32> -> vector<80x128xf32>
    %130 = arith.addf %124, %129 : vector<80x128xf32>
    %c0_152 = arith.constant 0 : index
    %c0_153 = arith.constant 0 : index
    %c11_154 = arith.constant 11 : index
    %c0_155 = arith.constant 0 : index
    %131 = vector.load %arg4[%c0_152, %c0_153, %c11_154, %c0_155] : memref<1x1x110x128xbf16, #tpu.memory_space<vmem>>, vector<1x1x80x128xbf16>
    %132 = vector.shape_cast %131 : vector<1x1x80x128xbf16> to vector<80x128xbf16>
    %c22_156 = arith.constant 22 : index
    %c0_157 = arith.constant 0 : index
    %c0_158 = arith.constant 0 : index
    %133 = vector.load %arg5[%c22_156, %c0_157, %c0_158] : memref<27x128x128xbf16, #tpu.memory_space<vmem>>, vector<1x128x128xbf16>
    %134 = vector.shape_cast %133 : vector<1x128x128xbf16> to vector<128x128xbf16>
    %cst_159 = arith.constant dense<0.000000e+00> : vector<80x128xf32>
    %135 = tpu.matmul %132, %134, %cst_159 {dimension_numbers = #tpu.dot_dimension_numbers<[1], [0], [0], [1], [0, 0, 1, 1], [], []>} : vector<80x128xbf16>, vector<128x128xbf16>, vector<80x128xf32> -> vector<80x128xf32>
    %136 = arith.addf %130, %135 : vector<80x128xf32>
    %c0_160 = arith.constant 0 : index
    %c0_161 = arith.constant 0 : index
    %c12_162 = arith.constant 12 : index
    %c0_163 = arith.constant 0 : index
    %137 = vector.load %arg4[%c0_160, %c0_161, %c12_162, %c0_163] : memref<1x1x110x128xbf16, #tpu.memory_space<vmem>>, vector<1x1x80x128xbf16>
    %138 = vector.shape_cast %137 : vector<1x1x80x128xbf16> to vector<80x128xbf16>
    %c23 = arith.constant 23 : index
    %c0_164 = arith.constant 0 : index
    %c0_165 = arith.constant 0 : index
    %139 = vector.load %arg5[%c23, %c0_164, %c0_165] : memref<27x128x128xbf16, #tpu.memory_space<vmem>>, vector<1x128x128xbf16>
    %140 = vector.shape_cast %139 : vector<1x128x128xbf16> to vector<128x128xbf16>
    %cst_166 = arith.constant dense<0.000000e+00> : vector<80x128xf32>
    %141 = tpu.matmul %138, %140, %cst_166 {dimension_numbers = #tpu.dot_dimension_numbers<[1], [0], [0], [1], [0, 0, 1, 1], [], []>} : vector<80x128xbf16>, vector<128x128xbf16>, vector<80x128xf32> -> vector<80x128xf32>
    %142 = arith.addf %136, %141 : vector<80x128xf32>
    %c0_167 = arith.constant 0 : index
    %c0_168 = arith.constant 0 : index
    %c20_169 = arith.constant 20 : index
    %c0_170 = arith.constant 0 : index
    %143 = vector.load %arg4[%c0_167, %c0_168, %c20_169, %c0_170] : memref<1x1x110x128xbf16, #tpu.memory_space<vmem>>, vector<1x1x80x128xbf16>
    %144 = vector.shape_cast %143 : vector<1x1x80x128xbf16> to vector<80x128xbf16>
    %c24 = arith.constant 24 : index
    %c0_171 = arith.constant 0 : index
    %c0_172 = arith.constant 0 : index
    %145 = vector.load %arg5[%c24, %c0_171, %c0_172] : memref<27x128x128xbf16, #tpu.memory_space<vmem>>, vector<1x128x128xbf16>
    %146 = vector.shape_cast %145 : vector<1x128x128xbf16> to vector<128x128xbf16>
    %cst_173 = arith.constant dense<0.000000e+00> : vector<80x128xf32>
    %147 = tpu.matmul %144, %146, %cst_173 {dimension_numbers = #tpu.dot_dimension_numbers<[1], [0], [0], [1], [0, 0, 1, 1], [], []>} : vector<80x128xbf16>, vector<128x128xbf16>, vector<80x128xf32> -> vector<80x128xf32>
    %148 = arith.addf %142, %147 : vector<80x128xf32>
    %c0_174 = arith.constant 0 : index
    %c0_175 = arith.constant 0 : index
    %c21_176 = arith.constant 21 : index
    %c0_177 = arith.constant 0 : index
    %149 = vector.load %arg4[%c0_174, %c0_175, %c21_176, %c0_177] : memref<1x1x110x128xbf16, #tpu.memory_space<vmem>>, vector<1x1x80x128xbf16>
    %150 = vector.shape_cast %149 : vector<1x1x80x128xbf16> to vector<80x128xbf16>
    %c25 = arith.constant 25 : index
    %c0_178 = arith.constant 0 : index
    %c0_179 = arith.constant 0 : index
    %151 = vector.load %arg5[%c25, %c0_178, %c0_179] : memref<27x128x128xbf16, #tpu.memory_space<vmem>>, vector<1x128x128xbf16>
    %152 = vector.shape_cast %151 : vector<1x128x128xbf16> to vector<128x128xbf16>
    %cst_180 = arith.constant dense<0.000000e+00> : vector<80x128xf32>
    %153 = tpu.matmul %150, %152, %cst_180 {dimension_numbers = #tpu.dot_dimension_numbers<[1], [0], [0], [1], [0, 0, 1, 1], [], []>} : vector<80x128xbf16>, vector<128x128xbf16>, vector<80x128xf32> -> vector<80x128xf32>
    %154 = arith.addf %148, %153 : vector<80x128xf32>
    %c0_181 = arith.constant 0 : index
    %c0_182 = arith.constant 0 : index
    %c22_183 = arith.constant 22 : index
    %c0_184 = arith.constant 0 : index
    %155 = vector.load %arg4[%c0_181, %c0_182, %c22_183, %c0_184] : memref<1x1x110x128xbf16, #tpu.memory_space<vmem>>, vector<1x1x80x128xbf16>
    %156 = vector.shape_cast %155 : vector<1x1x80x128xbf16> to vector<80x128xbf16>
    %c26 = arith.constant 26 : index
    %c0_185 = arith.constant 0 : index
    %c0_186 = arith.constant 0 : index
    %157 = vector.load %arg5[%c26, %c0_185, %c0_186] : memref<27x128x128xbf16, #tpu.memory_space<vmem>>, vector<1x128x128xbf16>
    %158 = vector.shape_cast %157 : vector<1x128x128xbf16> to vector<128x128xbf16>
    %cst_187 = arith.constant dense<0.000000e+00> : vector<80x128xf32>
    %159 = tpu.matmul %156, %158, %cst_187 {dimension_numbers = #tpu.dot_dimension_numbers<[1], [0], [0], [1], [0, 0, 1, 1], [], []>} : vector<80x128xbf16>, vector<128x128xbf16>, vector<80x128xf32> -> vector<80x128xf32>
    %160 = arith.addf %154, %159 : vector<80x128xf32>
    %c0_188 = arith.constant 0 : index
    %c0_189 = arith.constant 0 : index
    %161 = vector.load %arg6[%c0_188, %c0_189] : memref<1x128xf32, #tpu.memory_space<vmem>>, vector<1x128xf32>
    %162 = vector.broadcast %161 : vector<1x128xf32> to vector<80x128xf32>
    %163 = arith.addf %160, %162 : vector<80x128xf32>
    %cst_190 = arith.constant 0.000000e+00 : f32
    %164 = vector.broadcast %cst_190 : f32 to vector<80x128xf32>
    %165 = arith.maximumf %163, %164 : vector<80x128xf32>
    %166 = arith.truncf %165 : vector<80x128xf32> to vector<80x128xbf16>
    %c0_191 = arith.constant 0 : index
    %c0_192 = arith.constant 0 : index
    %c0_193 = arith.constant 0 : index
    %c0_194 = arith.constant 0 : index
    %167 = vector.load %arg7[%c0_191, %c0_192, %c0_193, %c0_194] : memref<1x1x80x128xbf16, #tpu.memory_space<vmem>>, vector<1x1x80x128xbf16>
    %168 = vector.shape_cast %167 : vector<1x1x80x128xbf16> to vector<80x128xbf16>
    %169 = vector.shape_cast %166 : vector<80x128xbf16> to vector<1x1x80x128xbf16>
    tpu.vector_store %arg7[%c0_191, %c0_192, %c0_193, %c0_194], %169 {strides = array<i32>} : memref<1x1x80x128xbf16, #tpu.memory_space<vmem>>, vector<1x1x80x128xbf16>,
    return
  }
  func.func @transform_0(%arg0: i32, %arg1: i32) -> (i32, i32, i32, i32) {
    %c1_i32 = arith.constant 1 : i32
    %0 = arith.muli %c1_i32, %arg1 : i32
    %c0_i32 = arith.constant 0 : i32
    %1 = arith.addi %0, %c0_i32 : i32
    %c0_i32_0 = arith.constant 0 : i32
    %c0_i32_1 = arith.constant 0 : i32
    %c0_i32_2 = arith.constant 0 : i32
    return %arg0, %1, %c0_i32_0, %c0_i32_1 : i32, i32, i32, i32
  }
  func.func @transform_1(%arg0: i32, %arg1: i32) -> (i32, i32, i32, i32) {
    %c1_i32 = arith.constant 1 : i32
    %0 = arith.muli %c1_i32, %arg1 : i32
    %c1_i32_0 = arith.constant 1 : i32
    %1 = arith.addi %0, %c1_i32_0 : i32
    %c0_i32 = arith.constant 0 : i32
    %c0_i32_1 = arith.constant 0 : i32
    %c0_i32_2 = arith.constant 0 : i32
    return %arg0, %1, %c0_i32, %c0_i32_1 : i32, i32, i32, i32
  }
  func.func @transform_2(%arg0: i32, %arg1: i32) -> (i32, i32, i32, i32) {
    %c1_i32 = arith.constant 1 : i32
    %0 = arith.muli %c1_i32, %arg1 : i32
    %c2_i32 = arith.constant 2 : i32
    %1 = arith.addi %0, %c2_i32 : i32
    %c0_i32 = arith.constant 0 : i32
    %c0_i32_0 = arith.constant 0 : i32
    %c0_i32_1 = arith.constant 0 : i32
    return %arg0, %1, %c0_i32, %c0_i32_0 : i32, i32, i32, i32
  }
  func.func @transform_3(%arg0: i32, %arg1: i32) -> (i32, i32, i32) {
    %c0_i32 = arith.constant 0 : i32
    %c0_i32_0 = arith.constant 0 : i32
    %c0_i32_1 = arith.constant 0 : i32
    %c0_i32_2 = arith.constant 0 : i32
    return %c0_i32, %c0_i32_0, %c0_i32_1 : i32, i32, i32
  }
  func.func @transform_4(%arg0: i32, %arg1: i32) -> (i32, i32) {
    %c0_i32 = arith.constant 0 : i32
    %c0_i32_0 = arith.constant 0 : i32
    %c0_i32_1 = arith.constant 0 : i32
    return %c0_i32, %c0_i32_0 : i32, i32
  }
  func.func @transform_5(%arg0: i32, %arg1: i32) -> (i32, i32, i32, i32) {
    %c0_i32 = arith.constant 0 : i32
    %c0_i32_0 = arith.constant 0 : i32
    %c0_i32_1 = arith.constant 0 : i32
    return %arg0, %arg1, %c0_i32, %c0_i32_0 : i32, i32, i32, i32
  }
}

</mosaic_0001>

<llo_original>
// kernel: tpu_custom_call.1
$region0: #{tpu_custom_call.1}
  #allocation0 [shape = 'u32[]', space=smem, size = 0x4, offset = 0x4, fixed_abs, tag = 'smem constant byte address 0x4 - core index']
  #allocation1 [shape = 'u32[144,128]{1,0:T(1,128)}', space=vmem, size = 0x12000, scoped, tag = 'internal scratch']
  %s0 = inlined_call_operand.hbm [shape: bf16[1,10,110,128], index: 0, kind: input, shape index: {}]
  %s1 = inlined_call_operand.hbm [shape: bf16[1,10,110,128], index: 1, kind: input, shape index: {}]
  %s2 = inlined_call_operand.hbm [shape: bf16[1,10,110,128], index: 2, kind: input, shape index: {}]
  %s3 = inlined_call_operand.hbm [shape: bf16[27,128,128], index: 3, kind: input, shape index: {}]
  %s4 = inlined_call_operand.vmem [shape: f32[1,128], index: 4, kind: input, shape index: {}]
  %s5 = inlined_call_operand.hbm [shape: bf16[1,8,80,128], index: 5, kind: output, shape index: {}]
  %s6 = sld [smem:[#allocation0]]
  $region69: #{tpu_custom_call.1} parent=0
    _
  %s8 = ssub.s32 1, %s6
  %s9 = scalar_select 0, %s8, %s6
  $region1: #{tpu_custom_call.1} parent=0
    #allocation2 [shape = 'u8[57344]{0}', space=vmem, size = 0xe000, scoped, tag = 'input window, operand 0']
    #allocation3 [shape = 's32[2]{0}', space=sflag, size = 0x8, scoped, tag = 'scoped memory for tpu_custom_call.1']
    #allocation4 [shape = 's32[2]{0}', space=sflag, size = 0x8, scoped, tag = 'scoped memory for tpu_custom_call.1']
    #allocation5 [shape = 'u8[57344]{0}', space=vmem, size = 0xe000, scoped, tag = 'input window, operand 1']
    #allocation6 [shape = 's32[2]{0}', space=sflag, size = 0x8, scoped, tag = 'scoped memory for tpu_custom_call.1']
    #allocation7 [shape = 'u8[57344]{0}', space=vmem, size = 0xe000, scoped, tag = 'input window, operand 2']
    #allocation8 [shape = 'u8[884736]{0}', space=vmem, size = 0xd8000, scoped, tag = 'input window, operand 3, single buffered']
    #allocation9 [shape = 's32[1]{0}', space=sflag, size = 0x4, scoped, tag = 'scoped memory for tpu_custom_call.1']
    #allocation10 [shape = 'u8[40960]{0}', space=vmem, size = 0xa000, scoped, tag = 'output window, operand 0']
    %10 = vsyncpa [#allocation3], 0
    %s11 = scalar_lea.sflag [#allocation3], 1
    %12 = vsyncpa %s11, 0
    %13 = vsyncpa [#allocation6], 0
    %s14 = scalar_lea.sflag [#allocation6], 1
    %15 = vsyncpa %s14, 0
    %16 = vsyncpa [#allocation9], 0
    %17 = vsyncpa [#allocation4], 0
    %s18 = scalar_lea.sflag [#allocation4], 1
    %19 = vsyncpa %s18, 0
    loop: start=0, step=1, limit=10
    $region2: #{tpu_custom_call.1} parent=1 // loop_pre_header
      _
    $region3: #{tpu_custom_call.1} parent=1 // loop_header
      %s21 = sphi 0, %s25
      %p22 = scmp.ge.s32.totalorder %s21, 10
      %s28 = sphi 0, %s40
      %s29 = sphi 0, %s36
      %s30 = sphi 0, %s28
      %s31 = sphi 0, %s29
      %s32 = sphi 0, %s30
      %s33 = sphi 0, %s31
      %s45 = sphi 0, %s47
      %s48 = sphi 0, %s45
      %s49 = sphi 0, %s48
      %s65 = sphi 0, %s49
      %s75 = sphi 0, %s77
      %s78 = sphi 0, %s75
      %s79 = sphi 0, %s78
      %s95 = sphi 0, %s79
      %s105 = sphi 0, %s107
      %s108 = sphi 0, %s105
      %s109 = sphi 0, %s108
      %s125 = sphi 0, %s109
      %s129 = sphi 0, %s129
      %s131 = sphi 0, %s129
      %s132 = sphi 0, %s131
      %s146 = sphi 0, %s132
      %s150 = sphi 0, %s150
      %s152 = sphi 0, %s150
      %s153 = sphi 0, %s152
      %s167 = sphi 0, %s153
      %s175 = sphi 0, %s177
      %s178 = sphi 0, %s175
      %s179 = sphi 0, %s178
      %s195 = sphi 0, %s179
    $region4: #{tpu_custom_call.1} parent=1 // loop_header_branch
      %24 = sbr.rel (%p22) target = $region8
    $region5: #{tpu_custom_call.1} parent=1 // loop_body
      %s26 = ssub.s32 %s21, 1
      %s27 = ssub.s32 %s21, 2
      %s34 = sadd.s32 1, %s29
      %p35 = scmp.ge.s32.totalorder %s34, 8
      %s36 = scalar_select %p35, 0, %s34
      %s37 = sadd.s32 1, %s28
      %s38 = scalar_select %p35, %s37, %s28
      %p39 = scmp.ge.s32.totalorder %s38, 1
      %s40 = scalar_select %p39, 0, %s38
      %s41 = ssub.s32 %s28, %s40
      %s42 = ssub.s32 %s29, %s36
      %s43 = sor.u32 %s41, %s42
      %p44 = scmp.eq.s32.totalorder %s43, 0
      %s46 = sadd.s32 %s45, 1
      %s47 = scalar_select %p44, %s45, %s46
      %p50 = pneg %p44
      %p51 = scmp.eq.s32.totalorder %s21, 7
      %p52 = por %p50, %p51
      %p53 = scmp.ne.s32.totalorder %s45, %s48
      %p54 = scmp.eq.s32.totalorder %s21, 0
      %p55 = por %p53, %p54
      %p56 = scmp.ne.s32.totalorder %s45, %s48
      %p57 = scmp.eq.s32.totalorder %s26, 7
      %p58 = por %p56, %p57
      %p59 = scmp.ne.s32.totalorder %s48, %s49
      %p60 = scmp.eq.s32.totalorder %s26, 0
      %p61 = por %p59, %p60
      %p62 = scmp.ne.s32.totalorder %s48, %s49
      %p63 = scmp.eq.s32.totalorder %s27, 7
      %p64 = por %p62, %p63
      %p66 = scmp.ne.s32.totalorder %s49, %s65
      %p67 = scmp.eq.s32.totalorder %s27, 0
      %p68 = por %p66, %p67
      %s69 = sadd.s32 %s29, 1
      %s70 = sadd.s32 %s36, 1
      %s71 = ssub.s32 %s28, %s40
      %s72 = ssub.s32 %s69, %s70
      %s73 = sor.u32 %s71, %s72
      %p74 = scmp.eq.s32.totalorder %s73, 0
      %s76 = sadd.s32 %s75, 1
      %s77 = scalar_select %p74, %s75, %s76
      %p80 = pneg %p74
      %p81 = scmp.eq.s32.totalorder %s21, 7
      %p82 = por %p80, %p81
      %p83 = scmp.ne.s32.totalorder %s75, %s78
      %p84 = scmp.eq.s32.totalorder %s21, 0
      %p85 = por %p83, %p84
      %p86 = scmp.ne.s32.totalorder %s75, %s78
      %p87 = scmp.eq.s32.totalorder %s26, 7
      %p88 = por %p86, %p87
      %p89 = scmp.ne.s32.totalorder %s78, %s79
      %p90 = scmp.eq.s32.totalorder %s26, 0
      %p91 = por %p89, %p90
      %p92 = scmp.ne.s32.totalorder %s78, %s79
      %p93 = scmp.eq.s32.totalorder %s27, 7
      %p94 = por %p92, %p93
      %p96 = scmp.ne.s32.totalorder %s79, %s95
      %p97 = scmp.eq.s32.totalorder %s27, 0
      %p98 = por %p96, %p97
      %s99 = sadd.s32 %s29, 2
      %s100 = sadd.s32 %s36, 2
      %s101 = ssub.s32 %s28, %s40
      %s102 = ssub.s32 %s99, %s100
      %s103 = sor.u32 %s101, %s102
      %p104 = scmp.eq.s32.totalorder %s103, 0
      %s106 = sadd.s32 %s105, 1
      %s107 = scalar_select %p104, %s105, %s106
      %p110 = pneg %p104
      %p111 = scmp.eq.s32.totalorder %s21, 7
      %p112 = por %p110, %p111
      %p113 = scmp.ne.s32.totalorder %s105, %s108
      %p114 = scmp.eq.s32.totalorder %s21, 0
      %p115 = por %p113, %p114
      %p116 = scmp.ne.s32.totalorder %s105, %s108
      %p117 = scmp.eq.s32.totalorder %s26, 7
      %p118 = por %p116, %p117
      %p119 = scmp.ne.s32.totalorder %s108, %s109
      %p120 = scmp.eq.s32.totalorder %s26, 0
      %p121 = por %p119, %p120
      %p122 = scmp.ne.s32.totalorder %s108, %s109
      %p123 = scmp.eq.s32.totalorder %s27, 7
      %p124 = por %p122, %p123
      %p126 = scmp.ne.s32.totalorder %s109, %s125
      %p127 = scmp.eq.s32.totalorder %s27, 0
      %p128 = por %p126, %p127
      %s130 = sadd.s32 %s129, 1
      %p133 = scmp.eq.s32.totalorder %s21, 7
      %p134 = scmp.ne.s32.totalorder %s129, %s131
      %p135 = scmp.eq.s32.totalorder %s21, 0
      %p136 = por %p134, %p135
      %p137 = scmp.ne.s32.totalorder %s129, %s131
      %p138 = scmp.eq.s32.totalorder %s26, 7
      %p139 = por %p137, %p138
      %p140 = scmp.ne.s32.totalorder %s131, %s132
      %p141 = scmp.eq.s32.totalorder %s26, 0
      %p142 = por %p140, %p141
      %p143 = scmp.ne.s32.totalorder %s131, %s132
      %p144 = scmp.eq.s32.totalorder %s27, 7
      %p145 = por %p143, %p144
      %p147 = scmp.ne.s32.totalorder %s132, %s146
      %p148 = scmp.eq.s32.totalorder %s27, 0
      %p149 = por %p147, %p148
      %s151 = sadd.s32 %s150, 1
      %p154 = scmp.eq.s32.totalorder %s21, 7
      %p155 = scmp.ne.s32.totalorder %s150, %s152
      %p156 = scmp.eq.s32.totalorder %s21, 0
      %p157 = por %p155, %p156
      %p158 = scmp.ne.s32.totalorder %s150, %s152
      %p159 = scmp.eq.s32.totalorder %s26, 7
      %p160 = por %p158, %p159
      %p161 = scmp.ne.s32.totalorder %s152, %s153
      %p162 = scmp.eq.s32.totalorder %s26, 0
      %p163 = por %p161, %p162
      %p164 = scmp.ne.s32.totalorder %s152, %s153
      %p165 = scmp.eq.s32.totalorder %s27, 7
      %p166 = por %p164, %p165
      %p168 = scmp.ne.s32.totalorder %s153, %s167
      %p169 = scmp.eq.s32.totalorder %s27, 0
      %p170 = por %p168, %p169
      %s171 = ssub.s32 %s28, %s40
      %s172 = ssub.s32 %s29, %s36
      %s173 = sor.u32 %s171, %s172
      %p174 = scmp.eq.s32.totalorder %s173, 0
      %s176 = sadd.s32 %s175, 1
      %s177 = scalar_select %p174, %s175, %s176
      %p180 = pneg %p174
      %p181 = scmp.eq.s32.totalorder %s21, 7
      %p182 = por %p180, %p181
      %p183 = scmp.ne.s32.totalorder %s175, %s178
      %p184 = scmp.eq.s32.totalorder %s21, 0
      %p185 = por %p183, %p184
      %p186 = scmp.ne.s32.totalorder %s175, %s178
      %p187 = scmp.eq.s32.totalorder %s26, 7
      %p188 = por %p186, %p187
      %p189 = scmp.ne.s32.totalorder %s178, %s179
      %p190 = scmp.eq.s32.totalorder %s26, 0
      %p191 = por %p189, %p190
      %p192 = scmp.ne.s32.totalorder %s178, %s179
      %p193 = scmp.eq.s32.totalorder %s27, 7
      %p194 = por %p192, %p193
      %p196 = scmp.ne.s32.totalorder %s179, %s195
      %p197 = scmp.eq.s32.totalorder %s27, 0
      %p198 = por %p196, %p197
      %p199 = scmp.le.s32.totalorder 1, %s21
      %p200 = scmp.lt.s32.totalorder %s21, 9
      %p201 = pnand %p199, %p200
      %p202 = pneg %p201
      // Predicated region
      $region9: #{tpu_custom_call.1} parent=5 // pred_check
        _
      $region10: #{tpu_custom_call.1} parent=5 // pred_check_branch
        %204 = sbr.rel (%p201) target = $region12
      $region11: #{tpu_custom_call.1} parent=5 // pred_region
        %s205 = ssub.s32 %s21, 1
        // Predicated region
        $region13: #{tpu_custom_call.1} parent=11 // pred_check
          %p206 = pneg %p142
        $region14: #{tpu_custom_call.1} parent=11 // pred_check_branch
          %208 = sbr.rel (%p206) target = $region16
        $region15: #{tpu_custom_call.1} parent=11 // pred_region
          %s210 = ssub.s32 27648, 27648
          %211 = vsyncadd [#allocation9], %s210
          %s212 = sshll.u32 [#allocation8], 4
          %s213 = int_to_ptr.vmem [resolvable:$true] %s212
          %218 = dma.hbm_to_vmem [thread:$0]  %s3, 27648, %s213, [#allocation9], 64, 64, 4
        $region16: #{tpu_custom_call.1} parent=11 // pred_fallthru
          _
        // Predicated region
        $region17: #{tpu_custom_call.1} parent=11 // pred_check
          %p219 = pneg %p163
        $region18: #{tpu_custom_call.1} parent=11 // pred_check_branch
          %221 = sbr.rel (%p219) target = $region20
        $region19: #{tpu_custom_call.1} parent=11 // pred_region
          _
        $region20: #{tpu_custom_call.1} parent=11 // pred_fallthru
          _
      $region12: #{tpu_custom_call.1} parent=5 // pred_fallthru
        _
      %p222 = scmp.lt.s32.totalorder %s21, 8
      // Predicated region
      $region21: #{tpu_custom_call.1} parent=5 // pred_check
        %p223 = pneg %p222
      $region22: #{tpu_custom_call.1} parent=5 // pred_check_branch
        %225 = sbr.rel (%p223) target = $region24
      $region23: #{tpu_custom_call.1} parent=5 // pred_region
        // Predicated region
        $region25: #{tpu_custom_call.1} parent=23 // pred_check
          %p226 = pneg %p55
        $region26: #{tpu_custom_call.1} parent=23 // pred_check_branch
          %228 = sbr.rel (%p226) target = $region28
        $region27: #{tpu_custom_call.1} parent=23 // pred_region
          %s229 = sand.u32 %s45, 1
          %s230 = scalar_lea.sflag [#allocation3], %s229
          %s231 = sand.u32 %s45, 1
          %s232 = smul.addr %s231, 56
          %s233 = scalar_lea.vmem [#allocation2], %s232
          %s235 = ssub.s32 896, 896
          %236 = vsyncadd %s230, %s235
          %s237 = smul.addr %s29, 14
          %s238 = smul.addr %s28, 140
          %s239 = sadd.s32 %s237, %s238
          %s240 = smul.addr %s239, 64
          %s241 = scalar_lea.hbm %s0, %s240
          %s242 = sshll.u32 %s233, 4
          %s243 = int_to_ptr.vmem [resolvable:$true] %s242
          %248 = dma.hbm_to_vmem [thread:$0]  %s241, 896, %s243, %s230, 64, 64, 4
        $region28: #{tpu_custom_call.1} parent=23 // pred_fallthru
          _
        // Predicated region
        $region29: #{tpu_custom_call.1} parent=23 // pred_check
          %p249 = pneg %p85
        $region30: #{tpu_custom_call.1} parent=23 // pred_check_branch
          %251 = sbr.rel (%p249) target = $region32
        $region31: #{tpu_custom_call.1} parent=23 // pred_region
          %s252 = sand.u32 %s21, 1
          %s253 = scalar_lea.sflag [#allocation6], %s252
          %s254 = sand.u32 %s75, 1
          %s255 = smul.addr %s254, 56
          %s256 = scalar_lea.vmem [#allocation5], %s255
          %s257 = sadd.s32 %s29, 1
          %s259 = ssub.s32 896, 896
          %260 = vsyncadd %s253, %s259
          %s261 = smul.addr %s257, 14
          %s262 = smul.addr %s28, 140
          %s263 = sadd.s32 %s261, %s262
          %s264 = smul.addr %s263, 64
          %s265 = scalar_lea.hbm %s1, %s264
          %s266 = sshll.u32 %s256, 4
          %s267 = int_to_ptr.vmem [resolvable:$true] %s266
          %272 = dma.hbm_to_vmem [thread:$0]  %s265, 896, %s267, %s253, 64, 64, 4
        $region32: #{tpu_custom_call.1} parent=23 // pred_fallthru
          _
        // Predicated region
        $region33: #{tpu_custom_call.1} parent=23 // pred_check
          %p273 = pneg %p115
        $region34: #{tpu_custom_call.1} parent=23 // pred_check_branch
          %275 = sbr.rel (%p273) target = $region36
        $region35: #{tpu_custom_call.1} parent=23 // pred_region
          %s276 = sand.u32 %s21, 1
          %s277 = scalar_lea.sflag [#allocation6], %s276
          %s278 = sand.u32 %s105, 1
          %s279 = smul.addr %s278, 56
          %s280 = scalar_lea.vmem [#allocation7], %s279
          %s281 = sadd.s32 %s29, 2
          %s283 = ssub.s32 896, 896
          %284 = vsyncadd %s277, %s283
          %s285 = smul.addr %s281, 14
          %s286 = smul.addr %s28, 140
          %s287 = sadd.s32 %s285, %s286
          %s288 = smul.addr %s287, 64
          %s289 = scalar_lea.hbm %s2, %s288
          %s290 = sshll.u32 %s280, 4
          %s291 = int_to_ptr.vmem [resolvable:$true] %s290
          %296 = dma.hbm_to_vmem [thread:$0]  %s289, 896, %s291, %s277, 64, 64, 4
        $region36: #{tpu_custom_call.1} parent=23 // pred_fallthru
          _
      $region24: #{tpu_custom_call.1} parent=5 // pred_fallthru
        _
      %p297 = scmp.le.s32.totalorder 1, %s21
      %p298 = scmp.lt.s32.totalorder %s21, 9
      %p299 = pnand %p297, %p298
      %p300 = pneg %p299
      // Predicated region
      $region37: #{tpu_custom_call.1} parent=5 // pred_check
        _
      $region38: #{tpu_custom_call.1} parent=5 // pred_check_branch
        %302 = sbr.rel (%p299) target = $region40
      $region39: #{tpu_custom_call.1} parent=5 // pred_region
        %s303 = ssub.s32 %s21, 1
        %s304 = sand.u32 %s48, 1
        %s305 = scalar_lea.sflag [#allocation3], %s304
        %s306 = sand.u32 %s48, 1
        %s307 = smul.addr %s306, 56
        %s308 = scalar_lea.vmem [#allocation2], %s307
        // Predicated region
        $region41: #{tpu_custom_call.1} parent=39 // pred_check
          %p309 = pneg %p61
        $region42: #{tpu_custom_call.1} parent=39 // pred_check_branch
          %311 = sbr.rel (%p309) target = $region44
        $region43: #{tpu_custom_call.1} parent=39 // pred_region
          %312 = dma.done %s305, 896
        $region44: #{tpu_custom_call.1} parent=39 // pred_fallthru
          _
        %s313 = sand.u32 %s26, 1
        %s314 = scalar_lea.sflag [#allocation6], %s313
        %s315 = sand.u32 %s78, 1
        %s316 = smul.addr %s315, 56
        %s317 = scalar_lea.vmem [#allocation5], %s316
        // Predicated region
        $region45: #{tpu_custom_call.1} parent=39 // pred_check
          %p318 = pneg %p91
        $region46: #{tpu_custom_call.1} parent=39 // pred_check_branch
          %320 = sbr.rel (%p318) target = $region48
        $region47: #{tpu_custom_call.1} parent=39 // pred_region
          %321 = dma.done %s314, 896
        $region48: #{tpu_custom_call.1} parent=39 // pred_fallthru
          _
        %s322 = sand.u32 %s26, 1
        %s323 = scalar_lea.sflag [#allocation6], %s322
        %s324 = sand.u32 %s108, 1
        %s325 = smul.addr %s324, 56
        %s326 = scalar_lea.vmem [#allocation7], %s325
        // Predicated region
        $region49: #{tpu_custom_call.1} parent=39 // pred_check
          %p327 = pneg %p121
        $region50: #{tpu_custom_call.1} parent=39 // pred_check_branch
          %329 = sbr.rel (%p327) target = $region52
        $region51: #{tpu_custom_call.1} parent=39 // pred_region
          %330 = dma.done %s323, 896
        $region52: #{tpu_custom_call.1} parent=39 // pred_fallthru
          _
        // Predicated region
        $region53: #{tpu_custom_call.1} parent=39 // pred_check
          %p331 = pneg %p142
        $region54: #{tpu_custom_call.1} parent=39 // pred_check_branch
          %333 = sbr.rel (%p331) target = $region56
        $region55: #{tpu_custom_call.1} parent=39 // pred_region
          %334 = dma.done [#allocation9], 27648
        $region56: #{tpu_custom_call.1} parent=39 // pred_fallthru
          _
        %s335 = sand.u32 %s48, 1
        %s336 = scalar_lea.sflag [#allocation3], %s335
        %s337 = sand.u32 %s48, 1
        %s338 = smul.addr %s337, 56
        %s339 = scalar_lea.vmem [#allocation2], %s338
        %p340 = pneg %p61
        %p341 = pneg %p58
        %s342 = sand.u32 %s26, 1
        %s343 = scalar_lea.sflag [#allocation6], %s342
        %s344 = sand.u32 %s78, 1
        %s345 = smul.addr %s344, 56
        %s346 = scalar_lea.vmem [#allocation5], %s345
        %p347 = pneg %p91
        %p348 = pneg %p88
        %s349 = sand.u32 %s26, 1
        %s350 = scalar_lea.sflag [#allocation6], %s349
        %s351 = sand.u32 %s108, 1
        %s352 = smul.addr %s351, 56
        %s353 = scalar_lea.vmem [#allocation7], %s352
        %p354 = pneg %p121
        %p355 = pneg %p118
        %p356 = pneg %p142
        %p357 = pneg %p139
        %p358 = pneg %p163
        %p359 = pneg %p160
        %p360 = pneg %p191
        %p361 = pneg %p188
        %s362 = sand.u32 %s178, 1
        %s363 = scalar_lea.sflag [#allocation4], %s362
        %s364 = sand.u32 %s178, 1
        %s365 = smul.addr %s364, 40
        %s366 = scalar_lea.vmem [#allocation10], %s365
        %s367 = sadd.s32 %s31, 1
        %s368 = sadd.s32 %s31, 2
        %v370 = vld [vmem:[%s308] sm:$0xf]
        %v371 = vld [vmem:[%s308 + $0x4] sm:$0xf]
        %v372 = vld [vmem:[%s308 + $0x8] sm:$0xf]
        %v373 = vld [vmem:[%s308 + $0xc] sm:$0xf]
        %v374 = vld [vmem:[%s308 + $0x10] sm:$0xf]
        %v375 = vld [vmem:[%s308 + $0x14] sm:$0xf]
        %v376 = vld [vmem:[%s308 + $0x18] sm:$0xf]
        %v377 = vld [vmem:[%s308 + $0x1c] sm:$0xf]
        %v378 = vld [vmem:[%s308 + $0x20] sm:$0xf]
        %v379 = vld [vmem:[%s308 + $0x24] sm:$0xf]
        %v380 = vld [vmem:[#allocation8] sm:$0xf]
        %v381 = vld [vmem:[#allocation8 + $0x4] sm:$0xf]
        %v382 = vld [vmem:[#allocation8 + $0x8] sm:$0xf]
        %v383 = vld [vmem:[#allocation8 + $0xc] sm:$0xf]
        %v384 = vld [vmem:[#allocation8 + $0x10] sm:$0xf]
        %v385 = vld [vmem:[#allocation8 + $0x14] sm:$0xf]
        %v386 = vld [vmem:[#allocation8 + $0x18] sm:$0xf]
        %v387 = vld [vmem:[#allocation8 + $0x1c] sm:$0xf]
        %v388 = vld [vmem:[#allocation8 + $0x20] sm:$0xf]
        %v389 = vld [vmem:[#allocation8 + $0x24] sm:$0xf]
        %v390 = vld [vmem:[#allocation8 + $0x28] sm:$0xf]
        %v391 = vld [vmem:[#allocation8 + $0x2c] sm:$0xf]
        %v392 = vld [vmem:[#allocation8 + $0x30] sm:$0xf]
        %v393 = vld [vmem:[#allocation8 + $0x34] sm:$0xf]
        %v394 = vld [vmem:[#allocation8 + $0x38] sm:$0xf]
        %v395 = vld [vmem:[#allocation8 + $0x3c] sm:$0xf]
        %v396 = vld [vmem:[%s308 + $0x28] sm:$0x1]
        %s397 = scalar_lea.vmem [#allocation8], 64
        %v398 = vld [vmem:[%s397] sm:$0xf]
        %v399 = vld [vmem:[%s397 + $0x4] sm:$0xf]
        %v400 = vld [vmem:[%s397 + $0x8] sm:$0xf]
        %v401 = vld [vmem:[%s397 + $0xc] sm:$0xf]
        %v402 = vld [vmem:[%s397 + $0x10] sm:$0xf]
        %v403 = vld [vmem:[%s397 + $0x14] sm:$0xf]
        %v404 = vld [vmem:[%s397 + $0x18] sm:$0xf]
        %v405 = vld [vmem:[%s397 + $0x1c] sm:$0xf]
        %v406 = vld [vmem:[%s397 + $0x20] sm:$0xf]
        %v407 = vld [vmem:[%s397 + $0x24] sm:$0xf]
        %v408 = vld [vmem:[%s397 + $0x28] sm:$0xf]
        %v409 = vld [vmem:[%s397 + $0x2c] sm:$0xf]
        %v410 = vld [vmem:[%s397 + $0x30] sm:$0xf]
        %v411 = vld [vmem:[%s397 + $0x34] sm:$0xf]
        %v412 = vld [vmem:[%s397 + $0x38] sm:$0xf]
        %v413 = vld [vmem:[%s397 + $0x3c] sm:$0xf]
        %v425 = vunpack.c.l.b16 %v370
        %v426 = vunpack.c.l.b16 %v371
        %v427 = vunpack.c.l.b16 %v372
        %v428 = vunpack.c.l.b16 %v373
        %v429 = vunpack.c.l.b16 %v374
        %v430 = vunpack.c.l.b16 %v375
        %v431 = vunpack.c.l.b16 %v376
        %v432 = vunpack.c.l.b16 %v377
        %v433 = vunpack.c.l.b16 %v378
        %v434 = vunpack.c.l.b16 %v379
        %v435 = vunpack.c.l.b16 %v396
        %v436 = vpack.c.b16 %v426, %v425
        %v437 = vpack.c.b16 %v428, %v427
        %v438 = vpack.c.b16 %v430, %v429
        %v439 = vpack.c.b16 %v432, %v431
        %v440 = vpack.c.b16 %v434, %v433
        %v441 = vpack.c.b16 %v435, %v435
        %vm442 = vsmask.f32 7424
        %v444 = vshrl.u32 %v436, 16
        %v446 = vshll.u32 %v436, 16
        %v448 = vrot.slane %v446, 1
        %v449 = vor.u32 %v444, %v448
        %v451 = vshll.u32 %v437, 16
        %v453 = vrot.slane %v451, 1
        %v454 = vsel %vm442, %v449, %v453
        %v455 = vshrl.u32 %v437, 16
        %v457 = vor.u32 %v455, %v453
        %v459 = vshll.u32 %v438, 16
        %v461 = vrot.slane %v459, 1
        %v462 = vsel %vm442, %v457, %v461
        %v463 = vshrl.u32 %v438, 16
        %v465 = vor.u32 %v463, %v461
        %v467 = vshll.u32 %v439, 16
        %v469 = vrot.slane %v467, 1
        %v470 = vsel %vm442, %v465, %v469
        %v471 = vshrl.u32 %v439, 16
        %v473 = vor.u32 %v471, %v469
        %v475 = vshll.u32 %v440, 16
        %v477 = vrot.slane %v475, 1
        %v478 = vsel %vm442, %v473, %v477
        %v479 = vshrl.u32 %v440, 16
        %v481 = vor.u32 %v479, %v477
        %v483 = vshll.u32 %v441, 16
        %v485 = vrot.slane %v483, 1
        %v486 = vsel %vm442, %v481, %v485
        %v508 = vunpack.c.l.b16 %v398
        %v509 = vunpack.c.l.b16 %v399
        %v510 = vunpack.c.l.b16 %v400
        %v511 = vunpack.c.l.b16 %v401
        %v512 = vunpack.c.l.b16 %v402
        %v513 = vunpack.c.l.b16 %v403
        %v514 = vunpack.c.l.b16 %v404
        %v515 = vunpack.c.l.b16 %v405
        %v516 = vunpack.c.l.b16 %v406
        %v517 = vunpack.c.l.b16 %v407
        %v518 = vunpack.c.l.b16 %v408
        %v519 = vunpack.c.l.b16 %v409
        %v520 = vunpack.c.l.b16 %v410
        %v521 = vunpack.c.l.b16 %v411
        %v522 = vunpack.c.l.b16 %v412
        %v523 = vunpack.c.l.b16 %v413
        %v524 = vpack.c.b16 %v509, %v508
        %v525 = vpack.c.b16 %v511, %v510
        %v526 = vpack.c.b16 %v513, %v512
        %v527 = vpack.c.b16 %v515, %v514
        %v528 = vpack.c.b16 %v517, %v516
        %v529 = vpack.c.b16 %v519, %v518
        %v530 = vpack.c.b16 %v521, %v520
        %v531 = vpack.c.b16 %v523, %v522
        %540 = vmatprep.subr.bf16.mxu0 0
        %541 = vmatpush1.bf16.msra.mxu0 %v524
        %542 = vmatprep.subr.bf16.mxu0 0
        %543 = vmatpush1.bf16.msra.mxu0 %v525
        %544 = vmatprep.subr.bf16.mxu0 0
        %545 = vmatpush1.bf16.msra.mxu0 %v526
        %546 = vmatprep.subr.bf16.mxu0 0
        %547 = vmatpush1.bf16.msra.mxu0 %v527
        %548 = vmatprep.subr.bf16.mxu0 0
        %549 = vmatpush1.bf16.msra.mxu0 %v528
        %550 = vmatprep.subr.bf16.mxu0 0
        %551 = vmatpush1.bf16.msra.mxu0 %v529
        %552 = vmatprep.subr.bf16.mxu0 0
        %553 = vmatpush1.bf16.msra.mxu0 %v530
        %554 = vmatprep.subr.bf16.mxu0 0
        %555 = vmatpush1.bf16.msra.mxu0 %v531
        %556 = vmatprep.subr.bf16.mxu0 0
        %557 = vmatpush1.bf16.msra.mxu0 0
        %558 = vmatprep.subr.bf16.mxu0 0
        %559 = vmatpush1.bf16.msra.mxu0 0
        %560 = vmatprep.subr.bf16.mxu0 0
        %561 = vmatpush1.bf16.msra.mxu0 0
        %562 = vmatprep.subr.bf16.mxu0 0
        %563 = vmatpush1.bf16.msra.mxu0 0
        %564 = vmatprep.subr.bf16.mxu0 0
        %565 = vmatpush1.bf16.msra.mxu0 0
        %566 = vmatprep.subr.bf16.mxu0 0
        %567 = vmatpush1.bf16.msra.mxu0 0
        %568 = vmatprep.subr.bf16.mxu0 0
        %569 = vmatpush1.bf16.msra.mxu0 0
        %570 = vmatprep.subr.bf16.mxu0 0
        %571 = vmatpush1.bf16.msra.mxu0 0
        %572 = vmatprep.mubr.bf16.mxu0 0
        %573 = vmatmul.mubr.bf16.gmra.mrb[0].mxu0 %v454
        %v574 = vpop.f32.mrb[0].mxu0
        %v575 = vadd.f32 0.0, %v574
        %v576 = vpop.f32.mrb[0].mxu0
        %v577 = vpop.f32.mrb[0].mxu0
        %v578 = vadd.f32 0.0, %v577
        %v579 = vpop.f32.mrb[0].mxu0
        %580 = vmatprep.mubr.bf16.mxu0 0
        %581 = vmatmul.mubr.bf16.gmra.mrb[0].mxu0 %v462
        %v582 = vpop.f32.mrb[0].mxu0
        %v583 = vadd.f32 0.0, %v582
        %v584 = vpop.f32.mrb[0].mxu0
        %v585 = vpop.f32.mrb[0].mxu0
        %v586 = vadd.f32 0.0, %v585
        %v587 = vpop.f32.mrb[0].mxu0
        %588 = vmatprep.mubr.bf16.mxu0 0
        %589 = vmatmul.mubr.bf16.gmra.mrb[0].mxu0 %v470
        %v590 = vpop.f32.mrb[0].mxu0
        %v591 = vadd.f32 0.0, %v590
        %v592 = vpop.f32.mrb[0].mxu0
        %v593 = vpop.f32.mrb[0].mxu0
        %v594 = vadd.f32 0.0, %v593
        %v595 = vpop.f32.mrb[0].mxu0
        %596 = vmatprep.mubr.bf16.mxu0 0
        %597 = vmatmul.mubr.bf16.gmra.mrb[0].mxu0 %v478
        %v598 = vpop.f32.mrb[0].mxu0
        %v599 = vadd.f32 0.0, %v598
        %v600 = vpop.f32.mrb[0].mxu0
        %v601 = vpop.f32.mrb[0].mxu0
        %v602 = vadd.f32 0.0, %v601
        %v603 = vpop.f32.mrb[0].mxu0
        %604 = vmatprep.mubr.bf16.mxu0 0
        %605 = vmatmul.mubr.bf16.gmra.mrb[0].mxu0 %v486
        %v606 = vpop.f32.mrb[0].mxu0
        %v607 = vadd.f32 0.0, %v606
        %v608 = vpop.f32.mrb[0].mxu0
        %v609 = vpop.f32.mrb[0].mxu0
        %v610 = vadd.f32 0.0, %v609
        %v611 = vpop.f32.mrb[0].mxu0
        %612 = vdwg.mxu0
        %v634 = vunpack.c.l.b16 %v380
        %v635 = vunpack.c.l.b16 %v381
        %v636 = vunpack.c.l.b16 %v382
        %v637 = vunpack.c.l.b16 %v383
        %v638 = vunpack.c.l.b16 %v384
        %v639 = vunpack.c.l.b16 %v385
        %v640 = vunpack.c.l.b16 %v386
        %v641 = vunpack.c.l.b16 %v387
        %v642 = vunpack.c.l.b16 %v388
        %v643 = vunpack.c.l.b16 %v389
        %v644 = vunpack.c.l.b16 %v390
        %v645 = vunpack.c.l.b16 %v391
        %v646 = vunpack.c.l.b16 %v392
        %v647 = vunpack.c.l.b16 %v393
        %v648 = vunpack.c.l.b16 %v394
        %v649 = vunpack.c.l.b16 %v395
        %v650 = vpack.c.b16 %v635, %v634
        %v651 = vpack.c.b16 %v637, %v636
        %v652 = vpack.c.b16 %v639, %v638
        %v653 = vpack.c.b16 %v641, %v640
        %v654 = vpack.c.b16 %v643, %v642
        %v655 = vpack.c.b16 %v645, %v644
        %v656 = vpack.c.b16 %v647, %v646
        %v657 = vpack.c.b16 %v649, %v648
        %666 = vmatprep.subr.bf16.mxu0 0
        %667 = vmatpush1.bf16.msra.mxu0 %v650
        %668 = vmatprep.subr.bf16.mxu0 0
        %669 = vmatpush1.bf16.msra.mxu0 %v651
        %670 = vmatprep.subr.bf16.mxu0 0
        %671 = vmatpush1.bf16.msra.mxu0 %v652
        %672 = vmatprep.subr.bf16.mxu0 0
        %673 = vmatpush1.bf16.msra.mxu0 %v653
        %674 = vmatprep.subr.bf16.mxu0 0
        %675 = vmatpush1.bf16.msra.mxu0 %v654
        %676 = vmatprep.subr.bf16.mxu0 0
        %677 = vmatpush1.bf16.msra.mxu0 %v655
        %678 = vmatprep.subr.bf16.mxu0 0
        %679 = vmatpush1.bf16.msra.mxu0 %v656
        %680 = vmatprep.subr.bf16.mxu0 0
        %681 = vmatpush1.bf16.msra.mxu0 %v657
        %682 = vmatprep.subr.bf16.mxu0 0
        %683 = vmatpush1.bf16.msra.mxu0 0
        %684 = vmatprep.subr.bf16.mxu0 0
        %685 = vmatpush1.bf16.msra.mxu0 0
        %686 = vmatprep.subr.bf16.mxu0 0
        %687 = vmatpush1.bf16.msra.mxu0 0
        %688 = vmatprep.subr.bf16.mxu0 0
        %689 = vmatpush1.bf16.msra.mxu0 0
        %690 = vmatprep.subr.bf16.mxu0 0
        %691 = vmatpush1.bf16.msra.mxu0 0
        %692 = vmatprep.subr.bf16.mxu0 0
        %693 = vmatpush1.bf16.msra.mxu0 0
        %694 = vmatprep.subr.bf16.mxu0 0
        %695 = vmatpush1.bf16.msra.mxu0 0
        %696 = vmatprep.subr.bf16.mxu0 0
        %697 = vmatpush1.bf16.msra.mxu0 0
        %698 = vmatprep.mubr.bf16.mxu0 0
        %699 = vmatmul.mubr.bf16.gmra.mrb[0].mxu0 %v436
        %v700 = vpop.f32.mrb[0].mxu0
        %v701 = vadd.f32 %v575, %v700
        %v702 = vpop.f32.mrb[0].mxu0
        %v703 = vpop.f32.mrb[0].mxu0
        %v704 = vadd.f32 %v578, %v703
        %v705 = vpop.f32.mrb[0].mxu0
        %706 = vmatprep.mubr.bf16.mxu0 0
        %707 = vmatmul.mubr.bf16.gmra.mrb[0].mxu0 %v437
        %v708 = vpop.f32.mrb[0].mxu0
        %v709 = vadd.f32 %v583, %v708
        %v710 = vpop.f32.mrb[0].mxu0
        %v711 = vpop.f32.mrb[0].mxu0
        %v712 = vadd.f32 %v586, %v711
        %v713 = vpop.f32.mrb[0].mxu0
        %714 = vmatprep.mubr.bf16.mxu0 0
        %715 = vmatmul.mubr.bf16.gmra.mrb[0].mxu0 %v438
        %v716 = vpop.f32.mrb[0].mxu0
        %v717 = vadd.f32 %v591, %v716
        %v718 = vpop.f32.mrb[0].mxu0
        %v719 = vpop.f32.mrb[0].mxu0
        %v720 = vadd.f32 %v594, %v719
        %v721 = vpop.f32.mrb[0].mxu0
        %722 = vmatprep.mubr.bf16.mxu0 0
        %723 = vmatmul.mubr.bf16.gmra.mrb[0].mxu0 %v439
        %v724 = vpop.f32.mrb[0].mxu0
        %v725 = vadd.f32 %v599, %v724
        %v726 = vpop.f32.mrb[0].mxu0
        %v727 = vpop.f32.mrb[0].mxu0
        %v728 = vadd.f32 %v602, %v727
        %v729 = vpop.f32.mrb[0].mxu0
        %730 = vmatprep.mubr.bf16.mxu0 0
        %731 = vmatmul.mubr.bf16.gmra.mrb[0].mxu0 %v440
        %v732 = vpop.f32.mrb[0].mxu0
        %v733 = vadd.f32 %v607, %v732
        %v734 = vpop.f32.mrb[0].mxu0
        %v735 = vpop.f32.mrb[0].mxu0
        %v736 = vadd.f32 %v610, %v735
        %v737 = vpop.f32.mrb[0].mxu0
        %738 = vdwg.mxu0
        %v739 = vld [vmem:[%s308] sm:$0xe]
        %s740 = scalar_lea.vmem [#allocation8], 128
        %v741 = vld [vmem:[%s740] sm:$0xf]
        %v742 = vld [vmem:[%s740 + $0x4] sm:$0xf]
        %v743 = vld [vmem:[%s740 + $0x8] sm:$0xf]
        %v744 = vld [vmem:[%s740 + $0xc] sm:$0xf]
        %v745 = vld [vmem:[%s740 + $0x10] sm:$0xf]
        %v746 = vld [vmem:[%s740 + $0x14] sm:$0xf]
        %v747 = vld [vmem:[%s740 + $0x18] sm:$0xf]
        %v748 = vld [vmem:[%s740 + $0x1c] sm:$0xf]
        %v749 = vld [vmem:[%s740 + $0x20] sm:$0xf]
        %v750 = vld [vmem:[%s740 + $0x24] sm:$0xf]
        %v751 = vld [vmem:[%s740 + $0x28] sm:$0xf]
        %v752 = vld [vmem:[%s740 + $0x2c] sm:$0xf]
        %v753 = vld [vmem:[%s740 + $0x30] sm:$0xf]
        %v754 = vld [vmem:[%s740 + $0x34] sm:$0xf]
        %v755 = vld [vmem:[%s740 + $0x38] sm:$0xf]
        %v756 = vld [vmem:[%s740 + $0x3c] sm:$0xf]
        %v758 = vunpack.c.l.b16 %v739
        %v759 = vpack.c.b16 %v426, %v758
        %vm760 = vcmask 1046528
        %v761 = vrot.slane %v759, 1
        %v762 = vrot.slane %v437, 1
        %v763 = vsel %vm760, %v761, %v762
        %v764 = vrot.slane %v438, 1
        %v765 = vsel %vm760, %v762, %v764
        %v766 = vrot.slane %v439, 1
        %v767 = vsel %vm760, %v764, %v766
        %v768 = vrot.slane %v440, 1
        %v769 = vsel %vm760, %v766, %v768
        %v770 = vrot.slane %v441, 1
        %v771 = vsel %vm760, %v768, %v770
        %v793 = vunpack.c.l.b16 %v741
        %v794 = vunpack.c.l.b16 %v742
        %v795 = vunpack.c.l.b16 %v743
        %v796 = vunpack.c.l.b16 %v744
        %v797 = vunpack.c.l.b16 %v745
        %v798 = vunpack.c.l.b16 %v746
        %v799 = vunpack.c.l.b16 %v747
        %v800 = vunpack.c.l.b16 %v748
        %v801 = vunpack.c.l.b16 %v749
        %v802 = vunpack.c.l.b16 %v750
        %v803 = vunpack.c.l.b16 %v751
        %v804 = vunpack.c.l.b16 %v752
        %v805 = vunpack.c.l.b16 %v753
        %v806 = vunpack.c.l.b16 %v754
        %v807 = vunpack.c.l.b16 %v755
        %v808 = vunpack.c.l.b16 %v756
        %v809 = vpack.c.b16 %v794, %v793
        %v810 = vpack.c.b16 %v796, %v795
        %v811 = vpack.c.b16 %v798, %v797
        %v812 = vpack.c.b16 %v800, %v799
        %v813 = vpack.c.b16 %v802, %v801
        %v814 = vpack.c.b16 %v804, %v803
        %v815 = vpack.c.b16 %v806, %v805
        %v816 = vpack.c.b16 %v808, %v807
        %825 = vmatprep.subr.bf16.mxu0 0
        %826 = vmatpush1.bf16.msra.mxu0 %v809
        %827 = vmatprep.subr.bf16.mxu0 0
        %828 = vmatpush1.bf16.msra.mxu0 %v810
        %829 = vmatprep.subr.bf16.mxu0 0
        %830 = vmatpush1.bf16.msra.mxu0 %v811
        %831 = vmatprep.subr.bf16.mxu0 0
        %832 = vmatpush1.bf16.msra.mxu0 %v812
        %833 = vmatprep.subr.bf16.mxu0 0
        %834 = vmatpush1.bf16.msra.mxu0 %v813
        %835 = vmatprep.subr.bf16.mxu0 0
        %836 = vmatpush1.bf16.msra.mxu0 %v814
        %837 = vmatprep.subr.bf16.mxu0 0
        %838 = vmatpush1.bf16.msra.mxu0 %v815
        %839 = vmatprep.subr.bf16.mxu0 0
        %840 = vmatpush1.bf16.msra.mxu0 %v816
        %841 = vmatprep.subr.bf16.mxu0 0
        %842 = vmatpush1.bf16.msra.mxu0 0
        %843 = vmatprep.subr.bf16.mxu0 0
        %844 = vmatpush1.bf16.msra.mxu0 0
        %845 = vmatprep.subr.bf16.mxu0 0
        %846 = vmatpush1.bf16.msra.mxu0 0
        %847 = vmatprep.subr.bf16.mxu0 0
        %848 = vmatpush1.bf16.msra.mxu0 0
        %849 = vmatprep.subr.bf16.mxu0 0
        %850 = vmatpush1.bf16.msra.mxu0 0
        %851 = vmatprep.subr.bf16.mxu0 0
        %852 = vmatpush1.bf16.msra.mxu0 0
        %853 = vmatprep.subr.bf16.mxu0 0
        %854 = vmatpush1.bf16.msra.mxu0 0
        %855 = vmatprep.subr.bf16.mxu0 0
        %856 = vmatpush1.bf16.msra.mxu0 0
        %857 = vmatprep.mubr.bf16.mxu0 0
        %858 = vmatmul.mubr.bf16.gmra.mrb[0].mxu0 %v763
        %v859 = vpop.f32.mrb[0].mxu0
        %v860 = vadd.f32 0.0, %v859
        %v861 = vpop.f32.mrb[0].mxu0
        %v862 = vpop.f32.mrb[0].mxu0
        %v863 = vadd.f32 0.0, %v862
        %v864 = vpop.f32.mrb[0].mxu0
        %865 = vmatprep.mubr.bf16.mxu0 0
        %866 = vmatmul.mubr.bf16.gmra.mrb[0].mxu0 %v765
        %v867 = vpop.f32.mrb[0].mxu0
        %v868 = vadd.f32 0.0, %v867
        %v869 = vpop.f32.mrb[0].mxu0
        %v870 = vpop.f32.mrb[0].mxu0
        %v871 = vadd.f32 0.0, %v870
        %v872 = vpop.f32.mrb[0].mxu0
        %873 = vmatprep.mubr.bf16.mxu0 0
        %874 = vmatmul.mubr.bf16.gmra.mrb[0].mxu0 %v767
        %v875 = vpop.f32.mrb[0].mxu0
        %v876 = vadd.f32 0.0, %v875
        %v877 = vpop.f32.mrb[0].mxu0
        %v878 = vpop.f32.mrb[0].mxu0
        %v879 = vadd.f32 0.0, %v878
        %v880 = vpop.f32.mrb[0].mxu0
        %881 = vmatprep.mubr.bf16.mxu0 0
        %882 = vmatmul.mubr.bf16.gmra.mrb[0].mxu0 %v769
        %v883 = vpop.f32.mrb[0].mxu0
        %v884 = vadd.f32 0.0, %v883
        %v885 = vpop.f32.mrb[0].mxu0
        %v886 = vpop.f32.mrb[0].mxu0
        %v887 = vadd.f32 0.0, %v886
        %v888 = vpop.f32.mrb[0].mxu0
        %889 = vmatprep.mubr.bf16.mxu0 0
        %890 = vmatmul.mubr.bf16.gmra.mrb[0].mxu0 %v771
        %v891 = vpop.f32.mrb[0].mxu0
        %v892 = vadd.f32 0.0, %v891
        %v893 = vpop.f32.mrb[0].mxu0
        %v894 = vpop.f32.mrb[0].mxu0
        %v895 = vadd.f32 0.0, %v894
        %v896 = vpop.f32.mrb[0].mxu0
        %897 = vdwg.mxu0
        %v898 = vadd.f32 %v701, %v860
        %v899 = vadd.f32 %v704, %v863
        %v900 = vadd.f32 %v709, %v868
        %v901 = vadd.f32 %v712, %v871
        %v902 = vadd.f32 %v717, %v876
        %v903 = vadd.f32 %v720, %v879
        %v904 = vadd.f32 %v725, %v884
        %v905 = vadd.f32 %v728, %v887
        %v906 = vadd.f32 %v733, %v892
        %v907 = vadd.f32 %v736, %v895
        %v908 = vld [vmem:[%s308 + $0x4] sm:$0xe]
        %v909 = vld [vmem:[%s308 + $0x8] sm:$0xf]
        %v910 = vld [vmem:[%s308 + $0xc] sm:$0xf]
        %v911 = vld [vmem:[%s308 + $0x10] sm:$0xf]
        %v912 = vld [vmem:[%s308 + $0x14] sm:$0xf]
        %v913 = vld [vmem:[%s308 + $0x18] sm:$0xf]
        %v914 = vld [vmem:[%s308 + $0x1c] sm:$0xf]
        %v915 = vld [vmem:[%s308 + $0x20] sm:$0xf]
        %v916 = vld [vmem:[%s308 + $0x24] sm:$0xf]
        %v917 = vld [vmem:[%s308 + $0x28] sm:$0xf]
        %v918 = vld [vmem:[%s308 + $0x2c] sm:$0x1]
        %s919 = scalar_lea.vmem [#allocation8], 192
        %v920 = vld [vmem:[%s919] sm:$0xf]
        %v921 = vld [vmem:[%s919 + $0x4] sm:$0xf]
        %v922 = vld [vmem:[%s919 + $0x8] sm:$0xf]
        %v923 = vld [vmem:[%s919 + $0xc] sm:$0xf]
        %v924 = vld [vmem:[%s919 + $0x10] sm:$0xf]
        %v925 = vld [vmem:[%s919 + $0x14] sm:$0xf]
        %v926 = vld [vmem:[%s919 + $0x18] sm:$0xf]
        %v927 = vld [vmem:[%s919 + $0x1c] sm:$0xf]
        %v928 = vld [vmem:[%s919 + $0x20] sm:$0xf]
        %v929 = vld [vmem:[%s919 + $0x24] sm:$0xf]
        %v930 = vld [vmem:[%s919 + $0x28] sm:$0xf]
        %v931 = vld [vmem:[%s919 + $0x2c] sm:$0xf]
        %v932 = vld [vmem:[%s919 + $0x30] sm:$0xf]
        %v933 = vld [vmem:[%s919 + $0x34] sm:$0xf]
        %v934 = vld [vmem:[%s919 + $0x38] sm:$0xf]
        %v935 = vld [vmem:[%s919 + $0x3c] sm:$0xf]
        %v947 = vunpack.c.l.b16 %v908
        %v948 = vunpack.c.l.b16 %v909
        %v949 = vunpack.c.l.b16 %v910
        %v950 = vunpack.c.l.b16 %v911
        %v951 = vunpack.c.l.b16 %v912
        %v952 = vunpack.c.l.b16 %v913
        %v953 = vunpack.c.l.b16 %v914
        %v954 = vunpack.c.l.b16 %v915
        %v955 = vunpack.c.l.b16 %v916
        %v956 = vunpack.c.l.b16 %v917
        %v957 = vunpack.c.l.b16 %v918
        %v958 = vpack.c.b16 %v948, %v947
        %v959 = vpack.c.b16 %v950, %v949
        %v960 = vpack.c.b16 %v952, %v951
        %v961 = vpack.c.b16 %v954, %v953
        %v962 = vpack.c.b16 %v956, %v955
        %v963 = vpack.c.b16 %v957, %v957
        %v964 = vrot.slane %v958, 1
        %v965 = vrot.slane %v959, 1
        %v966 = vsel %vm760, %v964, %v965
        %v967 = vrot.slane %v960, 1
        %v968 = vsel %vm760, %v965, %v967
        %v969 = vrot.slane %v961, 1
        %v970 = vsel %vm760, %v967, %v969
        %v971 = vrot.slane %v962, 1
        %v972 = vsel %vm760, %v969, %v971
        %v973 = vrot.slane %v963, 1
        %v974 = vsel %vm760, %v971, %v973
        %v996 = vunpack.c.l.b16 %v920
        %v997 = vunpack.c.l.b16 %v921
        %v998 = vunpack.c.l.b16 %v922
        %v999 = vunpack.c.l.b16 %v923
        %v1000 = vunpack.c.l.b16 %v924
        %v1001 = vunpack.c.l.b16 %v925
        %v1002 = vunpack.c.l.b16 %v926
        %v1003 = vunpack.c.l.b16 %v927
        %v1004 = vunpack.c.l.b16 %v928
        %v1005 = vunpack.c.l.b16 %v929
        %v1006 = vunpack.c.l.b16 %v930
        %v1007 = vunpack.c.l.b16 %v931
        %v1008 = vunpack.c.l.b16 %v932
        %v1009 = vunpack.c.l.b16 %v933
        %v1010 = vunpack.c.l.b16 %v934
        %v1011 = vunpack.c.l.b16 %v935
        %v1012 = vpack.c.b16 %v997, %v996
        %v1013 = vpack.c.b16 %v999, %v998
        %v1014 = vpack.c.b16 %v1001, %v1000
        %v1015 = vpack.c.b16 %v1003, %v1002
        %v1016 = vpack.c.b16 %v1005, %v1004
        %v1017 = vpack.c.b16 %v1007, %v1006
        %v1018 = vpack.c.b16 %v1009, %v1008
        %v1019 = vpack.c.b16 %v1011, %v1010
        %1028 = vmatprep.subr.bf16.mxu0 0
        %1029 = vmatpush1.bf16.msra.mxu0 %v1012
        %1030 = vmatprep.subr.bf16.mxu0 0
        %1031 = vmatpush1.bf16.msra.mxu0 %v1013
        %1032 = vmatprep.subr.bf16.mxu0 0
        %1033 = vmatpush1.bf16.msra.mxu0 %v1014
        %1034 = vmatprep.subr.bf16.mxu0 0
        %1035 = vmatpush1.bf16.msra.mxu0 %v1015
        %1036 = vmatprep.subr.bf16.mxu0 0
        %1037 = vmatpush1.bf16.msra.mxu0 %v1016
        %1038 = vmatprep.subr.bf16.mxu0 0
        %1039 = vmatpush1.bf16.msra.mxu0 %v1017
        %1040 = vmatprep.subr.bf16.mxu0 0
        %1041 = vmatpush1.bf16.msra.mxu0 %v1018
        %1042 = vmatprep.subr.bf16.mxu0 0
        %1043 = vmatpush1.bf16.msra.mxu0 %v1019
        %1044 = vmatprep.subr.bf16.mxu0 0
        %1045 = vmatpush1.bf16.msra.mxu0 0
        %1046 = vmatprep.subr.bf16.mxu0 0
        %1047 = vmatpush1.bf16.msra.mxu0 0
        %1048 = vmatprep.subr.bf16.mxu0 0
        %1049 = vmatpush1.bf16.msra.mxu0 0
        %1050 = vmatprep.subr.bf16.mxu0 0
        %1051 = vmatpush1.bf16.msra.mxu0 0
        %1052 = vmatprep.subr.bf16.mxu0 0
        %1053 = vmatpush1.bf16.msra.mxu0 0
        %1054 = vmatprep.subr.bf16.mxu0 0
        %1055 = vmatpush1.bf16.msra.mxu0 0
        %1056 = vmatprep.subr.bf16.mxu0 0
        %1057 = vmatpush1.bf16.msra.mxu0 0
        %1058 = vmatprep.subr.bf16.mxu0 0
        %1059 = vmatpush1.bf16.msra.mxu0 0
        %1060 = vmatprep.mubr.bf16.mxu0 0
        %1061 = vmatmul.mubr.bf16.gmra.mrb[0].mxu0 %v966
        %v1062 = vpop.f32.mrb[0].mxu0
        %v1063 = vadd.f32 0.0, %v1062
        %v1064 = vpop.f32.mrb[0].mxu0
        %v1065 = vpop.f32.mrb[0].mxu0
        %v1066 = vadd.f32 0.0, %v1065
        %v1067 = vpop.f32.mrb[0].mxu0
        %1068 = vmatprep.mubr.bf16.mxu0 0
        %1069 = vmatmul.mubr.bf16.gmra.mrb[0].mxu0 %v968
        %v1070 = vpop.f32.mrb[0].mxu0
        %v1071 = vadd.f32 0.0, %v1070
        %v1072 = vpop.f32.mrb[0].mxu0
        %v1073 = vpop.f32.mrb[0].mxu0
        %v1074 = vadd.f32 0.0, %v1073
        %v1075 = vpop.f32.mrb[0].mxu0
        %1076 = vmatprep.mubr.bf16.mxu0 0
        %1077 = vmatmul.mubr.bf16.gmra.mrb[0].mxu0 %v970
        %v1078 = vpop.f32.mrb[0].mxu0
        %v1079 = vadd.f32 0.0, %v1078
        %v1080 = vpop.f32.mrb[0].mxu0
        %v1081 = vpop.f32.mrb[0].mxu0
        %v1082 = vadd.f32 0.0, %v1081
        %v1083 = vpop.f32.mrb[0].mxu0
        %1084 = vmatprep.mubr.bf16.mxu0 0
        %1085 = vmatmul.mubr.bf16.gmra.mrb[0].mxu0 %v972
        %v1086 = vpop.f32.mrb[0].mxu0
        %v1087 = vadd.f32 0.0, %v1086
        %v1088 = vpop.f32.mrb[0].mxu0
        %v1089 = vpop.f32.mrb[0].mxu0
        %v1090 = vadd.f32 0.0, %v1089
        %v1091 = vpop.f32.mrb[0].mxu0
        %1092 = vmatprep.mubr.bf16.mxu0 0
        %1093 = vmatmul.mubr.bf16.gmra.mrb[0].mxu0 %v974
        %v1094 = vpop.f32.mrb[0].mxu0
        %v1095 = vadd.f32 0.0, %v1094
        %v1096 = vpop.f32.mrb[0].mxu0
        %v1097 = vpop.f32.mrb[0].mxu0
        %v1098 = vadd.f32 0.0, %v1097
        %v1099 = vpop.f32.mrb[0].mxu0
        %1100 = vdwg.mxu0
        %v1101 = vadd.f32 %v898, %v1063
        %v1102 = vadd.f32 %v899, %v1066
        %v1103 = vadd.f32 %v900, %v1071
        %v1104 = vadd.f32 %v901, %v1074
        %v1105 = vadd.f32 %v902, %v1079
        %v1106 = vadd.f32 %v903, %v1082
        %v1107 = vadd.f32 %v904, %v1087
        %v1108 = vadd.f32 %v905, %v1090
        %v1109 = vadd.f32 %v906, %v1095
        %v1110 = vadd.f32 %v907, %v1098
        %v1111 = vld [vmem:[%s308 + $0x2c] sm:$0x3]
        %s1112 = scalar_lea.vmem [#allocation8], 256
        %v1113 = vld [vmem:[%s1112] sm:$0xf]
        %v1114 = vld [vmem:[%s1112 + $0x4] sm:$0xf]
        %v1115 = vld [vmem:[%s1112 + $0x8] sm:$0xf]
        %v1116 = vld [vmem:[%s1112 + $0xc] sm:$0xf]
        %v1117 = vld [vmem:[%s1112 + $0x10] sm:$0xf]
        %v1118 = vld [vmem:[%s1112 + $0x14] sm:$0xf]
        %v1119 = vld [vmem:[%s1112 + $0x18] sm:$0xf]
        %v1120 = vld [vmem:[%s1112 + $0x1c] sm:$0xf]
        %v1121 = vld [vmem:[%s1112 + $0x20] sm:$0xf]
        %v1122 = vld [vmem:[%s1112 + $0x24] sm:$0xf]
        %v1123 = vld [vmem:[%s1112 + $0x28] sm:$0xf]
        %v1124 = vld [vmem:[%s1112 + $0x2c] sm:$0xf]
        %v1125 = vld [vmem:[%s1112 + $0x30] sm:$0xf]
        %v1126 = vld [vmem:[%s1112 + $0x34] sm:$0xf]
        %v1127 = vld [vmem:[%s1112 + $0x38] sm:$0xf]
        %v1128 = vld [vmem:[%s1112 + $0x3c] sm:$0xf]
        %v1130 = vunpack.c.l.b16 %v1111
        %v1131 = vpack.c.b16 %v1130, %v1130
        %vm1132 = vsmask.f32 6400
        %v1134 = vshrl.u32 %v958, 16
        %v1136 = vrot.slane %v1134, 1
        %v1137 = vshll.u32 %v958, 16
        %v1139 = vrot.slane %v1137, 2
        %v1140 = vor.u32 %v1136, %v1139
        %v1142 = vshrl.u32 %v959, 16
        %v1144 = vrot.slane %v1142, 1
        %v1145 = vshll.u32 %v959, 16
        %v1147 = vrot.slane %v1145, 2
        %v1148 = vor.u32 %v1144, %v1147
        %v1149 = vsel %vm1132, %v1140, %v1148
        %v1151 = vshrl.u32 %v960, 16
        %v1153 = vrot.slane %v1151, 1
        %v1154 = vshll.u32 %v960, 16
        %v1156 = vrot.slane %v1154, 2
        %v1157 = vor.u32 %v1153, %v1156
        %v1158 = vsel %vm1132, %v1148, %v1157
        %v1160 = vshrl.u32 %v961, 16
        %v1162 = vrot.slane %v1160, 1
        %v1163 = vshll.u32 %v961, 16
        %v1165 = vrot.slane %v1163, 2
        %v1166 = vor.u32 %v1162, %v1165
        %v1167 = vsel %vm1132, %v1157, %v1166
        %v1169 = vshrl.u32 %v962, 16
        %v1171 = vrot.slane %v1169, 1
        %v1172 = vshll.u32 %v962, 16
        %v1174 = vrot.slane %v1172, 2
        %v1175 = vor.u32 %v1171, %v1174
        %v1176 = vsel %vm1132, %v1166, %v1175
        %v1178 = vshrl.u32 %v1131, 16
        %v1180 = vrot.slane %v1178, 1
        %v1181 = vshll.u32 %v1131, 16
        %v1183 = vrot.slane %v1181, 2
        %v1184 = vor.u32 %v1180, %v1183
        %v1185 = vsel %vm1132, %v1175, %v1184
        %v1207 = vunpack.c.l.b16 %v1113
        %v1208 = vunpack.c.l.b16 %v1114
        %v1209 = vunpack.c.l.b16 %v1115
        %v1210 = vunpack.c.l.b16 %v1116
        %v1211 = vunpack.c.l.b16 %v1117
        %v1212 = vunpack.c.l.b16 %v1118
        %v1213 = vunpack.c.l.b16 %v1119
        %v1214 = vunpack.c.l.b16 %v1120
        %v1215 = vunpack.c.l.b16 %v1121
        %v1216 = vunpack.c.l.b16 %v1122
        %v1217 = vunpack.c.l.b16 %v1123
        %v1218 = vunpack.c.l.b16 %v1124
        %v1219 = vunpack.c.l.b16 %v1125
        %v1220 = vunpack.c.l.b16 %v1126
        %v1221 = vunpack.c.l.b16 %v1127
        %v1222 = vunpack.c.l.b16 %v1128
        %v1223 = vpack.c.b16 %v1208, %v1207
        %v1224 = vpack.c.b16 %v1210, %v1209
        %v1225 = vpack.c.b16 %v1212, %v1211
        %v1226 = vpack.c.b16 %v1214, %v1213
        %v1227 = vpack.c.b16 %v1216, %v1215
        %v1228 = vpack.c.b16 %v1218, %v1217
        %v1229 = vpack.c.b16 %v1220, %v1219
        %v1230 = vpack.c.b16 %v1222, %v1221
        %1239 = vmatprep.subr.bf16.mxu0 0
        %1240 = vmatpush1.bf16.msra.mxu0 %v1223
        %1241 = vmatprep.subr.bf16.mxu0 0
        %1242 = vmatpush1.bf16.msra.mxu0 %v1224
        %1243 = vmatprep.subr.bf16.mxu0 0
        %1244 = vmatpush1.bf16.msra.mxu0 %v1225
        %1245 = vmatprep.subr.bf16.mxu0 0
        %1246 = vmatpush1.bf16.msra.mxu0 %v1226
        %1247 = vmatprep.subr.bf16.mxu0 0
        %1248 = vmatpush1.bf16.msra.mxu0 %v1227
        %1249 = vmatprep.subr.bf16.mxu0 0
        %1250 = vmatpush1.bf16.msra.mxu0 %v1228
        %1251 = vmatprep.subr.bf16.mxu0 0
        %1252 = vmatpush1.bf16.msra.mxu0 %v1229
        %1253 = vmatprep.subr.bf16.mxu0 0
        %1254 = vmatpush1.bf16.msra.mxu0 %v1230
        %1255 = vmatprep.subr.bf16.mxu0 0
        %1256 = vmatpush1.bf16.msra.mxu0 0
        %1257 = vmatprep.subr.bf16.mxu0 0
        %1258 = vmatpush1.bf16.msra.mxu0 0
        %1259 = vmatprep.subr.bf16.mxu0 0
        %1260 = vmatpush1.bf16.msra.mxu0 0
        %1261 = vmatprep.subr.bf16.mxu0 0
        %1262 = vmatpush1.bf16.msra.mxu0 0
        %1263 = vmatprep.subr.bf16.mxu0 0
        %1264 = vmatpush1.bf16.msra.mxu0 0
        %1265 = vmatprep.subr.bf16.mxu0 0
        %1266 = vmatpush1.bf16.msra.mxu0 0
        %1267 = vmatprep.subr.bf16.mxu0 0
        %1268 = vmatpush1.bf16.msra.mxu0 0
        %1269 = vmatprep.subr.bf16.mxu0 0
        %1270 = vmatpush1.bf16.msra.mxu0 0
        %1271 = vmatprep.mubr.bf16.mxu0 0
        %1272 = vmatmul.mubr.bf16.gmra.mrb[0].mxu0 %v1149
        %v1273 = vpop.f32.mrb[0].mxu0
        %v1274 = vadd.f32 0.0, %v1273
        %v1275 = vpop.f32.mrb[0].mxu0
        %v1276 = vpop.f32.mrb[0].mxu0
        %v1277 = vadd.f32 0.0, %v1276
        %v1278 = vpop.f32.mrb[0].mxu0
        %1279 = vmatprep.mubr.bf16.mxu0 0
        %1280 = vmatmul.mubr.bf16.gmra.mrb[0].mxu0 %v1158
        %v1281 = vpop.f32.mrb[0].mxu0
        %v1282 = vadd.f32 0.0, %v1281
        %v1283 = vpop.f32.mrb[0].mxu0
        %v1284 = vpop.f32.mrb[0].mxu0
        %v1285 = vadd.f32 0.0, %v1284
        %v1286 = vpop.f32.mrb[0].mxu0
        %1287 = vmatprep.mubr.bf16.mxu0 0
        %1288 = vmatmul.mubr.bf16.gmra.mrb[0].mxu0 %v1167
        %v1289 = vpop.f32.mrb[0].mxu0
        %v1290 = vadd.f32 0.0, %v1289
        %v1291 = vpop.f32.mrb[0].mxu0
        %v1292 = vpop.f32.mrb[0].mxu0
        %v1293 = vadd.f32 0.0, %v1292
        %v1294 = vpop.f32.mrb[0].mxu0
        %1295 = vmatprep.mubr.bf16.mxu0 0
        %1296 = vmatmul.mubr.bf16.gmra.mrb[0].mxu0 %v1176
        %v1297 = vpop.f32.mrb[0].mxu0
        %v1298 = vadd.f32 0.0, %v1297
        %v1299 = vpop.f32.mrb[0].mxu0
        %v1300 = vpop.f32.mrb[0].mxu0
        %v1301 = vadd.f32 0.0, %v1300
        %v1302 = vpop.f32.mrb[0].mxu0
        %1303 = vmatprep.mubr.bf16.mxu0 0
        %1304 = vmatmul.mubr.bf16.gmra.mrb[0].mxu0 %v1185
        %v1305 = vpop.f32.mrb[0].mxu0
        %v1306 = vadd.f32 0.0, %v1305
        %v1307 = vpop.f32.mrb[0].mxu0
        %v1308 = vpop.f32.mrb[0].mxu0
        %v1309 = vadd.f32 0.0, %v1308
        %v1310 = vpop.f32.mrb[0].mxu0
        %1311 = vdwg.mxu0
        %v1312 = vadd.f32 %v1101, %v1274
        %v1313 = vadd.f32 %v1102, %v1277
        %v1314 = vadd.f32 %v1103, %v1282
        %v1315 = vadd.f32 %v1104, %v1285
        %v1316 = vadd.f32 %v1105, %v1290
        %v1317 = vadd.f32 %v1106, %v1293
        %v1318 = vadd.f32 %v1107, %v1298
        %v1319 = vadd.f32 %v1108, %v1301
        %v1320 = vadd.f32 %v1109, %v1306
        %v1321 = vadd.f32 %v1110, %v1309
        %v1322 = vld [vmem:[%s308 + $0x4] sm:$0xc]
        %s1323 = scalar_lea.vmem [#allocation8], 320
        %v1324 = vld [vmem:[%s1323] sm:$0xf]
        %v1325 = vld [vmem:[%s1323 + $0x4] sm:$0xf]
        %v1326 = vld [vmem:[%s1323 + $0x8] sm:$0xf]
        %v1327 = vld [vmem:[%s1323 + $0xc] sm:$0xf]
        %v1328 = vld [vmem:[%s1323 + $0x10] sm:$0xf]
        %v1329 = vld [vmem:[%s1323 + $0x14] sm:$0xf]
        %v1330 = vld [vmem:[%s1323 + $0x18] sm:$0xf]
        %v1331 = vld [vmem:[%s1323 + $0x1c] sm:$0xf]
        %v1332 = vld [vmem:[%s1323 + $0x20] sm:$0xf]
        %v1333 = vld [vmem:[%s1323 + $0x24] sm:$0xf]
        %v1334 = vld [vmem:[%s1323 + $0x28] sm:$0xf]
        %v1335 = vld [vmem:[%s1323 + $0x2c] sm:$0xf]
        %v1336 = vld [vmem:[%s1323 + $0x30] sm:$0xf]
        %v1337 = vld [vmem:[%s1323 + $0x34] sm:$0xf]
        %v1338 = vld [vmem:[%s1323 + $0x38] sm:$0xf]
        %v1339 = vld [vmem:[%s1323 + $0x3c] sm:$0xf]
        %v1341 = vunpack.c.l.b16 %v1322
        %v1342 = vpack.c.b16 %v948, %v1341
        %vm1343 = vcmask 1045504
        %v1344 = vrot.slane %v1342, 2
        %v1345 = vrot.slane %v959, 2
        %v1346 = vsel %vm1343, %v1344, %v1345
        %v1347 = vrot.slane %v960, 2
        %v1348 = vsel %vm1343, %v1345, %v1347
        %v1349 = vrot.slane %v961, 2
        %v1350 = vsel %vm1343, %v1347, %v1349
        %v1351 = vrot.slane %v962, 2
        %v1352 = vsel %vm1343, %v1349, %v1351
        %v1353 = vrot.slane %v1131, 2
        %v1354 = vsel %vm1343, %v1351, %v1353
        %v1376 = vunpack.c.l.b16 %v1324
        %v1377 = vunpack.c.l.b16 %v1325
        %v1378 = vunpack.c.l.b16 %v1326
        %v1379 = vunpack.c.l.b16 %v1327
        %v1380 = vunpack.c.l.b16 %v1328
        %v1381 = vunpack.c.l.b16 %v1329
        %v1382 = vunpack.c.l.b16 %v1330
        %v1383 = vunpack.c.l.b16 %v1331
        %v1384 = vunpack.c.l.b16 %v1332
        %v1385 = vunpack.c.l.b16 %v1333
        %v1386 = vunpack.c.l.b16 %v1334
        %v1387 = vunpack.c.l.b16 %v1335
        %v1388 = vunpack.c.l.b16 %v1336
        %v1389 = vunpack.c.l.b16 %v1337
        %v1390 = vunpack.c.l.b16 %v1338
        %v1391 = vunpack.c.l.b16 %v1339
        %v1392 = vpack.c.b16 %v1377, %v1376
        %v1393 = vpack.c.b16 %v1379, %v1378
        %v1394 = vpack.c.b16 %v1381, %v1380
        %v1395 = vpack.c.b16 %v1383, %v1382
        %v1396 = vpack.c.b16 %v1385, %v1384
        %v1397 = vpack.c.b16 %v1387, %v1386
        %v1398 = vpack.c.b16 %v1389, %v1388
        %v1399 = vpack.c.b16 %v1391, %v1390
        %1408 = vmatprep.subr.bf16.mxu0 0
        %1409 = vmatpush1.bf16.msra.mxu0 %v1392
        %1410 = vmatprep.subr.bf16.mxu0 0
        %1411 = vmatpush1.bf16.msra.mxu0 %v1393
        %1412 = vmatprep.subr.bf16.mxu0 0
        %1413 = vmatpush1.bf16.msra.mxu0 %v1394
        %1414 = vmatprep.subr.bf16.mxu0 0
        %1415 = vmatpush1.bf16.msra.mxu0 %v1395
        %1416 = vmatprep.subr.bf16.mxu0 0
        %1417 = vmatpush1.bf16.msra.mxu0 %v1396
        %1418 = vmatprep.subr.bf16.mxu0 0
        %1419 = vmatpush1.bf16.msra.mxu0 %v1397
        %1420 = vmatprep.subr.bf16.mxu0 0
        %1421 = vmatpush1.bf16.msra.mxu0 %v1398
        %1422 = vmatprep.subr.bf16.mxu0 0
        %1423 = vmatpush1.bf16.msra.mxu0 %v1399
        %1424 = vmatprep.subr.bf16.mxu0 0
        %1425 = vmatpush1.bf16.msra.mxu0 0
        %1426 = vmatprep.subr.bf16.mxu0 0
        %1427 = vmatpush1.bf16.msra.mxu0 0
        %1428 = vmatprep.subr.bf16.mxu0 0
        %1429 = vmatpush1.bf16.msra.mxu0 0
        %1430 = vmatprep.subr.bf16.mxu0 0
        %1431 = vmatpush1.bf16.msra.mxu0 0
        %1432 = vmatprep.subr.bf16.mxu0 0
        %1433 = vmatpush1.bf16.msra.mxu0 0
        %1434 = vmatprep.subr.bf16.mxu0 0
        %1435 = vmatpush1.bf16.msra.mxu0 0
        %1436 = vmatprep.subr.bf16.mxu0 0
        %1437 = vmatpush1.bf16.msra.mxu0 0
        %1438 = vmatprep.subr.bf16.mxu0 0
        %1439 = vmatpush1.bf16.msra.mxu0 0
        %1440 = vmatprep.mubr.bf16.mxu0 0
        %1441 = vmatmul.mubr.bf16.gmra.mrb[0].mxu0 %v1346
        %v1442 = vpop.f32.mrb[0].mxu0
        %v1443 = vadd.f32 0.0, %v1442
        %v1444 = vpop.f32.mrb[0].mxu0
        %v1445 = vpop.f32.mrb[0].mxu0
        %v1446 = vadd.f32 0.0, %v1445
        %v1447 = vpop.f32.mrb[0].mxu0
        %1448 = vmatprep.mubr.bf16.mxu0 0
        %1449 = vmatmul.mubr.bf16.gmra.mrb[0].mxu0 %v1348
        %v1450 = vpop.f32.mrb[0].mxu0
        %v1451 = vadd.f32 0.0, %v1450
        %v1452 = vpop.f32.mrb[0].mxu0
        %v1453 = vpop.f32.mrb[0].mxu0
        %v1454 = vadd.f32 0.0, %v1453
        %v1455 = vpop.f32.mrb[0].mxu0
        %1456 = vmatprep.mubr.bf16.mxu0 0
        %1457 = vmatmul.mubr.bf16.gmra.mrb[0].mxu0 %v1350
        %v1458 = vpop.f32.mrb[0].mxu0
        %v1459 = vadd.f32 0.0, %v1458
        %v1460 = vpop.f32.mrb[0].mxu0
        %v1461 = vpop.f32.mrb[0].mxu0
        %v1462 = vadd.f32 0.0, %v1461
        %v1463 = vpop.f32.mrb[0].mxu0
        %1464 = vmatprep.mubr.bf16.mxu0 0
        %1465 = vmatmul.mubr.bf16.gmra.mrb[0].mxu0 %v1352
        %v1466 = vpop.f32.mrb[0].mxu0
        %v1467 = vadd.f32 0.0, %v1466
        %v1468 = vpop.f32.mrb[0].mxu0
        %v1469 = vpop.f32.mrb[0].mxu0
        %v1470 = vadd.f32 0.0, %v1469
        %v1471 = vpop.f32.mrb[0].mxu0
        %1472 = vmatprep.mubr.bf16.mxu0 0
        %1473 = vmatmul.mubr.bf16.gmra.mrb[0].mxu0 %v1354
        %v1474 = vpop.f32.mrb[0].mxu0
        %v1475 = vadd.f32 0.0, %v1474
        %v1476 = vpop.f32.mrb[0].mxu0
        %v1477 = vpop.f32.mrb[0].mxu0
        %v1478 = vadd.f32 0.0, %v1477
        %v1479 = vpop.f32.mrb[0].mxu0
        %1480 = vdwg.mxu0
        %v1481 = vadd.f32 %v1312, %v1443
        %v1482 = vadd.f32 %v1313, %v1446
        %v1483 = vadd.f32 %v1314, %v1451
        %v1484 = vadd.f32 %v1315, %v1454
        %v1485 = vadd.f32 %v1316, %v1459
        %v1486 = vadd.f32 %v1317, %v1462
        %v1487 = vadd.f32 %v1318, %v1467
        %v1488 = vadd.f32 %v1319, %v1470
        %v1489 = vadd.f32 %v1320, %v1475
        %v1490 = vadd.f32 %v1321, %v1478
        %v1491 = vld [vmem:[%s308 + $0x8] sm:$0xc]
        %v1492 = vld [vmem:[%s308 + $0xc] sm:$0xf]
        %v1493 = vld [vmem:[%s308 + $0x10] sm:$0xf]
        %v1494 = vld [vmem:[%s308 + $0x14] sm:$0xf]
        %v1495 = vld [vmem:[%s308 + $0x18] sm:$0xf]
        %v1496 = vld [vmem:[%s308 + $0x1c] sm:$0xf]
        %v1497 = vld [vmem:[%s308 + $0x20] sm:$0xf]
        %v1498 = vld [vmem:[%s308 + $0x24] sm:$0xf]
        %v1499 = vld [vmem:[%s308 + $0x28] sm:$0xf]
        %v1500 = vld [vmem:[%s308 + $0x2c] sm:$0xf]
        %v1501 = vld [vmem:[%s308 + $0x30] sm:$0x3]
        %s1502 = scalar_lea.vmem [#allocation8], 384
        %v1503 = vld [vmem:[%s1502] sm:$0xf]
        %v1504 = vld [vmem:[%s1502 + $0x4] sm:$0xf]
        %v1505 = vld [vmem:[%s1502 + $0x8] sm:$0xf]
        %v1506 = vld [vmem:[%s1502 + $0xc] sm:$0xf]
        %v1507 = vld [vmem:[%s1502 + $0x10] sm:$0xf]
        %v1508 = vld [vmem:[%s1502 + $0x14] sm:$0xf]
        %v1509 = vld [vmem:[%s1502 + $0x18] sm:$0xf]
        %v1510 = vld [vmem:[%s1502 + $0x1c] sm:$0xf]
        %v1511 = vld [vmem:[%s1502 + $0x20] sm:$0xf]
        %v1512 = vld [vmem:[%s1502 + $0x24] sm:$0xf]
        %v1513 = vld [vmem:[%s1502 + $0x28] sm:$0xf]
        %v1514 = vld [vmem:[%s1502 + $0x2c] sm:$0xf]
        %v1515 = vld [vmem:[%s1502 + $0x30] sm:$0xf]
        %v1516 = vld [vmem:[%s1502 + $0x34] sm:$0xf]
        %v1517 = vld [vmem:[%s1502 + $0x38] sm:$0xf]
        %v1518 = vld [vmem:[%s1502 + $0x3c] sm:$0xf]
        %v1530 = vunpack.c.l.b16 %v1491
        %v1531 = vunpack.c.l.b16 %v1492
        %v1532 = vunpack.c.l.b16 %v1493
        %v1533 = vunpack.c.l.b16 %v1494
        %v1534 = vunpack.c.l.b16 %v1495
        %v1535 = vunpack.c.l.b16 %v1496
        %v1536 = vunpack.c.l.b16 %v1497
        %v1537 = vunpack.c.l.b16 %v1498
        %v1538 = vunpack.c.l.b16 %v1499
        %v1539 = vunpack.c.l.b16 %v1500
        %v1540 = vunpack.c.l.b16 %v1501
        %v1541 = vpack.c.b16 %v1531, %v1530
        %v1542 = vpack.c.b16 %v1533, %v1532
        %v1543 = vpack.c.b16 %v1535, %v1534
        %v1544 = vpack.c.b16 %v1537, %v1536
        %v1545 = vpack.c.b16 %v1539, %v1538
        %v1546 = vpack.c.b16 %v1540, %v1540
        %v1547 = vrot.slane %v1541, 2
        %v1548 = vrot.slane %v1542, 2
        %v1549 = vsel %vm1343, %v1547, %v1548
        %v1550 = vrot.slane %v1543, 2
        %v1551 = vsel %vm1343, %v1548, %v1550
        %v1552 = vrot.slane %v1544, 2
        %v1553 = vsel %vm1343, %v1550, %v1552
        %v1554 = vrot.slane %v1545, 2
        %v1555 = vsel %vm1343, %v1552, %v1554
        %v1556 = vrot.slane %v1546, 2
        %v1557 = vsel %vm1343, %v1554, %v1556
        %v1579 = vunpack.c.l.b16 %v1503
        %v1580 = vunpack.c.l.b16 %v1504
        %v1581 = vunpack.c.l.b16 %v1505
        %v1582 = vunpack.c.l.b16 %v1506
        %v1583 = vunpack.c.l.b16 %v1507
        %v1584 = vunpack.c.l.b16 %v1508
        %v1585 = vunpack.c.l.b16 %v1509
        %v1586 = vunpack.c.l.b16 %v1510
        %v1587 = vunpack.c.l.b16 %v1511
        %v1588 = vunpack.c.l.b16 %v1512
        %v1589 = vunpack.c.l.b16 %v1513
        %v1590 = vunpack.c.l.b16 %v1514
        %v1591 = vunpack.c.l.b16 %v1515
        %v1592 = vunpack.c.l.b16 %v1516
        %v1593 = vunpack.c.l.b16 %v1517
        %v1594 = vunpack.c.l.b16 %v1518
        %v1595 = vpack.c.b16 %v1580, %v1579
        %v1596 = vpack.c.b16 %v1582, %v1581
        %v1597 = vpack.c.b16 %v1584, %v1583
        %v1598 = vpack.c.b16 %v1586, %v1585
        %v1599 = vpack.c.b16 %v1588, %v1587
        %v1600 = vpack.c.b16 %v1590, %v1589
        %v1601 = vpack.c.b16 %v1592, %v1591
        %v1602 = vpack.c.b16 %v1594, %v1593
        %1611 = vmatprep.subr.bf16.mxu0 0
        %1612 = vmatpush1.bf16.msra.mxu0 %v1595
        %1613 = vmatprep.subr.bf16.mxu0 0
        %1614 = vmatpush1.bf16.msra.mxu0 %v1596
        %1615 = vmatprep.subr.bf16.mxu0 0
        %1616 = vmatpush1.bf16.msra.mxu0 %v1597
        %1617 = vmatprep.subr.bf16.mxu0 0
        %1618 = vmatpush1.bf16.msra.mxu0 %v1598
        %1619 = vmatprep.subr.bf16.mxu0 0
        %1620 = vmatpush1.bf16.msra.mxu0 %v1599
        %1621 = vmatprep.subr.bf16.mxu0 0
        %1622 = vmatpush1.bf16.msra.mxu0 %v1600
        %1623 = vmatprep.subr.bf16.mxu0 0
        %1624 = vmatpush1.bf16.msra.mxu0 %v1601
        %1625 = vmatprep.subr.bf16.mxu0 0
        %1626 = vmatpush1.bf16.msra.mxu0 %v1602
        %1627 = vmatprep.subr.bf16.mxu0 0
        %1628 = vmatpush1.bf16.msra.mxu0 0
        %1629 = vmatprep.subr.bf16.mxu0 0
        %1630 = vmatpush1.bf16.msra.mxu0 0
        %1631 = vmatprep.subr.bf16.mxu0 0
        %1632 = vmatpush1.bf16.msra.mxu0 0
        %1633 = vmatprep.subr.bf16.mxu0 0
        %1634 = vmatpush1.bf16.msra.mxu0 0
        %1635 = vmatprep.subr.bf16.mxu0 0
        %1636 = vmatpush1.bf16.msra.mxu0 0
        %1637 = vmatprep.subr.bf16.mxu0 0
        %1638 = vmatpush1.bf16.msra.mxu0 0
        %1639 = vmatprep.subr.bf16.mxu0 0
        %1640 = vmatpush1.bf16.msra.mxu0 0
        %1641 = vmatprep.subr.bf16.mxu0 0
        %1642 = vmatpush1.bf16.msra.mxu0 0
        %1643 = vmatprep.mubr.bf16.mxu0 0
        %1644 = vmatmul.mubr.bf16.gmra.mrb[0].mxu0 %v1549
        %v1645 = vpop.f32.mrb[0].mxu0
        %v1646 = vadd.f32 0.0, %v1645
        %v1647 = vpop.f32.mrb[0].mxu0
        %v1648 = vpop.f32.mrb[0].mxu0
        %v1649 = vadd.f32 0.0, %v1648
        %v1650 = vpop.f32.mrb[0].mxu0
        %1651 = vmatprep.mubr.bf16.mxu0 0
        %1652 = vmatmul.mubr.bf16.gmra.mrb[0].mxu0 %v1551
        %v1653 = vpop.f32.mrb[0].mxu0
        %v1654 = vadd.f32 0.0, %v1653
        %v1655 = vpop.f32.mrb[0].mxu0
        %v1656 = vpop.f32.mrb[0].mxu0
        %v1657 = vadd.f32 0.0, %v1656
        %v1658 = vpop.f32.mrb[0].mxu0
        %1659 = vmatprep.mubr.bf16.mxu0 0
        %1660 = vmatmul.mubr.bf16.gmra.mrb[0].mxu0 %v1553
        %v1661 = vpop.f32.mrb[0].mxu0
        %v1662 = vadd.f32 0.0, %v1661
        %v1663 = vpop.f32.mrb[0].mxu0
        %v1664 = vpop.f32.mrb[0].mxu0
        %v1665 = vadd.f32 0.0, %v1664
        %v1666 = vpop.f32.mrb[0].mxu0
        %1667 = vmatprep.mubr.bf16.mxu0 0
        %1668 = vmatmul.mubr.bf16.gmra.mrb[0].mxu0 %v1555
        %v1669 = vpop.f32.mrb[0].mxu0
        %v1670 = vadd.f32 0.0, %v1669
        %v1671 = vpop.f32.mrb[0].mxu0
        %v1672 = vpop.f32.mrb[0].mxu0
        %v1673 = vadd.f32 0.0, %v1672
        %v1674 = vpop.f32.mrb[0].mxu0
        %1675 = vmatprep.mubr.bf16.mxu0 0
        %1676 = vmatmul.mubr.bf16.gmra.mrb[0].mxu0 %v1557
        %v1677 = vpop.f32.mrb[0].mxu0
        %v1678 = vadd.f32 0.0, %v1677
        %v1679 = vpop.f32.mrb[0].mxu0
        %v1680 = vpop.f32.mrb[0].mxu0
        %v1681 = vadd.f32 0.0, %v1680
        %v1682 = vpop.f32.mrb[0].mxu0
        %1683 = vdwg.mxu0
        %v1684 = vadd.f32 %v1481, %v1646
        %v1685 = vadd.f32 %v1482, %v1649
        %v1686 = vadd.f32 %v1483, %v1654
        %v1687 = vadd.f32 %v1484, %v1657
        %v1688 = vadd.f32 %v1485, %v1662
        %v1689 = vadd.f32 %v1486, %v1665
        %v1690 = vadd.f32 %v1487, %v1670
        %v1691 = vadd.f32 %v1488, %v1673
        %v1692 = vadd.f32 %v1489, %v1678
        %v1693 = vadd.f32 %v1490, %v1681
        %v1694 = vld [vmem:[%s308 + $0x30] sm:$0x7]
        %s1695 = scalar_lea.vmem [#allocation8], 448
        %v1696 = vld [vmem:[%s1695] sm:$0xf]
        %v1697 = vld [vmem:[%s1695 + $0x4] sm:$0xf]
        %v1698 = vld [vmem:[%s1695 + $0x8] sm:$0xf]
        %v1699 = vld [vmem:[%s1695 + $0xc] sm:$0xf]
        %v1700 = vld [vmem:[%s1695 + $0x10] sm:$0xf]
        %v1701 = vld [vmem:[%s1695 + $0x14] sm:$0xf]
        %v1702 = vld [vmem:[%s1695 + $0x18] sm:$0xf]
        %v1703 = vld [vmem:[%s1695 + $0x1c] sm:$0xf]
        %v1704 = vld [vmem:[%s1695 + $0x20] sm:$0xf]
        %v1705 = vld [vmem:[%s1695 + $0x24] sm:$0xf]
        %v1706 = vld [vmem:[%s1695 + $0x28] sm:$0xf]
        %v1707 = vld [vmem:[%s1695 + $0x2c] sm:$0xf]
        %v1708 = vld [vmem:[%s1695 + $0x30] sm:$0xf]
        %v1709 = vld [vmem:[%s1695 + $0x34] sm:$0xf]
        %v1710 = vld [vmem:[%s1695 + $0x38] sm:$0xf]
        %v1711 = vld [vmem:[%s1695 + $0x3c] sm:$0xf]
        %v1713 = vunpack.c.l.b16 %v1694
        %v1714 = vpack.c.b16 %v1713, %v1713
        %vm1715 = vsmask.f32 5376
        %v1717 = vshrl.u32 %v1541, 16
        %v1719 = vrot.slane %v1717, 2
        %v1720 = vshll.u32 %v1541, 16
        %v1722 = vrot.slane %v1720, 3
        %v1723 = vor.u32 %v1719, %v1722
        %v1725 = vshrl.u32 %v1542, 16
        %v1727 = vrot.slane %v1725, 2
        %v1728 = vshll.u32 %v1542, 16
        %v1730 = vrot.slane %v1728, 3
        %v1731 = vor.u32 %v1727, %v1730
        %v1732 = vsel %vm1715, %v1723, %v1731
        %v1734 = vshrl.u32 %v1543, 16
        %v1736 = vrot.slane %v1734, 2
        %v1737 = vshll.u32 %v1543, 16
        %v1739 = vrot.slane %v1737, 3
        %v1740 = vor.u32 %v1736, %v1739
        %v1741 = vsel %vm1715, %v1731, %v1740
        %v1743 = vshrl.u32 %v1544, 16
        %v1745 = vrot.slane %v1743, 2
        %v1746 = vshll.u32 %v1544, 16
        %v1748 = vrot.slane %v1746, 3
        %v1749 = vor.u32 %v1745, %v1748
        %v1750 = vsel %vm1715, %v1740, %v1749
        %v1752 = vshrl.u32 %v1545, 16
        %v1754 = vrot.slane %v1752, 2
        %v1755 = vshll.u32 %v1545, 16
        %v1757 = vrot.slane %v1755, 3
        %v1758 = vor.u32 %v1754, %v1757
        %v1759 = vsel %vm1715, %v1749, %v1758
        %v1761 = vshrl.u32 %v1714, 16
        %v1763 = vrot.slane %v1761, 2
        %v1764 = vshll.u32 %v1714, 16
        %v1766 = vrot.slane %v1764, 3
        %v1767 = vor.u32 %v1763, %v1766
        %v1768 = vsel %vm1715, %v1758, %v1767
        %v1790 = vunpack.c.l.b16 %v1696
        %v1791 = vunpack.c.l.b16 %v1697
        %v1792 = vunpack.c.l.b16 %v1698
        %v1793 = vunpack.c.l.b16 %v1699
        %v1794 = vunpack.c.l.b16 %v1700
        %v1795 = vunpack.c.l.b16 %v1701
        %v1796 = vunpack.c.l.b16 %v1702
        %v1797 = vunpack.c.l.b16 %v1703
        %v1798 = vunpack.c.l.b16 %v1704
        %v1799 = vunpack.c.l.b16 %v1705
        %v1800 = vunpack.c.l.b16 %v1706
        %v1801 = vunpack.c.l.b16 %v1707
        %v1802 = vunpack.c.l.b16 %v1708
        %v1803 = vunpack.c.l.b16 %v1709
        %v1804 = vunpack.c.l.b16 %v1710
        %v1805 = vunpack.c.l.b16 %v1711
        %v1806 = vpack.c.b16 %v1791, %v1790
        %v1807 = vpack.c.b16 %v1793, %v1792
        %v1808 = vpack.c.b16 %v1795, %v1794
        %v1809 = vpack.c.b16 %v1797, %v1796
        %v1810 = vpack.c.b16 %v1799, %v1798
        %v1811 = vpack.c.b16 %v1801, %v1800
        %v1812 = vpack.c.b16 %v1803, %v1802
        %v1813 = vpack.c.b16 %v1805, %v1804
        %1822 = vmatprep.subr.bf16.mxu0 0
        %1823 = vmatpush1.bf16.msra.mxu0 %v1806
        %1824 = vmatprep.subr.bf16.mxu0 0
        %1825 = vmatpush1.bf16.msra.mxu0 %v1807
        %1826 = vmatprep.subr.bf16.mxu0 0
        %1827 = vmatpush1.bf16.msra.mxu0 %v1808
        %1828 = vmatprep.subr.bf16.mxu0 0
        %1829 = vmatpush1.bf16.msra.mxu0 %v1809
        %1830 = vmatprep.subr.bf16.mxu0 0
        %1831 = vmatpush1.bf16.msra.mxu0 %v1810
        %1832 = vmatprep.subr.bf16.mxu0 0
        %1833 = vmatpush1.bf16.msra.mxu0 %v1811
        %1834 = vmatprep.subr.bf16.mxu0 0
        %1835 = vmatpush1.bf16.msra.mxu0 %v1812
        %1836 = vmatprep.subr.bf16.mxu0 0
        %1837 = vmatpush1.bf16.msra.mxu0 %v1813
        %1838 = vmatprep.subr.bf16.mxu0 0
        %1839 = vmatpush1.bf16.msra.mxu0 0
        %1840 = vmatprep.subr.bf16.mxu0 0
        %1841 = vmatpush1.bf16.msra.mxu0 0
        %1842 = vmatprep.subr.bf16.mxu0 0
        %1843 = vmatpush1.bf16.msra.mxu0 0
        %1844 = vmatprep.subr.bf16.mxu0 0
        %1845 = vmatpush1.bf16.msra.mxu0 0
        %1846 = vmatprep.subr.bf16.mxu0 0
        %1847 = vmatpush1.bf16.msra.mxu0 0
        %1848 = vmatprep.subr.bf16.mxu0 0
        %1849 = vmatpush1.bf16.msra.mxu0 0
        %1850 = vmatprep.subr.bf16.mxu0 0
        %1851 = vmatpush1.bf16.msra.mxu0 0
        %1852 = vmatprep.subr.bf16.mxu0 0
        %1853 = vmatpush1.bf16.msra.mxu0 0
        %1854 = vmatprep.mubr.bf16.mxu0 0
        %1855 = vmatmul.mubr.bf16.gmra.mrb[0].mxu0 %v1732
        %v1856 = vpop.f32.mrb[0].mxu0
        %v1857 = vadd.f32 0.0, %v1856
        %v1858 = vpop.f32.mrb[0].mxu0
        %v1859 = vpop.f32.mrb[0].mxu0
        %v1860 = vadd.f32 0.0, %v1859
        %v1861 = vpop.f32.mrb[0].mxu0
        %1862 = vmatprep.mubr.bf16.mxu0 0
        %1863 = vmatmul.mubr.bf16.gmra.mrb[0].mxu0 %v1741
        %v1864 = vpop.f32.mrb[0].mxu0
        %v1865 = vadd.f32 0.0, %v1864
        %v1866 = vpop.f32.mrb[0].mxu0
        %v1867 = vpop.f32.mrb[0].mxu0
        %v1868 = vadd.f32 0.0, %v1867
        %v1869 = vpop.f32.mrb[0].mxu0
        %1870 = vmatprep.mubr.bf16.mxu0 0
        %1871 = vmatmul.mubr.bf16.gmra.mrb[0].mxu0 %v1750
        %v1872 = vpop.f32.mrb[0].mxu0
        %v1873 = vadd.f32 0.0, %v1872
        %v1874 = vpop.f32.mrb[0].mxu0
        %v1875 = vpop.f32.mrb[0].mxu0
        %v1876 = vadd.f32 0.0, %v1875
        %v1877 = vpop.f32.mrb[0].mxu0
        %1878 = vmatprep.mubr.bf16.mxu0 0
        %1879 = vmatmul.mubr.bf16.gmra.mrb[0].mxu0 %v1759
        %v1880 = vpop.f32.mrb[0].mxu0
        %v1881 = vadd.f32 0.0, %v1880
        %v1882 = vpop.f32.mrb[0].mxu0
        %v1883 = vpop.f32.mrb[0].mxu0
        %v1884 = vadd.f32 0.0, %v1883
        %v1885 = vpop.f32.mrb[0].mxu0
        %1886 = vmatprep.mubr.bf16.mxu0 0
        %1887 = vmatmul.mubr.bf16.gmra.mrb[0].mxu0 %v1768
        %v1888 = vpop.f32.mrb[0].mxu0
        %v1889 = vadd.f32 0.0, %v1888
        %v1890 = vpop.f32.mrb[0].mxu0
        %v1891 = vpop.f32.mrb[0].mxu0
        %v1892 = vadd.f32 0.0, %v1891
        %v1893 = vpop.f32.mrb[0].mxu0
        %1894 = vdwg.mxu0
        %v1895 = vadd.f32 %v1684, %v1857
        %v1896 = vadd.f32 %v1685, %v1860
        %v1897 = vadd.f32 %v1686, %v1865
        %v1898 = vadd.f32 %v1687, %v1868
        %v1899 = vadd.f32 %v1688, %v1873
        %v1900 = vadd.f32 %v1689, %v1876
        %v1901 = vadd.f32 %v1690, %v1881
        %v1902 = vadd.f32 %v1691, %v1884
        %v1903 = vadd.f32 %v1692, %v1889
        %v1904 = vadd.f32 %v1693, %v1892
        %v1905 = vld [vmem:[%s308 + $0x8] sm:$0x8]
        %s1906 = scalar_lea.vmem [#allocation8], 512
        %v1907 = vld [vmem:[%s1906] sm:$0xf]
        %v1908 = vld [vmem:[%s1906 + $0x4] sm:$0xf]
        %v1909 = vld [vmem:[%s1906 + $0x8] sm:$0xf]
        %v1910 = vld [vmem:[%s1906 + $0xc] sm:$0xf]
        %v1911 = vld [vmem:[%s1906 + $0x10] sm:$0xf]
        %v1912 = vld [vmem:[%s1906 + $0x14] sm:$0xf]
        %v1913 = vld [vmem:[%s1906 + $0x18] sm:$0xf]
        %v1914 = vld [vmem:[%s1906 + $0x1c] sm:$0xf]
        %v1915 = vld [vmem:[%s1906 + $0x20] sm:$0xf]
        %v1916 = vld [vmem:[%s1906 + $0x24] sm:$0xf]
        %v1917 = vld [vmem:[%s1906 + $0x28] sm:$0xf]
        %v1918 = vld [vmem:[%s1906 + $0x2c] sm:$0xf]
        %v1919 = vld [vmem:[%s1906 + $0x30] sm:$0xf]
        %v1920 = vld [vmem:[%s1906 + $0x34] sm:$0xf]
        %v1921 = vld [vmem:[%s1906 + $0x38] sm:$0xf]
        %v1922 = vld [vmem:[%s1906 + $0x3c] sm:$0xf]
        %v1924 = vunpack.c.l.b16 %v1905
        %v1925 = vpack.c.b16 %v1531, %v1924
        %vm1926 = vcmask 1044480
        %v1927 = vrot.slane %v1925, 3
        %v1928 = vrot.slane %v1542, 3
        %v1929 = vsel %vm1926, %v1927, %v1928
        %v1930 = vrot.slane %v1543, 3
        %v1931 = vsel %vm1926, %v1928, %v1930
        %v1932 = vrot.slane %v1544, 3
        %v1933 = vsel %vm1926, %v1930, %v1932
        %v1934 = vrot.slane %v1545, 3
        %v1935 = vsel %vm1926, %v1932, %v1934
        %v1936 = vrot.slane %v1714, 3
        %v1937 = vsel %vm1926, %v1934, %v1936
        %v1959 = vunpack.c.l.b16 %v1907
        %v1960 = vunpack.c.l.b16 %v1908
        %v1961 = vunpack.c.l.b16 %v1909
        %v1962 = vunpack.c.l.b16 %v1910
        %v1963 = vunpack.c.l.b16 %v1911
        %v1964 = vunpack.c.l.b16 %v1912
        %v1965 = vunpack.c.l.b16 %v1913
        %v1966 = vunpack.c.l.b16 %v1914
        %v1967 = vunpack.c.l.b16 %v1915
        %v1968 = vunpack.c.l.b16 %v1916
        %v1969 = vunpack.c.l.b16 %v1917
        %v1970 = vunpack.c.l.b16 %v1918
        %v1971 = vunpack.c.l.b16 %v1919
        %v1972 = vunpack.c.l.b16 %v1920
        %v1973 = vunpack.c.l.b16 %v1921
        %v1974 = vunpack.c.l.b16 %v1922
        %v1975 = vpack.c.b16 %v1960, %v1959
        %v1976 = vpack.c.b16 %v1962, %v1961
        %v1977 = vpack.c.b16 %v1964, %v1963
        %v1978 = vpack.c.b16 %v1966, %v1965
        %v1979 = vpack.c.b16 %v1968, %v1967
        %v1980 = vpack.c.b16 %v1970, %v1969
        %v1981 = vpack.c.b16 %v1972, %v1971
        %v1982 = vpack.c.b16 %v1974, %v1973
        %1991 = vmatprep.subr.bf16.mxu0 0
        %1992 = vmatpush1.bf16.msra.mxu0 %v1975
        %1993 = vmatprep.subr.bf16.mxu0 0
        %1994 = vmatpush1.bf16.msra.mxu0 %v1976
        %1995 = vmatprep.subr.bf16.mxu0 0
        %1996 = vmatpush1.bf16.msra.mxu0 %v1977
        %1997 = vmatprep.subr.bf16.mxu0 0
        %1998 = vmatpush1.bf16.msra.mxu0 %v1978
        %1999 = vmatprep.subr.bf16.mxu0 0
        %2000 = vmatpush1.bf16.msra.mxu0 %v1979
        %2001 = vmatprep.subr.bf16.mxu0 0
        %2002 = vmatpush1.bf16.msra.mxu0 %v1980
        %2003 = vmatprep.subr.bf16.mxu0 0
        %2004 = vmatpush1.bf16.msra.mxu0 %v1981
        %2005 = vmatprep.subr.bf16.mxu0 0
        %2006 = vmatpush1.bf16.msra.mxu0 %v1982
        %2007 = vmatprep.subr.bf16.mxu0 0
        %2008 = vmatpush1.bf16.msra.mxu0 0
        %2009 = vmatprep.subr.bf16.mxu0 0
        %2010 = vmatpush1.bf16.msra.mxu0 0
        %2011 = vmatprep.subr.bf16.mxu0 0
        %2012 = vmatpush1.bf16.msra.mxu0 0
        %2013 = vmatprep.subr.bf16.mxu0 0
        %2014 = vmatpush1.bf16.msra.mxu0 0
        %2015 = vmatprep.subr.bf16.mxu0 0
        %2016 = vmatpush1.bf16.msra.mxu0 0
        %2017 = vmatprep.subr.bf16.mxu0 0
        %2018 = vmatpush1.bf16.msra.mxu0 0
        %2019 = vmatprep.subr.bf16.mxu0 0
        %2020 = vmatpush1.bf16.msra.mxu0 0
        %2021 = vmatprep.subr.bf16.mxu0 0
        %2022 = vmatpush1.bf16.msra.mxu0 0
        %2023 = vmatprep.mubr.bf16.mxu0 0
        %2024 = vmatmul.mubr.bf16.gmra.mrb[0].mxu0 %v1929
        %v2025 = vpop.f32.mrb[0].mxu0
        %v2026 = vadd.f32 0.0, %v2025
        %v2027 = vpop.f32.mrb[0].mxu0
        %v2028 = vpop.f32.mrb[0].mxu0
        %v2029 = vadd.f32 0.0, %v2028
        %v2030 = vpop.f32.mrb[0].mxu0
        %2031 = vmatprep.mubr.bf16.mxu0 0
        %2032 = vmatmul.mubr.bf16.gmra.mrb[0].mxu0 %v1931
        %v2033 = vpop.f32.mrb[0].mxu0
        %v2034 = vadd.f32 0.0, %v2033
        %v2035 = vpop.f32.mrb[0].mxu0
        %v2036 = vpop.f32.mrb[0].mxu0
        %v2037 = vadd.f32 0.0, %v2036
        %v2038 = vpop.f32.mrb[0].mxu0
        %2039 = vmatprep.mubr.bf16.mxu0 0
        %2040 = vmatmul.mubr.bf16.gmra.mrb[0].mxu0 %v1933
        %v2041 = vpop.f32.mrb[0].mxu0
        %v2042 = vadd.f32 0.0, %v2041
        %v2043 = vpop.f32.mrb[0].mxu0
        %v2044 = vpop.f32.mrb[0].mxu0
        %v2045 = vadd.f32 0.0, %v2044
        %v2046 = vpop.f32.mrb[0].mxu0
        %2047 = vmatprep.mubr.bf16.mxu0 0
        %2048 = vmatmul.mubr.bf16.gmra.mrb[0].mxu0 %v1935
        %v2049 = vpop.f32.mrb[0].mxu0
        %v2050 = vadd.f32 0.0, %v2049
        %v2051 = vpop.f32.mrb[0].mxu0
        %v2052 = vpop.f32.mrb[0].mxu0
        %v2053 = vadd.f32 0.0, %v2052
        %v2054 = vpop.f32.mrb[0].mxu0
        %2055 = vmatprep.mubr.bf16.mxu0 0
        %2056 = vmatmul.mubr.bf16.gmra.mrb[0].mxu0 %v1937
        %v2057 = vpop.f32.mrb[0].mxu0
        %v2058 = vadd.f32 0.0, %v2057
        %v2059 = vpop.f32.mrb[0].mxu0
        %v2060 = vpop.f32.mrb[0].mxu0
        %v2061 = vadd.f32 0.0, %v2060
        %v2062 = vpop.f32.mrb[0].mxu0
        %2063 = vdwg.mxu0
        %v2064 = vadd.f32 %v1895, %v2026
        %v2065 = vadd.f32 %v1896, %v2029
        %v2066 = vadd.f32 %v1897, %v2034
        %v2067 = vadd.f32 %v1898, %v2037
        %v2068 = vadd.f32 %v1899, %v2042
        %v2069 = vadd.f32 %v1900, %v2045
        %v2070 = vadd.f32 %v1901, %v2050
        %v2071 = vadd.f32 %v1902, %v2053
        %v2072 = vadd.f32 %v1903, %v2058
        %v2073 = vadd.f32 %v1904, %v2061
        %v2074 = vld [vmem:[%s317] sm:$0xf]
        %v2075 = vld [vmem:[%s317 + $0x4] sm:$0xf]
        %v2076 = vld [vmem:[%s317 + $0x8] sm:$0xf]
        %v2077 = vld [vmem:[%s317 + $0xc] sm:$0xf]
        %v2078 = vld [vmem:[%s317 + $0x10] sm:$0xf]
        %v2079 = vld [vmem:[%s317 + $0x14] sm:$0xf]
        %v2080 = vld [vmem:[%s317 + $0x18] sm:$0xf]
        %v2081 = vld [vmem:[%s317 + $0x1c] sm:$0xf]
        %v2082 = vld [vmem:[%s317 + $0x20] sm:$0xf]
        %v2083 = vld [vmem:[%s317 + $0x24] sm:$0xf]
        %s2084 = scalar_lea.vmem [#allocation8], 576
        %v2085 = vld [vmem:[%s2084] sm:$0xf]
        %v2086 = vld [vmem:[%s2084 + $0x4] sm:$0xf]
        %v2087 = vld [vmem:[%s2084 + $0x8] sm:$0xf]
        %v2088 = vld [vmem:[%s2084 + $0xc] sm:$0xf]
        %v2089 = vld [vmem:[%s2084 + $0x10] sm:$0xf]
        %v2090 = vld [vmem:[%s2084 + $0x14] sm:$0xf]
        %v2091 = vld [vmem:[%s2084 + $0x18] sm:$0xf]
        %v2092 = vld [vmem:[%s2084 + $0x1c] sm:$0xf]
        %v2093 = vld [vmem:[%s2084 + $0x20] sm:$0xf]
        %v2094 = vld [vmem:[%s2084 + $0x24] sm:$0xf]
        %v2095 = vld [vmem:[%s2084 + $0x28] sm:$0xf]
        %v2096 = vld [vmem:[%s2084 + $0x2c] sm:$0xf]
        %v2097 = vld [vmem:[%s2084 + $0x30] sm:$0xf]
        %v2098 = vld [vmem:[%s2084 + $0x34] sm:$0xf]
        %v2099 = vld [vmem:[%s2084 + $0x38] sm:$0xf]
        %v2100 = vld [vmem:[%s2084 + $0x3c] sm:$0xf]
        %v2111 = vunpack.c.l.b16 %v2074
        %v2112 = vunpack.c.l.b16 %v2075
        %v2113 = vunpack.c.l.b16 %v2076
        %v2114 = vunpack.c.l.b16 %v2077
        %v2115 = vunpack.c.l.b16 %v2078
        %v2116 = vunpack.c.l.b16 %v2079
        %v2117 = vunpack.c.l.b16 %v2080
        %v2118 = vunpack.c.l.b16 %v2081
        %v2119 = vunpack.c.l.b16 %v2082
        %v2120 = vunpack.c.l.b16 %v2083
        %v2121 = vpack.c.b16 %v2112, %v2111
        %v2122 = vpack.c.b16 %v2114, %v2113
        %v2123 = vpack.c.b16 %v2116, %v2115
        %v2124 = vpack.c.b16 %v2118, %v2117
        %v2125 = vpack.c.b16 %v2120, %v2119
        %v2147 = vunpack.c.l.b16 %v2085
        %v2148 = vunpack.c.l.b16 %v2086
        %v2149 = vunpack.c.l.b16 %v2087
        %v2150 = vunpack.c.l.b16 %v2088
        %v2151 = vunpack.c.l.b16 %v2089
        %v2152 = vunpack.c.l.b16 %v2090
        %v2153 = vunpack.c.l.b16 %v2091
        %v2154 = vunpack.c.l.b16 %v2092
        %v2155 = vunpack.c.l.b16 %v2093
        %v2156 = vunpack.c.l.b16 %v2094
        %v2157 = vunpack.c.l.b16 %v2095
        %v2158 = vunpack.c.l.b16 %v2096
        %v2159 = vunpack.c.l.b16 %v2097
        %v2160 = vunpack.c.l.b16 %v2098
        %v2161 = vunpack.c.l.b16 %v2099
        %v2162 = vunpack.c.l.b16 %v2100
        %v2163 = vpack.c.b16 %v2148, %v2147
        %v2164 = vpack.c.b16 %v2150, %v2149
        %v2165 = vpack.c.b16 %v2152, %v2151
        %v2166 = vpack.c.b16 %v2154, %v2153
        %v2167 = vpack.c.b16 %v2156, %v2155
        %v2168 = vpack.c.b16 %v2158, %v2157
        %v2169 = vpack.c.b16 %v2160, %v2159
        %v2170 = vpack.c.b16 %v2162, %v2161
        %2179 = vmatprep.subr.bf16.mxu0 0
        %2180 = vmatpush1.bf16.msra.mxu0 %v2163
        %2181 = vmatprep.subr.bf16.mxu0 0
        %2182 = vmatpush1.bf16.msra.mxu0 %v2164
        %2183 = vmatprep.subr.bf16.mxu0 0
        %2184 = vmatpush1.bf16.msra.mxu0 %v2165
        %2185 = vmatprep.subr.bf16.mxu0 0
        %2186 = vmatpush1.bf16.msra.mxu0 %v2166
        %2187 = vmatprep.subr.bf16.mxu0 0
        %2188 = vmatpush1.bf16.msra.mxu0 %v2167
        %2189 = vmatprep.subr.bf16.mxu0 0
        %2190 = vmatpush1.bf16.msra.mxu0 %v2168
        %2191 = vmatprep.subr.bf16.mxu0 0
        %2192 = vmatpush1.bf16.msra.mxu0 %v2169
        %2193 = vmatprep.subr.bf16.mxu0 0
        %2194 = vmatpush1.bf16.msra.mxu0 %v2170
        %2195 = vmatprep.subr.bf16.mxu0 0
        %2196 = vmatpush1.bf16.msra.mxu0 0
        %2197 = vmatprep.subr.bf16.mxu0 0
        %2198 = vmatpush1.bf16.msra.mxu0 0
        %2199 = vmatprep.subr.bf16.mxu0 0
        %2200 = vmatpush1.bf16.msra.mxu0 0
        %2201 = vmatprep.subr.bf16.mxu0 0
        %2202 = vmatpush1.bf16.msra.mxu0 0
        %2203 = vmatprep.subr.bf16.mxu0 0
        %2204 = vmatpush1.bf16.msra.mxu0 0
        %2205 = vmatprep.subr.bf16.mxu0 0
        %2206 = vmatpush1.bf16.msra.mxu0 0
        %2207 = vmatprep.subr.bf16.mxu0 0
        %2208 = vmatpush1.bf16.msra.mxu0 0
        %2209 = vmatprep.subr.bf16.mxu0 0
        %2210 = vmatpush1.bf16.msra.mxu0 0
        %2211 = vmatprep.mubr.bf16.mxu0 0
        %2212 = vmatmul.mubr.bf16.gmra.mrb[0].mxu0 %v2121
        %v2213 = vpop.f32.mrb[0].mxu0
        %v2214 = vadd.f32 0.0, %v2213
        %v2215 = vpop.f32.mrb[0].mxu0
        %v2216 = vpop.f32.mrb[0].mxu0
        %v2217 = vadd.f32 0.0, %v2216
        %v2218 = vpop.f32.mrb[0].mxu0
        %2219 = vmatprep.mubr.bf16.mxu0 0
        %2220 = vmatmul.mubr.bf16.gmra.mrb[0].mxu0 %v2122
        %v2221 = vpop.f32.mrb[0].mxu0
        %v2222 = vadd.f32 0.0, %v2221
        %v2223 = vpop.f32.mrb[0].mxu0
        %v2224 = vpop.f32.mrb[0].mxu0
        %v2225 = vadd.f32 0.0, %v2224
        %v2226 = vpop.f32.mrb[0].mxu0
        %2227 = vmatprep.mubr.bf16.mxu0 0
        %2228 = vmatmul.mubr.bf16.gmra.mrb[0].mxu0 %v2123
        %v2229 = vpop.f32.mrb[0].mxu0
        %v2230 = vadd.f32 0.0, %v2229
        %v2231 = vpop.f32.mrb[0].mxu0
        %v2232 = vpop.f32.mrb[0].mxu0
        %v2233 = vadd.f32 0.0, %v2232
        %v2234 = vpop.f32.mrb[0].mxu0
        %2235 = vmatprep.mubr.bf16.mxu0 0
        %2236 = vmatmul.mubr.bf16.gmra.mrb[0].mxu0 %v2124
        %v2237 = vpop.f32.mrb[0].mxu0
        %v2238 = vadd.f32 0.0, %v2237
        %v2239 = vpop.f32.mrb[0].mxu0
        %v2240 = vpop.f32.mrb[0].mxu0
        %v2241 = vadd.f32 0.0, %v2240
        %v2242 = vpop.f32.mrb[0].mxu0
        %2243 = vmatprep.mubr.bf16.mxu0 0
        %2244 = vmatmul.mubr.bf16.gmra.mrb[0].mxu0 %v2125
        %v2245 = vpop.f32.mrb[0].mxu0
        %v2246 = vadd.f32 0.0, %v2245
        %v2247 = vpop.f32.mrb[0].mxu0
        %v2248 = vpop.f32.mrb[0].mxu0
        %v2249 = vadd.f32 0.0, %v2248
        %v2250 = vpop.f32.mrb[0].mxu0
        %2251 = vdwg.mxu0
        %v2252 = vadd.f32 %v2064, %v2214
        %v2253 = vadd.f32 %v2065, %v2217
        %v2254 = vadd.f32 %v2066, %v2222
        %v2255 = vadd.f32 %v2067, %v2225
        %v2256 = vadd.f32 %v2068, %v2230
        %v2257 = vadd.f32 %v2069, %v2233
        %v2258 = vadd.f32 %v2070, %v2238
        %v2259 = vadd.f32 %v2071, %v2241
        %v2260 = vadd.f32 %v2072, %v2246
        %v2261 = vadd.f32 %v2073, %v2249
        %v2262 = vld [vmem:[%s317] sm:$0xf]
        %v2263 = vld [vmem:[%s317 + $0x4] sm:$0xf]
        %v2264 = vld [vmem:[%s317 + $0x8] sm:$0xf]
        %v2265 = vld [vmem:[%s317 + $0xc] sm:$0xf]
        %v2266 = vld [vmem:[%s317 + $0x10] sm:$0xf]
        %v2267 = vld [vmem:[%s317 + $0x14] sm:$0xf]
        %v2268 = vld [vmem:[%s317 + $0x18] sm:$0xf]
        %v2269 = vld [vmem:[%s317 + $0x1c] sm:$0xf]
        %v2270 = vld [vmem:[%s317 + $0x20] sm:$0xf]
        %v2271 = vld [vmem:[%s317 + $0x24] sm:$0xf]
        %v2272 = vld [vmem:[%s317 + $0x28] sm:$0x1]
        %s2273 = scalar_lea.vmem [#allocation8], 640
        %v2274 = vld [vmem:[%s2273] sm:$0xf]
        %v2275 = vld [vmem:[%s2273 + $0x4] sm:$0xf]
        %v2276 = vld [vmem:[%s2273 + $0x8] sm:$0xf]
        %v2277 = vld [vmem:[%s2273 + $0xc] sm:$0xf]
        %v2278 = vld [vmem:[%s2273 + $0x10] sm:$0xf]
        %v2279 = vld [vmem:[%s2273 + $0x14] sm:$0xf]
        %v2280 = vld [vmem:[%s2273 + $0x18] sm:$0xf]
        %v2281 = vld [vmem:[%s2273 + $0x1c] sm:$0xf]
        %v2282 = vld [vmem:[%s2273 + $0x20] sm:$0xf]
        %v2283 = vld [vmem:[%s2273 + $0x24] sm:$0xf]
        %v2284 = vld [vmem:[%s2273 + $0x28] sm:$0xf]
        %v2285 = vld [vmem:[%s2273 + $0x2c] sm:$0xf]
        %v2286 = vld [vmem:[%s2273 + $0x30] sm:$0xf]
        %v2287 = vld [vmem:[%s2273 + $0x34] sm:$0xf]
        %v2288 = vld [vmem:[%s2273 + $0x38] sm:$0xf]
        %v2289 = vld [vmem:[%s2273 + $0x3c] sm:$0xf]
        %v2301 = vunpack.c.l.b16 %v2262
        %v2302 = vunpack.c.l.b16 %v2263
        %v2303 = vunpack.c.l.b16 %v2264
        %v2304 = vunpack.c.l.b16 %v2265
        %v2305 = vunpack.c.l.b16 %v2266
        %v2306 = vunpack.c.l.b16 %v2267
        %v2307 = vunpack.c.l.b16 %v2268
        %v2308 = vunpack.c.l.b16 %v2269
        %v2309 = vunpack.c.l.b16 %v2270
        %v2310 = vunpack.c.l.b16 %v2271
        %v2311 = vunpack.c.l.b16 %v2272
        %v2312 = vpack.c.b16 %v2302, %v2301
        %v2313 = vpack.c.b16 %v2304, %v2303
        %v2314 = vpack.c.b16 %v2306, %v2305
        %v2315 = vpack.c.b16 %v2308, %v2307
        %v2316 = vpack.c.b16 %v2310, %v2309
        %v2317 = vpack.c.b16 %v2311, %v2311
        %v2319 = vshrl.u32 %v2312, 16
        %v2321 = vshll.u32 %v2312, 16
        %v2323 = vrot.slane %v2321, 1
        %v2324 = vor.u32 %v2319, %v2323
        %v2326 = vshll.u32 %v2313, 16
        %v2328 = vrot.slane %v2326, 1
        %v2329 = vsel %vm442, %v2324, %v2328
        %v2330 = vshrl.u32 %v2313, 16
        %v2332 = vor.u32 %v2330, %v2328
        %v2334 = vshll.u32 %v2314, 16
        %v2336 = vrot.slane %v2334, 1
        %v2337 = vsel %vm442, %v2332, %v2336
        %v2338 = vshrl.u32 %v2314, 16
        %v2340 = vor.u32 %v2338, %v2336
        %v2342 = vshll.u32 %v2315, 16
        %v2344 = vrot.slane %v2342, 1
        %v2345 = vsel %vm442, %v2340, %v2344
        %v2346 = vshrl.u32 %v2315, 16
        %v2348 = vor.u32 %v2346, %v2344
        %v2350 = vshll.u32 %v2316, 16
        %v2352 = vrot.slane %v2350, 1
        %v2353 = vsel %vm442, %v2348, %v2352
        %v2354 = vshrl.u32 %v2316, 16
        %v2356 = vor.u32 %v2354, %v2352
        %v2358 = vshll.u32 %v2317, 16
        %v2360 = vrot.slane %v2358, 1
        %v2361 = vsel %vm442, %v2356, %v2360
        %v2383 = vunpack.c.l.b16 %v2274
        %v2384 = vunpack.c.l.b16 %v2275
        %v2385 = vunpack.c.l.b16 %v2276
        %v2386 = vunpack.c.l.b16 %v2277
        %v2387 = vunpack.c.l.b16 %v2278
        %v2388 = vunpack.c.l.b16 %v2279
        %v2389 = vunpack.c.l.b16 %v2280
        %v2390 = vunpack.c.l.b16 %v2281
        %v2391 = vunpack.c.l.b16 %v2282
        %v2392 = vunpack.c.l.b16 %v2283
        %v2393 = vunpack.c.l.b16 %v2284
        %v2394 = vunpack.c.l.b16 %v2285
        %v2395 = vunpack.c.l.b16 %v2286
        %v2396 = vunpack.c.l.b16 %v2287
        %v2397 = vunpack.c.l.b16 %v2288
        %v2398 = vunpack.c.l.b16 %v2289
        %v2399 = vpack.c.b16 %v2384, %v2383
        %v2400 = vpack.c.b16 %v2386, %v2385
        %v2401 = vpack.c.b16 %v2388, %v2387
        %v2402 = vpack.c.b16 %v2390, %v2389
        %v2403 = vpack.c.b16 %v2392, %v2391
        %v2404 = vpack.c.b16 %v2394, %v2393
        %v2405 = vpack.c.b16 %v2396, %v2395
        %v2406 = vpack.c.b16 %v2398, %v2397
        %2415 = vmatprep.subr.bf16.mxu0 0
        %2416 = vmatpush1.bf16.msra.mxu0 %v2399
        %2417 = vmatprep.subr.bf16.mxu0 0
        %2418 = vmatpush1.bf16.msra.mxu0 %v2400
        %2419 = vmatprep.subr.bf16.mxu0 0
        %2420 = vmatpush1.bf16.msra.mxu0 %v2401
        %2421 = vmatprep.subr.bf16.mxu0 0
        %2422 = vmatpush1.bf16.msra.mxu0 %v2402
        %2423 = vmatprep.subr.bf16.mxu0 0
        %2424 = vmatpush1.bf16.msra.mxu0 %v2403
        %2425 = vmatprep.subr.bf16.mxu0 0
        %2426 = vmatpush1.bf16.msra.mxu0 %v2404
        %2427 = vmatprep.subr.bf16.mxu0 0
        %2428 = vmatpush1.bf16.msra.mxu0 %v2405
        %2429 = vmatprep.subr.bf16.mxu0 0
        %2430 = vmatpush1.bf16.msra.mxu0 %v2406
        %2431 = vmatprep.subr.bf16.mxu0 0
        %2432 = vmatpush1.bf16.msra.mxu0 0
        %2433 = vmatprep.subr.bf16.mxu0 0
        %2434 = vmatpush1.bf16.msra.mxu0 0
        %2435 = vmatprep.subr.bf16.mxu0 0
        %2436 = vmatpush1.bf16.msra.mxu0 0
        %2437 = vmatprep.subr.bf16.mxu0 0
        %2438 = vmatpush1.bf16.msra.mxu0 0
        %2439 = vmatprep.subr.bf16.mxu0 0
        %2440 = vmatpush1.bf16.msra.mxu0 0
        %2441 = vmatprep.subr.bf16.mxu0 0
        %2442 = vmatpush1.bf16.msra.mxu0 0
        %2443 = vmatprep.subr.bf16.mxu0 0
        %2444 = vmatpush1.bf16.msra.mxu0 0
        %2445 = vmatprep.subr.bf16.mxu0 0
        %2446 = vmatpush1.bf16.msra.mxu0 0
        %2447 = vmatprep.mubr.bf16.mxu0 0
        %2448 = vmatmul.mubr.bf16.gmra.mrb[0].mxu0 %v2329
        %v2449 = vpop.f32.mrb[0].mxu0
        %v2450 = vadd.f32 0.0, %v2449
        %v2451 = vpop.f32.mrb[0].mxu0
        %v2452 = vpop.f32.mrb[0].mxu0
        %v2453 = vadd.f32 0.0, %v2452
        %v2454 = vpop.f32.mrb[0].mxu0
        %2455 = vmatprep.mubr.bf16.mxu0 0
        %2456 = vmatmul.mubr.bf16.gmra.mrb[0].mxu0 %v2337
        %v2457 = vpop.f32.mrb[0].mxu0
        %v2458 = vadd.f32 0.0, %v2457
        %v2459 = vpop.f32.mrb[0].mxu0
        %v2460 = vpop.f32.mrb[0].mxu0
        %v2461 = vadd.f32 0.0, %v2460
        %v2462 = vpop.f32.mrb[0].mxu0
        %2463 = vmatprep.mubr.bf16.mxu0 0
        %2464 = vmatmul.mubr.bf16.gmra.mrb[0].mxu0 %v2345
        %v2465 = vpop.f32.mrb[0].mxu0
        %v2466 = vadd.f32 0.0, %v2465
        %v2467 = vpop.f32.mrb[0].mxu0
        %v2468 = vpop.f32.mrb[0].mxu0
        %v2469 = vadd.f32 0.0, %v2468
        %v2470 = vpop.f32.mrb[0].mxu0
        %2471 = vmatprep.mubr.bf16.mxu0 0
        %2472 = vmatmul.mubr.bf16.gmra.mrb[0].mxu0 %v2353
        %v2473 = vpop.f32.mrb[0].mxu0
        %v2474 = vadd.f32 0.0, %v2473
        %v2475 = vpop.f32.mrb[0].mxu0
        %v2476 = vpop.f32.mrb[0].mxu0
        %v2477 = vadd.f32 0.0, %v2476
        %v2478 = vpop.f32.mrb[0].mxu0
        %2479 = vmatprep.mubr.bf16.mxu0 0
        %2480 = vmatmul.mubr.bf16.gmra.mrb[0].mxu0 %v2361
        %v2481 = vpop.f32.mrb[0].mxu0
        %v2482 = vadd.f32 0.0, %v2481
        %v2483 = vpop.f32.mrb[0].mxu0
        %v2484 = vpop.f32.mrb[0].mxu0
        %v2485 = vadd.f32 0.0, %v2484
        %v2486 = vpop.f32.mrb[0].mxu0
        %2487 = vdwg.mxu0
        %v2488 = vadd.f32 %v2252, %v2450
        %v2489 = vadd.f32 %v2253, %v2453
        %v2490 = vadd.f32 %v2254, %v2458
        %v2491 = vadd.f32 %v2255, %v2461
        %v2492 = vadd.f32 %v2256, %v2466
        %v2493 = vadd.f32 %v2257, %v2469
        %v2494 = vadd.f32 %v2258, %v2474
        %v2495 = vadd.f32 %v2259, %v2477
        %v2496 = vadd.f32 %v2260, %v2482
        %v2497 = vadd.f32 %v2261, %v2485
        %v2498 = vld [vmem:[%s317] sm:$0xe]
        %s2499 = scalar_lea.vmem [#allocation8], 704
        %v2500 = vld [vmem:[%s2499] sm:$0xf]
        %v2501 = vld [vmem:[%s2499 + $0x4] sm:$0xf]
        %v2502 = vld [vmem:[%s2499 + $0x8] sm:$0xf]
        %v2503 = vld [vmem:[%s2499 + $0xc] sm:$0xf]
        %v2504 = vld [vmem:[%s2499 + $0x10] sm:$0xf]
        %v2505 = vld [vmem:[%s2499 + $0x14] sm:$0xf]
        %v2506 = vld [vmem:[%s2499 + $0x18] sm:$0xf]
        %v2507 = vld [vmem:[%s2499 + $0x1c] sm:$0xf]
        %v2508 = vld [vmem:[%s2499 + $0x20] sm:$0xf]
        %v2509 = vld [vmem:[%s2499 + $0x24] sm:$0xf]
        %v2510 = vld [vmem:[%s2499 + $0x28] sm:$0xf]
        %v2511 = vld [vmem:[%s2499 + $0x2c] sm:$0xf]
        %v2512 = vld [vmem:[%s2499 + $0x30] sm:$0xf]
        %v2513 = vld [vmem:[%s2499 + $0x34] sm:$0xf]
        %v2514 = vld [vmem:[%s2499 + $0x38] sm:$0xf]
        %v2515 = vld [vmem:[%s2499 + $0x3c] sm:$0xf]
        %v2517 = vunpack.c.l.b16 %v2498
        %v2518 = vpack.c.b16 %v2302, %v2517
        %v2519 = vrot.slane %v2518, 1
        %v2520 = vrot.slane %v2313, 1
        %v2521 = vsel %vm760, %v2519, %v2520
        %v2522 = vrot.slane %v2314, 1
        %v2523 = vsel %vm760, %v2520, %v2522
        %v2524 = vrot.slane %v2315, 1
        %v2525 = vsel %vm760, %v2522, %v2524
        %v2526 = vrot.slane %v2316, 1
        %v2527 = vsel %vm760, %v2524, %v2526
        %v2528 = vrot.slane %v2317, 1
        %v2529 = vsel %vm760, %v2526, %v2528
        %v2551 = vunpack.c.l.b16 %v2500
        %v2552 = vunpack.c.l.b16 %v2501
        %v2553 = vunpack.c.l.b16 %v2502
        %v2554 = vunpack.c.l.b16 %v2503
        %v2555 = vunpack.c.l.b16 %v2504
        %v2556 = vunpack.c.l.b16 %v2505
        %v2557 = vunpack.c.l.b16 %v2506
        %v2558 = vunpack.c.l.b16 %v2507
        %v2559 = vunpack.c.l.b16 %v2508
        %v2560 = vunpack.c.l.b16 %v2509
        %v2561 = vunpack.c.l.b16 %v2510
        %v2562 = vunpack.c.l.b16 %v2511
        %v2563 = vunpack.c.l.b16 %v2512
        %v2564 = vunpack.c.l.b16 %v2513
        %v2565 = vunpack.c.l.b16 %v2514
        %v2566 = vunpack.c.l.b16 %v2515
        %v2567 = vpack.c.b16 %v2552, %v2551
        %v2568 = vpack.c.b16 %v2554, %v2553
        %v2569 = vpack.c.b16 %v2556, %v2555
        %v2570 = vpack.c.b16 %v2558, %v2557
        %v2571 = vpack.c.b16 %v2560, %v2559
        %v2572 = vpack.c.b16 %v2562, %v2561
        %v2573 = vpack.c.b16 %v2564, %v2563
        %v2574 = vpack.c.b16 %v2566, %v2565
        %2583 = vmatprep.subr.bf16.mxu0 0
        %2584 = vmatpush1.bf16.msra.mxu0 %v2567
        %2585 = vmatprep.subr.bf16.mxu0 0
        %2586 = vmatpush1.bf16.msra.mxu0 %v2568
        %2587 = vmatprep.subr.bf16.mxu0 0
        %2588 = vmatpush1.bf16.msra.mxu0 %v2569
        %2589 = vmatprep.subr.bf16.mxu0 0
        %2590 = vmatpush1.bf16.msra.mxu0 %v2570
        %2591 = vmatprep.subr.bf16.mxu0 0
        %2592 = vmatpush1.bf16.msra.mxu0 %v2571
        %2593 = vmatprep.subr.bf16.mxu0 0
        %2594 = vmatpush1.bf16.msra.mxu0 %v2572
        %2595 = vmatprep.subr.bf16.mxu0 0
        %2596 = vmatpush1.bf16.msra.mxu0 %v2573
        %2597 = vmatprep.subr.bf16.mxu0 0
        %2598 = vmatpush1.bf16.msra.mxu0 %v2574
        %2599 = vmatprep.subr.bf16.mxu0 0
        %2600 = vmatpush1.bf16.msra.mxu0 0
        %2601 = vmatprep.subr.bf16.mxu0 0
        %2602 = vmatpush1.bf16.msra.mxu0 0
        %2603 = vmatprep.subr.bf16.mxu0 0
        %2604 = vmatpush1.bf16.msra.mxu0 0
        %2605 = vmatprep.subr.bf16.mxu0 0
        %2606 = vmatpush1.bf16.msra.mxu0 0
        %2607 = vmatprep.subr.bf16.mxu0 0
        %2608 = vmatpush1.bf16.msra.mxu0 0
        %2609 = vmatprep.subr.bf16.mxu0 0
        %2610 = vmatpush1.bf16.msra.mxu0 0
        %2611 = vmatprep.subr.bf16.mxu0 0
        %2612 = vmatpush1.bf16.msra.mxu0 0
        %2613 = vmatprep.subr.bf16.mxu0 0
        %2614 = vmatpush1.bf16.msra.mxu0 0
        %2615 = vmatprep.mubr.bf16.mxu0 0
        %2616 = vmatmul.mubr.bf16.gmra.mrb[0].mxu0 %v2521
        %v2617 = vpop.f32.mrb[0].mxu0
        %v2618 = vadd.f32 0.0, %v2617
        %v2619 = vpop.f32.mrb[0].mxu0
        %v2620 = vpop.f32.mrb[0].mxu0
        %v2621 = vadd.f32 0.0, %v2620
        %v2622 = vpop.f32.mrb[0].mxu0
        %2623 = vmatprep.mubr.bf16.mxu0 0
        %2624 = vmatmul.mubr.bf16.gmra.mrb[0].mxu0 %v2523
        %v2625 = vpop.f32.mrb[0].mxu0
        %v2626 = vadd.f32 0.0, %v2625
        %v2627 = vpop.f32.mrb[0].mxu0
        %v2628 = vpop.f32.mrb[0].mxu0
        %v2629 = vadd.f32 0.0, %v2628
        %v2630 = vpop.f32.mrb[0].mxu0
        %2631 = vmatprep.mubr.bf16.mxu0 0
        %2632 = vmatmul.mubr.bf16.gmra.mrb[0].mxu0 %v2525
        %v2633 = vpop.f32.mrb[0].mxu0
        %v2634 = vadd.f32 0.0, %v2633
        %v2635 = vpop.f32.mrb[0].mxu0
        %v2636 = vpop.f32.mrb[0].mxu0
        %v2637 = vadd.f32 0.0, %v2636
        %v2638 = vpop.f32.mrb[0].mxu0
        %2639 = vmatprep.mubr.bf16.mxu0 0
        %2640 = vmatmul.mubr.bf16.gmra.mrb[0].mxu0 %v2527
        %v2641 = vpop.f32.mrb[0].mxu0
        %v2642 = vadd.f32 0.0, %v2641
        %v2643 = vpop.f32.mrb[0].mxu0
        %v2644 = vpop.f32.mrb[0].mxu0
        %v2645 = vadd.f32 0.0, %v2644
        %v2646 = vpop.f32.mrb[0].mxu0
        %2647 = vmatprep.mubr.bf16.mxu0 0
        %2648 = vmatmul.mubr.bf16.gmra.mrb[0].mxu0 %v2529
        %v2649 = vpop.f32.mrb[0].mxu0
        %v2650 = vadd.f32 0.0, %v2649
        %v2651 = vpop.f32.mrb[0].mxu0
        %v2652 = vpop.f32.mrb[0].mxu0
        %v2653 = vadd.f32 0.0, %v2652
        %v2654 = vpop.f32.mrb[0].mxu0
        %2655 = vdwg.mxu0
        %v2656 = vadd.f32 %v2488, %v2618
        %v2657 = vadd.f32 %v2489, %v2621
        %v2658 = vadd.f32 %v2490, %v2626
        %v2659 = vadd.f32 %v2491, %v2629
        %v2660 = vadd.f32 %v2492, %v2634
        %v2661 = vadd.f32 %v2493, %v2637
        %v2662 = vadd.f32 %v2494, %v2642
        %v2663 = vadd.f32 %v2495, %v2645
        %v2664 = vadd.f32 %v2496, %v2650
        %v2665 = vadd.f32 %v2497, %v2653
        %v2666 = vld [vmem:[%s317 + $0x4] sm:$0xe]
        %v2667 = vld [vmem:[%s317 + $0x8] sm:$0xf]
        %v2668 = vld [vmem:[%s317 + $0xc] sm:$0xf]
        %v2669 = vld [vmem:[%s317 + $0x10] sm:$0xf]
        %v2670 = vld [vmem:[%s317 + $0x14] sm:$0xf]
        %v2671 = vld [vmem:[%s317 + $0x18] sm:$0xf]
        %v2672 = vld [vmem:[%s317 + $0x1c] sm:$0xf]
        %v2673 = vld [vmem:[%s317 + $0x20] sm:$0xf]
        %v2674 = vld [vmem:[%s317 + $0x24] sm:$0xf]
        %v2675 = vld [vmem:[%s317 + $0x28] sm:$0xf]
        %v2676 = vld [vmem:[%s317 + $0x2c] sm:$0x1]
        %s2677 = scalar_lea.vmem [#allocation8], 768
        %v2678 = vld [vmem:[%s2677] sm:$0xf]
        %v2679 = vld [vmem:[%s2677 + $0x4] sm:$0xf]
        %v2680 = vld [vmem:[%s2677 + $0x8] sm:$0xf]
        %v2681 = vld [vmem:[%s2677 + $0xc] sm:$0xf]
        %v2682 = vld [vmem:[%s2677 + $0x10] sm:$0xf]
        %v2683 = vld [vmem:[%s2677 + $0x14] sm:$0xf]
        %v2684 = vld [vmem:[%s2677 + $0x18] sm:$0xf]
        %v2685 = vld [vmem:[%s2677 + $0x1c] sm:$0xf]
        %v2686 = vld [vmem:[%s2677 + $0x20] sm:$0xf]
        %v2687 = vld [vmem:[%s2677 + $0x24] sm:$0xf]
        %v2688 = vld [vmem:[%s2677 + $0x28] sm:$0xf]
        %v2689 = vld [vmem:[%s2677 + $0x2c] sm:$0xf]
        %v2690 = vld [vmem:[%s2677 + $0x30] sm:$0xf]
        %v2691 = vld [vmem:[%s2677 + $0x34] sm:$0xf]
        %v2692 = vld [vmem:[%s2677 + $0x38] sm:$0xf]
        %v2693 = vld [vmem:[%s2677 + $0x3c] sm:$0xf]
        %v2705 = vunpack.c.l.b16 %v2666
        %v2706 = vunpack.c.l.b16 %v2667
        %v2707 = vunpack.c.l.b16 %v2668
        %v2708 = vunpack.c.l.b16 %v2669
        %v2709 = vunpack.c.l.b16 %v2670
        %v2710 = vunpack.c.l.b16 %v2671
        %v2711 = vunpack.c.l.b16 %v2672
        %v2712 = vunpack.c.l.b16 %v2673
        %v2713 = vunpack.c.l.b16 %v2674
        %v2714 = vunpack.c.l.b16 %v2675
        %v2715 = vunpack.c.l.b16 %v2676
        %v2716 = vpack.c.b16 %v2706, %v2705
        %v2717 = vpack.c.b16 %v2708, %v2707
        %v2718 = vpack.c.b16 %v2710, %v2709
        %v2719 = vpack.c.b16 %v2712, %v2711
        %v2720 = vpack.c.b16 %v2714, %v2713
        %v2721 = vpack.c.b16 %v2715, %v2715
        %v2722 = vrot.slane %v2716, 1
        %v2723 = vrot.slane %v2717, 1
        %v2724 = vsel %vm760, %v2722, %v2723
        %v2725 = vrot.slane %v2718, 1
        %v2726 = vsel %vm760, %v2723, %v2725
        %v2727 = vrot.slane %v2719, 1
        %v2728 = vsel %vm760, %v2725, %v2727
        %v2729 = vrot.slane %v2720, 1
        %v2730 = vsel %vm760, %v2727, %v2729
        %v2731 = vrot.slane %v2721, 1
        %v2732 = vsel %vm760, %v2729, %v2731
        %v2754 = vunpack.c.l.b16 %v2678
        %v2755 = vunpack.c.l.b16 %v2679
        %v2756 = vunpack.c.l.b16 %v2680
        %v2757 = vunpack.c.l.b16 %v2681
        %v2758 = vunpack.c.l.b16 %v2682
        %v2759 = vunpack.c.l.b16 %v2683
        %v2760 = vunpack.c.l.b16 %v2684
        %v2761 = vunpack.c.l.b16 %v2685
        %v2762 = vunpack.c.l.b16 %v2686
        %v2763 = vunpack.c.l.b16 %v2687
        %v2764 = vunpack.c.l.b16 %v2688
        %v2765 = vunpack.c.l.b16 %v2689
        %v2766 = vunpack.c.l.b16 %v2690
        %v2767 = vunpack.c.l.b16 %v2691
        %v2768 = vunpack.c.l.b16 %v2692
        %v2769 = vunpack.c.l.b16 %v2693
        %v2770 = vpack.c.b16 %v2755, %v2754
        %v2771 = vpack.c.b16 %v2757, %v2756
        %v2772 = vpack.c.b16 %v2759, %v2758
        %v2773 = vpack.c.b16 %v2761, %v2760
        %v2774 = vpack.c.b16 %v2763, %v2762
        %v2775 = vpack.c.b16 %v2765, %v2764
        %v2776 = vpack.c.b16 %v2767, %v2766
        %v2777 = vpack.c.b16 %v2769, %v2768
        %2786 = vmatprep.subr.bf16.mxu0 0
        %2787 = vmatpush1.bf16.msra.mxu0 %v2770
        %2788 = vmatprep.subr.bf16.mxu0 0
        %2789 = vmatpush1.bf16.msra.mxu0 %v2771
        %2790 = vmatprep.subr.bf16.mxu0 0
        %2791 = vmatpush1.bf16.msra.mxu0 %v2772
        %2792 = vmatprep.subr.bf16.mxu0 0
        %2793 = vmatpush1.bf16.msra.mxu0 %v2773
        %2794 = vmatprep.subr.bf16.mxu0 0
        %2795 = vmatpush1.bf16.msra.mxu0 %v2774
        %2796 = vmatprep.subr.bf16.mxu0 0
        %2797 = vmatpush1.bf16.msra.mxu0 %v2775
        %2798 = vmatprep.subr.bf16.mxu0 0
        %2799 = vmatpush1.bf16.msra.mxu0 %v2776
        %2800 = vmatprep.subr.bf16.mxu0 0
        %2801 = vmatpush1.bf16.msra.mxu0 %v2777
        %2802 = vmatprep.subr.bf16.mxu0 0
        %2803 = vmatpush1.bf16.msra.mxu0 0
        %2804 = vmatprep.subr.bf16.mxu0 0
        %2805 = vmatpush1.bf16.msra.mxu0 0
        %2806 = vmatprep.subr.bf16.mxu0 0
        %2807 = vmatpush1.bf16.msra.mxu0 0
        %2808 = vmatprep.subr.bf16.mxu0 0
        %2809 = vmatpush1.bf16.msra.mxu0 0
        %2810 = vmatprep.subr.bf16.mxu0 0
        %2811 = vmatpush1.bf16.msra.mxu0 0
        %2812 = vmatprep.subr.bf16.mxu0 0
        %2813 = vmatpush1.bf16.msra.mxu0 0
        %2814 = vmatprep.subr.bf16.mxu0 0
        %2815 = vmatpush1.bf16.msra.mxu0 0
        %2816 = vmatprep.subr.bf16.mxu0 0
        %2817 = vmatpush1.bf16.msra.mxu0 0
        %2818 = vmatprep.mubr.bf16.mxu0 0
        %2819 = vmatmul.mubr.bf16.gmra.mrb[0].mxu0 %v2724
        %v2820 = vpop.f32.mrb[0].mxu0
        %v2821 = vadd.f32 0.0, %v2820
        %v2822 = vpop.f32.mrb[0].mxu0
        %v2823 = vpop.f32.mrb[0].mxu0
        %v2824 = vadd.f32 0.0, %v2823
        %v2825 = vpop.f32.mrb[0].mxu0
        %2826 = vmatprep.mubr.bf16.mxu0 0
        %2827 = vmatmul.mubr.bf16.gmra.mrb[0].mxu0 %v2726
        %v2828 = vpop.f32.mrb[0].mxu0
        %v2829 = vadd.f32 0.0, %v2828
        %v2830 = vpop.f32.mrb[0].mxu0
        %v2831 = vpop.f32.mrb[0].mxu0
        %v2832 = vadd.f32 0.0, %v2831
        %v2833 = vpop.f32.mrb[0].mxu0
        %2834 = vmatprep.mubr.bf16.mxu0 0
        %2835 = vmatmul.mubr.bf16.gmra.mrb[0].mxu0 %v2728
        %v2836 = vpop.f32.mrb[0].mxu0
        %v2837 = vadd.f32 0.0, %v2836
        %v2838 = vpop.f32.mrb[0].mxu0
        %v2839 = vpop.f32.mrb[0].mxu0
        %v2840 = vadd.f32 0.0, %v2839
        %v2841 = vpop.f32.mrb[0].mxu0
        %2842 = vmatprep.mubr.bf16.mxu0 0
        %2843 = vmatmul.mubr.bf16.gmra.mrb[0].mxu0 %v2730
        %v2844 = vpop.f32.mrb[0].mxu0
        %v2845 = vadd.f32 0.0, %v2844
        %v2846 = vpop.f32.mrb[0].mxu0
        %v2847 = vpop.f32.mrb[0].mxu0
        %v2848 = vadd.f32 0.0, %v2847
        %v2849 = vpop.f32.mrb[0].mxu0
        %2850 = vmatprep.mubr.bf16.mxu0 0
        %2851 = vmatmul.mubr.bf16.gmra.mrb[0].mxu0 %v2732
        %v2852 = vpop.f32.mrb[0].mxu0
        %v2853 = vadd.f32 0.0, %v2852
        %v2854 = vpop.f32.mrb[0].mxu0
        %v2855 = vpop.f32.mrb[0].mxu0
        %v2856 = vadd.f32 0.0, %v2855
        %v2857 = vpop.f32.mrb[0].mxu0
        %2858 = vdwg.mxu0
        %v2859 = vadd.f32 %v2656, %v2821
        %v2860 = vadd.f32 %v2657, %v2824
        %v2861 = vadd.f32 %v2658, %v2829
        %v2862 = vadd.f32 %v2659, %v2832
        %v2863 = vadd.f32 %v2660, %v2837
        %v2864 = vadd.f32 %v2661, %v2840
        %v2865 = vadd.f32 %v2662, %v2845
        %v2866 = vadd.f32 %v2663, %v2848
        %v2867 = vadd.f32 %v2664, %v2853
        %v2868 = vadd.f32 %v2665, %v2856
        %v2869 = vld [vmem:[%s317 + $0x2c] sm:$0x3]
        %s2870 = scalar_lea.vmem [#allocation8], 832
        %v2871 = vld [vmem:[%s2870] sm:$0xf]
        %v2872 = vld [vmem:[%s2870 + $0x4] sm:$0xf]
        %v2873 = vld [vmem:[%s2870 + $0x8] sm:$0xf]
        %v2874 = vld [vmem:[%s2870 + $0xc] sm:$0xf]
        %v2875 = vld [vmem:[%s2870 + $0x10] sm:$0xf]
        %v2876 = vld [vmem:[%s2870 + $0x14] sm:$0xf]
        %v2877 = vld [vmem:[%s2870 + $0x18] sm:$0xf]
        %v2878 = vld [vmem:[%s2870 + $0x1c] sm:$0xf]
        %v2879 = vld [vmem:[%s2870 + $0x20] sm:$0xf]
        %v2880 = vld [vmem:[%s2870 + $0x24] sm:$0xf]
        %v2881 = vld [vmem:[%s2870 + $0x28] sm:$0xf]
        %v2882 = vld [vmem:[%s2870 + $0x2c] sm:$0xf]
        %v2883 = vld [vmem:[%s2870 + $0x30] sm:$0xf]
        %v2884 = vld [vmem:[%s2870 + $0x34] sm:$0xf]
        %v2885 = vld [vmem:[%s2870 + $0x38] sm:$0xf]
        %v2886 = vld [vmem:[%s2870 + $0x3c] sm:$0xf]
        %v2888 = vunpack.c.l.b16 %v2869
        %v2889 = vpack.c.b16 %v2888, %v2888
        %v2891 = vshrl.u32 %v2716, 16
        %v2893 = vrot.slane %v2891, 1
        %v2894 = vshll.u32 %v2716, 16
        %v2896 = vrot.slane %v2894, 2
        %v2897 = vor.u32 %v2893, %v2896
        %v2899 = vshrl.u32 %v2717, 16
        %v2901 = vrot.slane %v2899, 1
        %v2902 = vshll.u32 %v2717, 16
        %v2904 = vrot.slane %v2902, 2
        %v2905 = vor.u32 %v2901, %v2904
        %v2906 = vsel %vm1132, %v2897, %v2905
        %v2908 = vshrl.u32 %v2718, 16
        %v2910 = vrot.slane %v2908, 1
        %v2911 = vshll.u32 %v2718, 16
        %v2913 = vrot.slane %v2911, 2
        %v2914 = vor.u32 %v2910, %v2913
        %v2915 = vsel %vm1132, %v2905, %v2914
        %v2917 = vshrl.u32 %v2719, 16
        %v2919 = vrot.slane %v2917, 1
        %v2920 = vshll.u32 %v2719, 16
        %v2922 = vrot.slane %v2920, 2
        %v2923 = vor.u32 %v2919, %v2922
        %v2924 = vsel %vm1132, %v2914, %v2923
        %v2926 = vshrl.u32 %v2720, 16
        %v2928 = vrot.slane %v2926, 1
        %v2929 = vshll.u32 %v2720, 16
        %v2931 = vrot.slane %v2929, 2
        %v2932 = vor.u32 %v2928, %v2931
        %v2933 = vsel %vm1132, %v2923, %v2932
        %v2935 = vshrl.u32 %v2889, 16
        %v2937 = vrot.slane %v2935, 1
        %v2938 = vshll.u32 %v2889, 16
        %v2940 = vrot.slane %v2938, 2
        %v2941 = vor.u32 %v2937, %v2940
        %v2942 = vsel %vm1132, %v2932, %v2941
        %v2964 = vunpack.c.l.b16 %v2871
        %v2965 = vunpack.c.l.b16 %v2872
        %v2966 = vunpack.c.l.b16 %v2873
        %v2967 = vunpack.c.l.b16 %v2874
        %v2968 = vunpack.c.l.b16 %v2875
        %v2969 = vunpack.c.l.b16 %v2876
        %v2970 = vunpack.c.l.b16 %v2877
        %v2971 = vunpack.c.l.b16 %v2878
        %v2972 = vunpack.c.l.b16 %v2879
        %v2973 = vunpack.c.l.b16 %v2880
        %v2974 = vunpack.c.l.b16 %v2881
        %v2975 = vunpack.c.l.b16 %v2882
        %v2976 = vunpack.c.l.b16 %v2883
        %v2977 = vunpack.c.l.b16 %v2884
        %v2978 = vunpack.c.l.b16 %v2885
        %v2979 = vunpack.c.l.b16 %v2886
        %v2980 = vpack.c.b16 %v2965, %v2964
        %v2981 = vpack.c.b16 %v2967, %v2966
        %v2982 = vpack.c.b16 %v2969, %v2968
        %v2983 = vpack.c.b16 %v2971, %v2970
        %v2984 = vpack.c.b16 %v2973, %v2972
        %v2985 = vpack.c.b16 %v2975, %v2974
        %v2986 = vpack.c.b16 %v2977, %v2976
        %v2987 = vpack.c.b16 %v2979, %v2978
        %2996 = vmatprep.subr.bf16.mxu0 0
        %2997 = vmatpush1.bf16.msra.mxu0 %v2980
        %2998 = vmatprep.subr.bf16.mxu0 0
        %2999 = vmatpush1.bf16.msra.mxu0 %v2981
        %3000 = vmatprep.subr.bf16.mxu0 0
        %3001 = vmatpush1.bf16.msra.mxu0 %v2982
        %3002 = vmatprep.subr.bf16.mxu0 0
        %3003 = vmatpush1.bf16.msra.mxu0 %v2983
        %3004 = vmatprep.subr.bf16.mxu0 0
        %3005 = vmatpush1.bf16.msra.mxu0 %v2984
        %3006 = vmatprep.subr.bf16.mxu0 0
        %3007 = vmatpush1.bf16.msra.mxu0 %v2985
        %3008 = vmatprep.subr.bf16.mxu0 0
        %3009 = vmatpush1.bf16.msra.mxu0 %v2986
        %3010 = vmatprep.subr.bf16.mxu0 0
        %3011 = vmatpush1.bf16.msra.mxu0 %v2987
        %3012 = vmatprep.subr.bf16.mxu0 0
        %3013 = vmatpush1.bf16.msra.mxu0 0
        %3014 = vmatprep.subr.bf16.mxu0 0
        %3015 = vmatpush1.bf16.msra.mxu0 0
        %3016 = vmatprep.subr.bf16.mxu0 0
        %3017 = vmatpush1.bf16.msra.mxu0 0
        %3018 = vmatprep.subr.bf16.mxu0 0
        %3019 = vmatpush1.bf16.msra.mxu0 0
        %3020 = vmatprep.subr.bf16.mxu0 0
        %3021 = vmatpush1.bf16.msra.mxu0 0
        %3022 = vmatprep.subr.bf16.mxu0 0
        %3023 = vmatpush1.bf16.msra.mxu0 0
        %3024 = vmatprep.subr.bf16.mxu0 0
        %3025 = vmatpush1.bf16.msra.mxu0 0
        %3026 = vmatprep.subr.bf16.mxu0 0
        %3027 = vmatpush1.bf16.msra.mxu0 0
        %3028 = vmatprep.mubr.bf16.mxu0 0
        %3029 = vmatmul.mubr.bf16.gmra.mrb[0].mxu0 %v2906
        %v3030 = vpop.f32.mrb[0].mxu0
        %v3031 = vadd.f32 0.0, %v3030
        %v3032 = vpop.f32.mrb[0].mxu0
        %v3033 = vpop.f32.mrb[0].mxu0
        %v3034 = vadd.f32 0.0, %v3033
        %v3035 = vpop.f32.mrb[0].mxu0
        %3036 = vmatprep.mubr.bf16.mxu0 0
        %3037 = vmatmul.mubr.bf16.gmra.mrb[0].mxu0 %v2915
        %v3038 = vpop.f32.mrb[0].mxu0
        %v3039 = vadd.f32 0.0, %v3038
        %v3040 = vpop.f32.mrb[0].mxu0
        %v3041 = vpop.f32.mrb[0].mxu0
        %v3042 = vadd.f32 0.0, %v3041
        %v3043 = vpop.f32.mrb[0].mxu0
        %3044 = vmatprep.mubr.bf16.mxu0 0
        %3045 = vmatmul.mubr.bf16.gmra.mrb[0].mxu0 %v2924
        %v3046 = vpop.f32.mrb[0].mxu0
        %v3047 = vadd.f32 0.0, %v3046
        %v3048 = vpop.f32.mrb[0].mxu0
        %v3049 = vpop.f32.mrb[0].mxu0
        %v3050 = vadd.f32 0.0, %v3049
        %v3051 = vpop.f32.mrb[0].mxu0
        %3052 = vmatprep.mubr.bf16.mxu0 0
        %3053 = vmatmul.mubr.bf16.gmra.mrb[0].mxu0 %v2933
        %v3054 = vpop.f32.mrb[0].mxu0
        %v3055 = vadd.f32 0.0, %v3054
        %v3056 = vpop.f32.mrb[0].mxu0
        %v3057 = vpop.f32.mrb[0].mxu0
        %v3058 = vadd.f32 0.0, %v3057
        %v3059 = vpop.f32.mrb[0].mxu0
        %3060 = vmatprep.mubr.bf16.mxu0 0
        %3061 = vmatmul.mubr.bf16.gmra.mrb[0].mxu0 %v2942
        %v3062 = vpop.f32.mrb[0].mxu0
        %v3063 = vadd.f32 0.0, %v3062
        %v3064 = vpop.f32.mrb[0].mxu0
        %v3065 = vpop.f32.mrb[0].mxu0
        %v3066 = vadd.f32 0.0, %v3065
        %v3067 = vpop.f32.mrb[0].mxu0
        %3068 = vdwg.mxu0
        %v3069 = vadd.f32 %v2859, %v3031
        %v3070 = vadd.f32 %v2860, %v3034
        %v3071 = vadd.f32 %v2861, %v3039
        %v3072 = vadd.f32 %v2862, %v3042
        %v3073 = vadd.f32 %v2863, %v3047
        %v3074 = vadd.f32 %v2864, %v3050
        %v3075 = vadd.f32 %v2865, %v3055
        %v3076 = vadd.f32 %v2866, %v3058
        %v3077 = vadd.f32 %v2867, %v3063
        %v3078 = vadd.f32 %v2868, %v3066
        %v3079 = vld [vmem:[%s317 + $0x4] sm:$0xc]
        %s3080 = scalar_lea.vmem [#allocation8], 896
        %v3081 = vld [vmem:[%s3080] sm:$0xf]
        %v3082 = vld [vmem:[%s3080 + $0x4] sm:$0xf]
        %v3083 = vld [vmem:[%s3080 + $0x8] sm:$0xf]
        %v3084 = vld [vmem:[%s3080 + $0xc] sm:$0xf]
        %v3085 = vld [vmem:[%s3080 + $0x10] sm:$0xf]
        %v3086 = vld [vmem:[%s3080 + $0x14] sm:$0xf]
        %v3087 = vld [vmem:[%s3080 + $0x18] sm:$0xf]
        %v3088 = vld [vmem:[%s3080 + $0x1c] sm:$0xf]
        %v3089 = vld [vmem:[%s3080 + $0x20] sm:$0xf]
        %v3090 = vld [vmem:[%s3080 + $0x24] sm:$0xf]
        %v3091 = vld [vmem:[%s3080 + $0x28] sm:$0xf]
        %v3092 = vld [vmem:[%s3080 + $0x2c] sm:$0xf]
        %v3093 = vld [vmem:[%s3080 + $0x30] sm:$0xf]
        %v3094 = vld [vmem:[%s3080 + $0x34] sm:$0xf]
        %v3095 = vld [vmem:[%s3080 + $0x38] sm:$0xf]
        %v3096 = vld [vmem:[%s3080 + $0x3c] sm:$0xf]
        %v3098 = vunpack.c.l.b16 %v3079
        %v3099 = vpack.c.b16 %v2706, %v3098
        %v3100 = vrot.slane %v3099, 2
        %v3101 = vrot.slane %v2717, 2
        %v3102 = vsel %vm1343, %v3100, %v3101
        %v3103 = vrot.slane %v2718, 2
        %v3104 = vsel %vm1343, %v3101, %v3103
        %v3105 = vrot.slane %v2719, 2
        %v3106 = vsel %vm1343, %v3103, %v3105
        %v3107 = vrot.slane %v2720, 2
        %v3108 = vsel %vm1343, %v3105, %v3107
        %v3109 = vrot.slane %v2889, 2
        %v3110 = vsel %vm1343, %v3107, %v3109
        %v3132 = vunpack.c.l.b16 %v3081
        %v3133 = vunpack.c.l.b16 %v3082
        %v3134 = vunpack.c.l.b16 %v3083
        %v3135 = vunpack.c.l.b16 %v3084
        %v3136 = vunpack.c.l.b16 %v3085
        %v3137 = vunpack.c.l.b16 %v3086
        %v3138 = vunpack.c.l.b16 %v3087
        %v3139 = vunpack.c.l.b16 %v3088
        %v3140 = vunpack.c.l.b16 %v3089
        %v3141 = vunpack.c.l.b16 %v3090
        %v3142 = vunpack.c.l.b16 %v3091
        %v3143 = vunpack.c.l.b16 %v3092
        %v3144 = vunpack.c.l.b16 %v3093
        %v3145 = vunpack.c.l.b16 %v3094
        %v3146 = vunpack.c.l.b16 %v3095
        %v3147 = vunpack.c.l.b16 %v3096
        %v3148 = vpack.c.b16 %v3133, %v3132
        %v3149 = vpack.c.b16 %v3135, %v3134
        %v3150 = vpack.c.b16 %v3137, %v3136
        %v3151 = vpack.c.b16 %v3139, %v3138
        %v3152 = vpack.c.b16 %v3141, %v3140
        %v3153 = vpack.c.b16 %v3143, %v3142
        %v3154 = vpack.c.b16 %v3145, %v3144
        %v3155 = vpack.c.b16 %v3147, %v3146
        %3164 = vmatprep.subr.bf16.mxu0 0
        %3165 = vmatpush1.bf16.msra.mxu0 %v3148
        %3166 = vmatprep.subr.bf16.mxu0 0
        %3167 = vmatpush1.bf16.msra.mxu0 %v3149
        %3168 = vmatprep.subr.bf16.mxu0 0
        %3169 = vmatpush1.bf16.msra.mxu0 %v3150
        %3170 = vmatprep.subr.bf16.mxu0 0
        %3171 = vmatpush1.bf16.msra.mxu0 %v3151
        %3172 = vmatprep.subr.bf16.mxu0 0
        %3173 = vmatpush1.bf16.msra.mxu0 %v3152
        %3174 = vmatprep.subr.bf16.mxu0 0
        %3175 = vmatpush1.bf16.msra.mxu0 %v3153
        %3176 = vmatprep.subr.bf16.mxu0 0
        %3177 = vmatpush1.bf16.msra.mxu0 %v3154
        %3178 = vmatprep.subr.bf16.mxu0 0
        %3179 = vmatpush1.bf16.msra.mxu0 %v3155
        %3180 = vmatprep.subr.bf16.mxu0 0
        %3181 = vmatpush1.bf16.msra.mxu0 0
        %3182 = vmatprep.subr.bf16.mxu0 0
        %3183 = vmatpush1.bf16.msra.mxu0 0
        %3184 = vmatprep.subr.bf16.mxu0 0
        %3185 = vmatpush1.bf16.msra.mxu0 0
        %3186 = vmatprep.subr.bf16.mxu0 0
        %3187 = vmatpush1.bf16.msra.mxu0 0
        %3188 = vmatprep.subr.bf16.mxu0 0
        %3189 = vmatpush1.bf16.msra.mxu0 0
        %3190 = vmatprep.subr.bf16.mxu0 0
        %3191 = vmatpush1.bf16.msra.mxu0 0
        %3192 = vmatprep.subr.bf16.mxu0 0
        %3193 = vmatpush1.bf16.msra.mxu0 0
        %3194 = vmatprep.subr.bf16.mxu0 0
        %3195 = vmatpush1.bf16.msra.mxu0 0
        %3196 = vmatprep.mubr.bf16.mxu0 0
        %3197 = vmatmul.mubr.bf16.gmra.mrb[0].mxu0 %v3102
        %v3198 = vpop.f32.mrb[0].mxu0
        %v3199 = vadd.f32 0.0, %v3198
        %v3200 = vpop.f32.mrb[0].mxu0
        %v3201 = vpop.f32.mrb[0].mxu0
        %v3202 = vadd.f32 0.0, %v3201
        %v3203 = vpop.f32.mrb[0].mxu0
        %3204 = vmatprep.mubr.bf16.mxu0 0
        %3205 = vmatmul.mubr.bf16.gmra.mrb[0].mxu0 %v3104
        %v3206 = vpop.f32.mrb[0].mxu0
        %v3207 = vadd.f32 0.0, %v3206
        %v3208 = vpop.f32.mrb[0].mxu0
        %v3209 = vpop.f32.mrb[0].mxu0
        %v3210 = vadd.f32 0.0, %v3209
        %v3211 = vpop.f32.mrb[0].mxu0
        %3212 = vmatprep.mubr.bf16.mxu0 0
        %3213 = vmatmul.mubr.bf16.gmra.mrb[0].mxu0 %v3106
        %v3214 = vpop.f32.mrb[0].mxu0
        %v3215 = vadd.f32 0.0, %v3214
        %v3216 = vpop.f32.mrb[0].mxu0
        %v3217 = vpop.f32.mrb[0].mxu0
        %v3218 = vadd.f32 0.0, %v3217
        %v3219 = vpop.f32.mrb[0].mxu0
        %3220 = vmatprep.mubr.bf16.mxu0 0
        %3221 = vmatmul.mubr.bf16.gmra.mrb[0].mxu0 %v3108
        %v3222 = vpop.f32.mrb[0].mxu0
        %v3223 = vadd.f32 0.0, %v3222
        %v3224 = vpop.f32.mrb[0].mxu0
        %v3225 = vpop.f32.mrb[0].mxu0
        %v3226 = vadd.f32 0.0, %v3225
        %v3227 = vpop.f32.mrb[0].mxu0
        %3228 = vmatprep.mubr.bf16.mxu0 0
        %3229 = vmatmul.mubr.bf16.gmra.mrb[0].mxu0 %v3110
        %v3230 = vpop.f32.mrb[0].mxu0
        %v3231 = vadd.f32 0.0, %v3230
        %v3232 = vpop.f32.mrb[0].mxu0
        %v3233 = vpop.f32.mrb[0].mxu0
        %v3234 = vadd.f32 0.0, %v3233
        %v3235 = vpop.f32.mrb[0].mxu0
        %3236 = vdwg.mxu0
        %v3237 = vadd.f32 %v3069, %v3199
        %v3238 = vadd.f32 %v3070, %v3202
        %v3239 = vadd.f32 %v3071, %v3207
        %v3240 = vadd.f32 %v3072, %v3210
        %v3241 = vadd.f32 %v3073, %v3215
        %v3242 = vadd.f32 %v3074, %v3218
        %v3243 = vadd.f32 %v3075, %v3223
        %v3244 = vadd.f32 %v3076, %v3226
        %v3245 = vadd.f32 %v3077, %v3231
        %v3246 = vadd.f32 %v3078, %v3234
        %v3247 = vld [vmem:[%s317 + $0x8] sm:$0xc]
        %v3248 = vld [vmem:[%s317 + $0xc] sm:$0xf]
        %v3249 = vld [vmem:[%s317 + $0x10] sm:$0xf]
        %v3250 = vld [vmem:[%s317 + $0x14] sm:$0xf]
        %v3251 = vld [vmem:[%s317 + $0x18] sm:$0xf]
        %v3252 = vld [vmem:[%s317 + $0x1c] sm:$0xf]
        %v3253 = vld [vmem:[%s317 + $0x20] sm:$0xf]
        %v3254 = vld [vmem:[%s317 + $0x24] sm:$0xf]
        %v3255 = vld [vmem:[%s317 + $0x28] sm:$0xf]
        %v3256 = vld [vmem:[%s317 + $0x2c] sm:$0xf]
        %v3257 = vld [vmem:[%s317 + $0x30] sm:$0x3]
        %s3258 = scalar_lea.vmem [#allocation8], 960
        %v3259 = vld [vmem:[%s3258] sm:$0xf]
        %v3260 = vld [vmem:[%s3258 + $0x4] sm:$0xf]
        %v3261 = vld [vmem:[%s3258 + $0x8] sm:$0xf]
        %v3262 = vld [vmem:[%s3258 + $0xc] sm:$0xf]
        %v3263 = vld [vmem:[%s3258 + $0x10] sm:$0xf]
        %v3264 = vld [vmem:[%s3258 + $0x14] sm:$0xf]
        %v3265 = vld [vmem:[%s3258 + $0x18] sm:$0xf]
        %v3266 = vld [vmem:[%s3258 + $0x1c] sm:$0xf]
        %v3267 = vld [vmem:[%s3258 + $0x20] sm:$0xf]
        %v3268 = vld [vmem:[%s3258 + $0x24] sm:$0xf]
        %v3269 = vld [vmem:[%s3258 + $0x28] sm:$0xf]
        %v3270 = vld [vmem:[%s3258 + $0x2c] sm:$0xf]
        %v3271 = vld [vmem:[%s3258 + $0x30] sm:$0xf]
        %v3272 = vld [vmem:[%s3258 + $0x34] sm:$0xf]
        %v3273 = vld [vmem:[%s3258 + $0x38] sm:$0xf]
        %v3274 = vld [vmem:[%s3258 + $0x3c] sm:$0xf]
        %v3286 = vunpack.c.l.b16 %v3247
        %v3287 = vunpack.c.l.b16 %v3248
        %v3288 = vunpack.c.l.b16 %v3249
        %v3289 = vunpack.c.l.b16 %v3250
        %v3290 = vunpack.c.l.b16 %v3251
        %v3291 = vunpack.c.l.b16 %v3252
        %v3292 = vunpack.c.l.b16 %v3253
        %v3293 = vunpack.c.l.b16 %v3254
        %v3294 = vunpack.c.l.b16 %v3255
        %v3295 = vunpack.c.l.b16 %v3256
        %v3296 = vunpack.c.l.b16 %v3257
        %v3297 = vpack.c.b16 %v3287, %v3286
        %v3298 = vpack.c.b16 %v3289, %v3288
        %v3299 = vpack.c.b16 %v3291, %v3290
        %v3300 = vpack.c.b16 %v3293, %v3292
        %v3301 = vpack.c.b16 %v3295, %v3294
        %v3302 = vpack.c.b16 %v3296, %v3296
        %v3303 = vrot.slane %v3297, 2
        %v3304 = vrot.slane %v3298, 2
        %v3305 = vsel %vm1343, %v3303, %v3304
        %v3306 = vrot.slane %v3299, 2
        %v3307 = vsel %vm1343, %v3304, %v3306
        %v3308 = vrot.slane %v3300, 2
        %v3309 = vsel %vm1343, %v3306, %v3308
        %v3310 = vrot.slane %v3301, 2
        %v3311 = vsel %vm1343, %v3308, %v3310
        %v3312 = vrot.slane %v3302, 2
        %v3313 = vsel %vm1343, %v3310, %v3312
        %v3335 = vunpack.c.l.b16 %v3259
        %v3336 = vunpack.c.l.b16 %v3260
        %v3337 = vunpack.c.l.b16 %v3261
        %v3338 = vunpack.c.l.b16 %v3262
        %v3339 = vunpack.c.l.b16 %v3263
        %v3340 = vunpack.c.l.b16 %v3264
        %v3341 = vunpack.c.l.b16 %v3265
        %v3342 = vunpack.c.l.b16 %v3266
        %v3343 = vunpack.c.l.b16 %v3267
        %v3344 = vunpack.c.l.b16 %v3268
        %v3345 = vunpack.c.l.b16 %v3269
        %v3346 = vunpack.c.l.b16 %v3270
        %v3347 = vunpack.c.l.b16 %v3271
        %v3348 = vunpack.c.l.b16 %v3272
        %v3349 = vunpack.c.l.b16 %v3273
        %v3350 = vunpack.c.l.b16 %v3274
        %v3351 = vpack.c.b16 %v3336, %v3335
        %v3352 = vpack.c.b16 %v3338, %v3337
        %v3353 = vpack.c.b16 %v3340, %v3339
        %v3354 = vpack.c.b16 %v3342, %v3341
        %v3355 = vpack.c.b16 %v3344, %v3343
        %v3356 = vpack.c.b16 %v3346, %v3345
        %v3357 = vpack.c.b16 %v3348, %v3347
        %v3358 = vpack.c.b16 %v3350, %v3349
        %3367 = vmatprep.subr.bf16.mxu0 0
        %3368 = vmatpush1.bf16.msra.mxu0 %v3351
        %3369 = vmatprep.subr.bf16.mxu0 0
        %3370 = vmatpush1.bf16.msra.mxu0 %v3352
        %3371 = vmatprep.subr.bf16.mxu0 0
        %3372 = vmatpush1.bf16.msra.mxu0 %v3353
        %3373 = vmatprep.subr.bf16.mxu0 0
        %3374 = vmatpush1.bf16.msra.mxu0 %v3354
        %3375 = vmatprep.subr.bf16.mxu0 0
        %3376 = vmatpush1.bf16.msra.mxu0 %v3355
        %3377 = vmatprep.subr.bf16.mxu0 0
        %3378 = vmatpush1.bf16.msra.mxu0 %v3356
        %3379 = vmatprep.subr.bf16.mxu0 0
        %3380 = vmatpush1.bf16.msra.mxu0 %v3357
        %3381 = vmatprep.subr.bf16.mxu0 0
        %3382 = vmatpush1.bf16.msra.mxu0 %v3358
        %3383 = vmatprep.subr.bf16.mxu0 0
        %3384 = vmatpush1.bf16.msra.mxu0 0
        %3385 = vmatprep.subr.bf16.mxu0 0
        %3386 = vmatpush1.bf16.msra.mxu0 0
        %3387 = vmatprep.subr.bf16.mxu0 0
        %3388 = vmatpush1.bf16.msra.mxu0 0
        %3389 = vmatprep.subr.bf16.mxu0 0
        %3390 = vmatpush1.bf16.msra.mxu0 0
        %3391 = vmatprep.subr.bf16.mxu0 0
        %3392 = vmatpush1.bf16.msra.mxu0 0
        %3393 = vmatprep.subr.bf16.mxu0 0
        %3394 = vmatpush1.bf16.msra.mxu0 0
        %3395 = vmatprep.subr.bf16.mxu0 0
        %3396 = vmatpush1.bf16.msra.mxu0 0
        %3397 = vmatprep.subr.bf16.mxu0 0
        %3398 = vmatpush1.bf16.msra.mxu0 0
        %3399 = vmatprep.mubr.bf16.mxu0 0
        %3400 = vmatmul.mubr.bf16.gmra.mrb[0].mxu0 %v3305
        %v3401 = vpop.f32.mrb[0].mxu0
        %v3402 = vadd.f32 0.0, %v3401
        %v3403 = vpop.f32.mrb[0].mxu0
        %v3404 = vpop.f32.mrb[0].mxu0
        %v3405 = vadd.f32 0.0, %v3404
        %v3406 = vpop.f32.mrb[0].mxu0
        %3407 = vmatprep.mubr.bf16.mxu0 0
        %3408 = vmatmul.mubr.bf16.gmra.mrb[0].mxu0 %v3307
        %v3409 = vpop.f32.mrb[0].mxu0
        %v3410 = vadd.f32 0.0, %v3409
        %v3411 = vpop.f32.mrb[0].mxu0
        %v3412 = vpop.f32.mrb[0].mxu0
        %v3413 = vadd.f32 0.0, %v3412
        %v3414 = vpop.f32.mrb[0].mxu0
        %3415 = vmatprep.mubr.bf16.mxu0 0
        %3416 = vmatmul.mubr.bf16.gmra.mrb[0].mxu0 %v3309
        %v3417 = vpop.f32.mrb[0].mxu0
        %v3418 = vadd.f32 0.0, %v3417
        %v3419 = vpop.f32.mrb[0].mxu0
        %v3420 = vpop.f32.mrb[0].mxu0
        %v3421 = vadd.f32 0.0, %v3420
        %v3422 = vpop.f32.mrb[0].mxu0
        %3423 = vmatprep.mubr.bf16.mxu0 0
        %3424 = vmatmul.mubr.bf16.gmra.mrb[0].mxu0 %v3311
        %v3425 = vpop.f32.mrb[0].mxu0
        %v3426 = vadd.f32 0.0, %v3425
        %v3427 = vpop.f32.mrb[0].mxu0
        %v3428 = vpop.f32.mrb[0].mxu0
        %v3429 = vadd.f32 0.0, %v3428
        %v3430 = vpop.f32.mrb[0].mxu0
        %3431 = vmatprep.mubr.bf16.mxu0 0
        %3432 = vmatmul.mubr.bf16.gmra.mrb[0].mxu0 %v3313
        %v3433 = vpop.f32.mrb[0].mxu0
        %v3434 = vadd.f32 0.0, %v3433
        %v3435 = vpop.f32.mrb[0].mxu0
        %v3436 = vpop.f32.mrb[0].mxu0
        %v3437 = vadd.f32 0.0, %v3436
        %v3438 = vpop.f32.mrb[0].mxu0
        %3439 = vdwg.mxu0
        %v3440 = vadd.f32 %v3237, %v3402
        %v3441 = vadd.f32 %v3238, %v3405
        %v3442 = vadd.f32 %v3239, %v3410
        %v3443 = vadd.f32 %v3240, %v3413
        %v3444 = vadd.f32 %v3241, %v3418
        %v3445 = vadd.f32 %v3242, %v3421
        %v3446 = vadd.f32 %v3243, %v3426
        %v3447 = vadd.f32 %v3244, %v3429
        %v3448 = vadd.f32 %v3245, %v3434
        %v3449 = vadd.f32 %v3246, %v3437
        %v3450 = vld [vmem:[%s317 + $0x30] sm:$0x7]
        %s3451 = scalar_lea.vmem [#allocation8], 1024
        %v3452 = vld [vmem:[%s3451] sm:$0xf]
        %v3453 = vld [vmem:[%s3451 + $0x4] sm:$0xf]
        %v3454 = vld [vmem:[%s3451 + $0x8] sm:$0xf]
        %v3455 = vld [vmem:[%s3451 + $0xc] sm:$0xf]
        %v3456 = vld [vmem:[%s3451 + $0x10] sm:$0xf]
        %v3457 = vld [vmem:[%s3451 + $0x14] sm:$0xf]
        %v3458 = vld [vmem:[%s3451 + $0x18] sm:$0xf]
        %v3459 = vld [vmem:[%s3451 + $0x1c] sm:$0xf]
        %v3460 = vld [vmem:[%s3451 + $0x20] sm:$0xf]
        %v3461 = vld [vmem:[%s3451 + $0x24] sm:$0xf]
        %v3462 = vld [vmem:[%s3451 + $0x28] sm:$0xf]
        %v3463 = vld [vmem:[%s3451 + $0x2c] sm:$0xf]
        %v3464 = vld [vmem:[%s3451 + $0x30] sm:$0xf]
        %v3465 = vld [vmem:[%s3451 + $0x34] sm:$0xf]
        %v3466 = vld [vmem:[%s3451 + $0x38] sm:$0xf]
        %v3467 = vld [vmem:[%s3451 + $0x3c] sm:$0xf]
        %v3469 = vunpack.c.l.b16 %v3450
        %v3470 = vpack.c.b16 %v3469, %v3469
        %v3472 = vshrl.u32 %v3297, 16
        %v3474 = vrot.slane %v3472, 2
        %v3475 = vshll.u32 %v3297, 16
        %v3477 = vrot.slane %v3475, 3
        %v3478 = vor.u32 %v3474, %v3477
        %v3480 = vshrl.u32 %v3298, 16
        %v3482 = vrot.slane %v3480, 2
        %v3483 = vshll.u32 %v3298, 16
        %v3485 = vrot.slane %v3483, 3
        %v3486 = vor.u32 %v3482, %v3485
        %v3487 = vsel %vm1715, %v3478, %v3486
        %v3489 = vshrl.u32 %v3299, 16
        %v3491 = vrot.slane %v3489, 2
        %v3492 = vshll.u32 %v3299, 16
        %v3494 = vrot.slane %v3492, 3
        %v3495 = vor.u32 %v3491, %v3494
        %v3496 = vsel %vm1715, %v3486, %v3495
        %v3498 = vshrl.u32 %v3300, 16
        %v3500 = vrot.slane %v3498, 2
        %v3501 = vshll.u32 %v3300, 16
        %v3503 = vrot.slane %v3501, 3
        %v3504 = vor.u32 %v3500, %v3503
        %v3505 = vsel %vm1715, %v3495, %v3504
        %v3507 = vshrl.u32 %v3301, 16
        %v3509 = vrot.slane %v3507, 2
        %v3510 = vshll.u32 %v3301, 16
        %v3512 = vrot.slane %v3510, 3
        %v3513 = vor.u32 %v3509, %v3512
        %v3514 = vsel %vm1715, %v3504, %v3513
        %v3516 = vshrl.u32 %v3470, 16
        %v3518 = vrot.slane %v3516, 2
        %v3519 = vshll.u32 %v3470, 16
        %v3521 = vrot.slane %v3519, 3
        %v3522 = vor.u32 %v3518, %v3521
        %v3523 = vsel %vm1715, %v3513, %v3522
        %v3545 = vunpack.c.l.b16 %v3452
        %v3546 = vunpack.c.l.b16 %v3453
        %v3547 = vunpack.c.l.b16 %v3454
        %v3548 = vunpack.c.l.b16 %v3455
        %v3549 = vunpack.c.l.b16 %v3456
        %v3550 = vunpack.c.l.b16 %v3457
        %v3551 = vunpack.c.l.b16 %v3458
        %v3552 = vunpack.c.l.b16 %v3459
        %v3553 = vunpack.c.l.b16 %v3460
        %v3554 = vunpack.c.l.b16 %v3461
        %v3555 = vunpack.c.l.b16 %v3462
        %v3556 = vunpack.c.l.b16 %v3463
        %v3557 = vunpack.c.l.b16 %v3464
        %v3558 = vunpack.c.l.b16 %v3465
        %v3559 = vunpack.c.l.b16 %v3466
        %v3560 = vunpack.c.l.b16 %v3467
        %v3561 = vpack.c.b16 %v3546, %v3545
        %v3562 = vpack.c.b16 %v3548, %v3547
        %v3563 = vpack.c.b16 %v3550, %v3549
        %v3564 = vpack.c.b16 %v3552, %v3551
        %v3565 = vpack.c.b16 %v3554, %v3553
        %v3566 = vpack.c.b16 %v3556, %v3555
        %v3567 = vpack.c.b16 %v3558, %v3557
        %v3568 = vpack.c.b16 %v3560, %v3559
        %3577 = vmatprep.subr.bf16.mxu0 0
        %3578 = vmatpush1.bf16.msra.mxu0 %v3561
        %3579 = vmatprep.subr.bf16.mxu0 0
        %3580 = vmatpush1.bf16.msra.mxu0 %v3562
        %3581 = vmatprep.subr.bf16.mxu0 0
        %3582 = vmatpush1.bf16.msra.mxu0 %v3563
        %3583 = vmatprep.subr.bf16.mxu0 0
        %3584 = vmatpush1.bf16.msra.mxu0 %v3564
        %3585 = vmatprep.subr.bf16.mxu0 0
        %3586 = vmatpush1.bf16.msra.mxu0 %v3565
        %3587 = vmatprep.subr.bf16.mxu0 0
        %3588 = vmatpush1.bf16.msra.mxu0 %v3566
        %3589 = vmatprep.subr.bf16.mxu0 0
        %3590 = vmatpush1.bf16.msra.mxu0 %v3567
        %3591 = vmatprep.subr.bf16.mxu0 0
        %3592 = vmatpush1.bf16.msra.mxu0 %v3568
        %3593 = vmatprep.subr.bf16.mxu0 0
        %3594 = vmatpush1.bf16.msra.mxu0 0
        %3595 = vmatprep.subr.bf16.mxu0 0
        %3596 = vmatpush1.bf16.msra.mxu0 0
        %3597 = vmatprep.subr.bf16.mxu0 0
        %3598 = vmatpush1.bf16.msra.mxu0 0
        %3599 = vmatprep.subr.bf16.mxu0 0
        %3600 = vmatpush1.bf16.msra.mxu0 0
        %3601 = vmatprep.subr.bf16.mxu0 0
        %3602 = vmatpush1.bf16.msra.mxu0 0
        %3603 = vmatprep.subr.bf16.mxu0 0
        %3604 = vmatpush1.bf16.msra.mxu0 0
        %3605 = vmatprep.subr.bf16.mxu0 0
        %3606 = vmatpush1.bf16.msra.mxu0 0
        %3607 = vmatprep.subr.bf16.mxu0 0
        %3608 = vmatpush1.bf16.msra.mxu0 0
        %3609 = vmatprep.mubr.bf16.mxu0 0
        %3610 = vmatmul.mubr.bf16.gmra.mrb[0].mxu0 %v3487
        %v3611 = vpop.f32.mrb[0].mxu0
        %v3612 = vadd.f32 0.0, %v3611
        %v3613 = vpop.f32.mrb[0].mxu0
        %v3614 = vpop.f32.mrb[0].mxu0
        %v3615 = vadd.f32 0.0, %v3614
        %v3616 = vpop.f32.mrb[0].mxu0
        %3617 = vmatprep.mubr.bf16.mxu0 0
        %3618 = vmatmul.mubr.bf16.gmra.mrb[0].mxu0 %v3496
        %v3619 = vpop.f32.mrb[0].mxu0
        %v3620 = vadd.f32 0.0, %v3619
        %v3621 = vpop.f32.mrb[0].mxu0
        %v3622 = vpop.f32.mrb[0].mxu0
        %v3623 = vadd.f32 0.0, %v3622
        %v3624 = vpop.f32.mrb[0].mxu0
        %3625 = vmatprep.mubr.bf16.mxu0 0
        %3626 = vmatmul.mubr.bf16.gmra.mrb[0].mxu0 %v3505
        %v3627 = vpop.f32.mrb[0].mxu0
        %v3628 = vadd.f32 0.0, %v3627
        %v3629 = vpop.f32.mrb[0].mxu0
        %v3630 = vpop.f32.mrb[0].mxu0
        %v3631 = vadd.f32 0.0, %v3630
        %v3632 = vpop.f32.mrb[0].mxu0
        %3633 = vmatprep.mubr.bf16.mxu0 0
        %3634 = vmatmul.mubr.bf16.gmra.mrb[0].mxu0 %v3514
        %v3635 = vpop.f32.mrb[0].mxu0
        %v3636 = vadd.f32 0.0, %v3635
        %v3637 = vpop.f32.mrb[0].mxu0
        %v3638 = vpop.f32.mrb[0].mxu0
        %v3639 = vadd.f32 0.0, %v3638
        %v3640 = vpop.f32.mrb[0].mxu0
        %3641 = vmatprep.mubr.bf16.mxu0 0
        %3642 = vmatmul.mubr.bf16.gmra.mrb[0].mxu0 %v3523
        %v3643 = vpop.f32.mrb[0].mxu0
        %v3644 = vadd.f32 0.0, %v3643
        %v3645 = vpop.f32.mrb[0].mxu0
        %v3646 = vpop.f32.mrb[0].mxu0
        %v3647 = vadd.f32 0.0, %v3646
        %v3648 = vpop.f32.mrb[0].mxu0
        %3649 = vdwg.mxu0
        %v3650 = vadd.f32 %v3440, %v3612
        %v3651 = vadd.f32 %v3441, %v3615
        %v3652 = vadd.f32 %v3442, %v3620
        %v3653 = vadd.f32 %v3443, %v3623
        %v3654 = vadd.f32 %v3444, %v3628
        %v3655 = vadd.f32 %v3445, %v3631
        %v3656 = vadd.f32 %v3446, %v3636
        %v3657 = vadd.f32 %v3447, %v3639
        %v3658 = vadd.f32 %v3448, %v3644
        %v3659 = vadd.f32 %v3449, %v3647
        %v3660 = vld [vmem:[%s317 + $0x8] sm:$0x8]
        %s3661 = scalar_lea.vmem [#allocation8], 1088
        %v3662 = vld [vmem:[%s3661] sm:$0xf]
        %v3663 = vld [vmem:[%s3661 + $0x4] sm:$0xf]
        %v3664 = vld [vmem:[%s3661 + $0x8] sm:$0xf]
        %v3665 = vld [vmem:[%s3661 + $0xc] sm:$0xf]
        %v3666 = vld [vmem:[%s3661 + $0x10] sm:$0xf]
        %v3667 = vld [vmem:[%s3661 + $0x14] sm:$0xf]
        %v3668 = vld [vmem:[%s3661 + $0x18] sm:$0xf]
        %v3669 = vld [vmem:[%s3661 + $0x1c] sm:$0xf]
        %v3670 = vld [vmem:[%s3661 + $0x20] sm:$0xf]
        %v3671 = vld [vmem:[%s3661 + $0x24] sm:$0xf]
        %v3672 = vld [vmem:[%s3661 + $0x28] sm:$0xf]
        %v3673 = vld [vmem:[%s3661 + $0x2c] sm:$0xf]
        %v3674 = vld [vmem:[%s3661 + $0x30] sm:$0xf]
        %v3675 = vld [vmem:[%s3661 + $0x34] sm:$0xf]
        %v3676 = vld [vmem:[%s3661 + $0x38] sm:$0xf]
        %v3677 = vld [vmem:[%s3661 + $0x3c] sm:$0xf]
        %v3679 = vunpack.c.l.b16 %v3660
        %v3680 = vpack.c.b16 %v3287, %v3679
        %v3681 = vrot.slane %v3680, 3
        %v3682 = vrot.slane %v3298, 3
        %v3683 = vsel %vm1926, %v3681, %v3682
        %v3684 = vrot.slane %v3299, 3
        %v3685 = vsel %vm1926, %v3682, %v3684
        %v3686 = vrot.slane %v3300, 3
        %v3687 = vsel %vm1926, %v3684, %v3686
        %v3688 = vrot.slane %v3301, 3
        %v3689 = vsel %vm1926, %v3686, %v3688
        %v3690 = vrot.slane %v3470, 3
        %v3691 = vsel %vm1926, %v3688, %v3690
        %v3713 = vunpack.c.l.b16 %v3662
        %v3714 = vunpack.c.l.b16 %v3663
        %v3715 = vunpack.c.l.b16 %v3664
        %v3716 = vunpack.c.l.b16 %v3665
        %v3717 = vunpack.c.l.b16 %v3666
        %v3718 = vunpack.c.l.b16 %v3667
        %v3719 = vunpack.c.l.b16 %v3668
        %v3720 = vunpack.c.l.b16 %v3669
        %v3721 = vunpack.c.l.b16 %v3670
        %v3722 = vunpack.c.l.b16 %v3671
        %v3723 = vunpack.c.l.b16 %v3672
        %v3724 = vunpack.c.l.b16 %v3673
        %v3725 = vunpack.c.l.b16 %v3674
        %v3726 = vunpack.c.l.b16 %v3675
        %v3727 = vunpack.c.l.b16 %v3676
        %v3728 = vunpack.c.l.b16 %v3677
        %v3729 = vpack.c.b16 %v3714, %v3713
        %v3730 = vpack.c.b16 %v3716, %v3715
        %v3731 = vpack.c.b16 %v3718, %v3717
        %v3732 = vpack.c.b16 %v3720, %v3719
        %v3733 = vpack.c.b16 %v3722, %v3721
        %v3734 = vpack.c.b16 %v3724, %v3723
        %v3735 = vpack.c.b16 %v3726, %v3725
        %v3736 = vpack.c.b16 %v3728, %v3727
        %3745 = vmatprep.subr.bf16.mxu0 0
        %3746 = vmatpush1.bf16.msra.mxu0 %v3729
        %3747 = vmatprep.subr.bf16.mxu0 0
        %3748 = vmatpush1.bf16.msra.mxu0 %v3730
        %3749 = vmatprep.subr.bf16.mxu0 0
        %3750 = vmatpush1.bf16.msra.mxu0 %v3731
        %3751 = vmatprep.subr.bf16.mxu0 0
        %3752 = vmatpush1.bf16.msra.mxu0 %v3732
        %3753 = vmatprep.subr.bf16.mxu0 0
        %3754 = vmatpush1.bf16.msra.mxu0 %v3733
        %3755 = vmatprep.subr.bf16.mxu0 0
        %3756 = vmatpush1.bf16.msra.mxu0 %v3734
        %3757 = vmatprep.subr.bf16.mxu0 0
        %3758 = vmatpush1.bf16.msra.mxu0 %v3735
        %3759 = vmatprep.subr.bf16.mxu0 0
        %3760 = vmatpush1.bf16.msra.mxu0 %v3736
        %3761 = vmatprep.subr.bf16.mxu0 0
        %3762 = vmatpush1.bf16.msra.mxu0 0
        %3763 = vmatprep.subr.bf16.mxu0 0
        %3764 = vmatpush1.bf16.msra.mxu0 0
        %3765 = vmatprep.subr.bf16.mxu0 0
        %3766 = vmatpush1.bf16.msra.mxu0 0
        %3767 = vmatprep.subr.bf16.mxu0 0
        %3768 = vmatpush1.bf16.msra.mxu0 0
        %3769 = vmatprep.subr.bf16.mxu0 0
        %3770 = vmatpush1.bf16.msra.mxu0 0
        %3771 = vmatprep.subr.bf16.mxu0 0
        %3772 = vmatpush1.bf16.msra.mxu0 0
        %3773 = vmatprep.subr.bf16.mxu0 0
        %3774 = vmatpush1.bf16.msra.mxu0 0
        %3775 = vmatprep.subr.bf16.mxu0 0
        %3776 = vmatpush1.bf16.msra.mxu0 0
        %3777 = vmatprep.mubr.bf16.mxu0 0
        %3778 = vmatmul.mubr.bf16.gmra.mrb[0].mxu0 %v3683
        %v3779 = vpop.f32.mrb[0].mxu0
        %v3780 = vadd.f32 0.0, %v3779
        %v3781 = vpop.f32.mrb[0].mxu0
        %v3782 = vpop.f32.mrb[0].mxu0
        %v3783 = vadd.f32 0.0, %v3782
        %v3784 = vpop.f32.mrb[0].mxu0
        %3785 = vmatprep.mubr.bf16.mxu0 0
        %3786 = vmatmul.mubr.bf16.gmra.mrb[0].mxu0 %v3685
        %v3787 = vpop.f32.mrb[0].mxu0
        %v3788 = vadd.f32 0.0, %v3787
        %v3789 = vpop.f32.mrb[0].mxu0
        %v3790 = vpop.f32.mrb[0].mxu0
        %v3791 = vadd.f32 0.0, %v3790
        %v3792 = vpop.f32.mrb[0].mxu0
        %3793 = vmatprep.mubr.bf16.mxu0 0
        %3794 = vmatmul.mubr.bf16.gmra.mrb[0].mxu0 %v3687
        %v3795 = vpop.f32.mrb[0].mxu0
        %v3796 = vadd.f32 0.0, %v3795
        %v3797 = vpop.f32.mrb[0].mxu0
        %v3798 = vpop.f32.mrb[0].mxu0
        %v3799 = vadd.f32 0.0, %v3798
        %v3800 = vpop.f32.mrb[0].mxu0
        %3801 = vmatprep.mubr.bf16.mxu0 0
        %3802 = vmatmul.mubr.bf16.gmra.mrb[0].mxu0 %v3689
        %v3803 = vpop.f32.mrb[0].mxu0
        %v3804 = vadd.f32 0.0, %v3803
        %v3805 = vpop.f32.mrb[0].mxu0
        %v3806 = vpop.f32.mrb[0].mxu0
        %v3807 = vadd.f32 0.0, %v3806
        %v3808 = vpop.f32.mrb[0].mxu0
        %3809 = vmatprep.mubr.bf16.mxu0 0
        %3810 = vmatmul.mubr.bf16.gmra.mrb[0].mxu0 %v3691
        %v3811 = vpop.f32.mrb[0].mxu0
        %v3812 = vadd.f32 0.0, %v3811
        %v3813 = vpop.f32.mrb[0].mxu0
        %v3814 = vpop.f32.mrb[0].mxu0
        %v3815 = vadd.f32 0.0, %v3814
        %v3816 = vpop.f32.mrb[0].mxu0
        %3817 = vdwg.mxu0
        %v3818 = vadd.f32 %v3650, %v3780
        %v3819 = vadd.f32 %v3651, %v3783
        %v3820 = vadd.f32 %v3652, %v3788
        %v3821 = vadd.f32 %v3653, %v3791
        %v3822 = vadd.f32 %v3654, %v3796
        %v3823 = vadd.f32 %v3655, %v3799
        %v3824 = vadd.f32 %v3656, %v3804
        %v3825 = vadd.f32 %v3657, %v3807
        %v3826 = vadd.f32 %v3658, %v3812
        %v3827 = vadd.f32 %v3659, %v3815
        %v3828 = vld [vmem:[%s326] sm:$0xf]
        %v3829 = vld [vmem:[%s326 + $0x4] sm:$0xf]
        %v3830 = vld [vmem:[%s326 + $0x8] sm:$0xf]
        %v3831 = vld [vmem:[%s326 + $0xc] sm:$0xf]
        %v3832 = vld [vmem:[%s326 + $0x10] sm:$0xf]
        %v3833 = vld [vmem:[%s326 + $0x14] sm:$0xf]
        %v3834 = vld [vmem:[%s326 + $0x18] sm:$0xf]
        %v3835 = vld [vmem:[%s326 + $0x1c] sm:$0xf]
        %v3836 = vld [vmem:[%s326 + $0x20] sm:$0xf]
        %v3837 = vld [vmem:[%s326 + $0x24] sm:$0xf]
        %s3838 = scalar_lea.vmem [#allocation8], 1152
        %v3839 = vld [vmem:[%s3838] sm:$0xf]
        %v3840 = vld [vmem:[%s3838 + $0x4] sm:$0xf]
        %v3841 = vld [vmem:[%s3838 + $0x8] sm:$0xf]
        %v3842 = vld [vmem:[%s3838 + $0xc] sm:$0xf]
        %v3843 = vld [vmem:[%s3838 + $0x10] sm:$0xf]
        %v3844 = vld [vmem:[%s3838 + $0x14] sm:$0xf]
        %v3845 = vld [vmem:[%s3838 + $0x18] sm:$0xf]
        %v3846 = vld [vmem:[%s3838 + $0x1c] sm:$0xf]
        %v3847 = vld [vmem:[%s3838 + $0x20] sm:$0xf]
        %v3848 = vld [vmem:[%s3838 + $0x24] sm:$0xf]
        %v3849 = vld [vmem:[%s3838 + $0x28] sm:$0xf]
        %v3850 = vld [vmem:[%s3838 + $0x2c] sm:$0xf]
        %v3851 = vld [vmem:[%s3838 + $0x30] sm:$0xf]
        %v3852 = vld [vmem:[%s3838 + $0x34] sm:$0xf]
        %v3853 = vld [vmem:[%s3838 + $0x38] sm:$0xf]
        %v3854 = vld [vmem:[%s3838 + $0x3c] sm:$0xf]
        %v3865 = vunpack.c.l.b16 %v3828
        %v3866 = vunpack.c.l.b16 %v3829
        %v3867 = vunpack.c.l.b16 %v3830
        %v3868 = vunpack.c.l.b16 %v3831
        %v3869 = vunpack.c.l.b16 %v3832
        %v3870 = vunpack.c.l.b16 %v3833
        %v3871 = vunpack.c.l.b16 %v3834
        %v3872 = vunpack.c.l.b16 %v3835
        %v3873 = vunpack.c.l.b16 %v3836
        %v3874 = vunpack.c.l.b16 %v3837
        %v3875 = vpack.c.b16 %v3866, %v3865
        %v3876 = vpack.c.b16 %v3868, %v3867
        %v3877 = vpack.c.b16 %v3870, %v3869
        %v3878 = vpack.c.b16 %v3872, %v3871
        %v3879 = vpack.c.b16 %v3874, %v3873
        %v3901 = vunpack.c.l.b16 %v3839
        %v3902 = vunpack.c.l.b16 %v3840
        %v3903 = vunpack.c.l.b16 %v3841
        %v3904 = vunpack.c.l.b16 %v3842
        %v3905 = vunpack.c.l.b16 %v3843
        %v3906 = vunpack.c.l.b16 %v3844
        %v3907 = vunpack.c.l.b16 %v3845
        %v3908 = vunpack.c.l.b16 %v3846
        %v3909 = vunpack.c.l.b16 %v3847
        %v3910 = vunpack.c.l.b16 %v3848
        %v3911 = vunpack.c.l.b16 %v3849
        %v3912 = vunpack.c.l.b16 %v3850
        %v3913 = vunpack.c.l.b16 %v3851
        %v3914 = vunpack.c.l.b16 %v3852
        %v3915 = vunpack.c.l.b16 %v3853
        %v3916 = vunpack.c.l.b16 %v3854
        %v3917 = vpack.c.b16 %v3902, %v3901
        %v3918 = vpack.c.b16 %v3904, %v3903
        %v3919 = vpack.c.b16 %v3906, %v3905
        %v3920 = vpack.c.b16 %v3908, %v3907
        %v3921 = vpack.c.b16 %v3910, %v3909
        %v3922 = vpack.c.b16 %v3912, %v3911
        %v3923 = vpack.c.b16 %v3914, %v3913
        %v3924 = vpack.c.b16 %v3916, %v3915
        %3933 = vmatprep.subr.bf16.mxu0 0
        %3934 = vmatpush1.bf16.msra.mxu0 %v3917
        %3935 = vmatprep.subr.bf16.mxu0 0
        %3936 = vmatpush1.bf16.msra.mxu0 %v3918
        %3937 = vmatprep.subr.bf16.mxu0 0
        %3938 = vmatpush1.bf16.msra.mxu0 %v3919
        %3939 = vmatprep.subr.bf16.mxu0 0
        %3940 = vmatpush1.bf16.msra.mxu0 %v3920
        %3941 = vmatprep.subr.bf16.mxu0 0
        %3942 = vmatpush1.bf16.msra.mxu0 %v3921
        %3943 = vmatprep.subr.bf16.mxu0 0
        %3944 = vmatpush1.bf16.msra.mxu0 %v3922
        %3945 = vmatprep.subr.bf16.mxu0 0
        %3946 = vmatpush1.bf16.msra.mxu0 %v3923
        %3947 = vmatprep.subr.bf16.mxu0 0
        %3948 = vmatpush1.bf16.msra.mxu0 %v3924
        %3949 = vmatprep.subr.bf16.mxu0 0
        %3950 = vmatpush1.bf16.msra.mxu0 0
        %3951 = vmatprep.subr.bf16.mxu0 0
        %3952 = vmatpush1.bf16.msra.mxu0 0
        %3953 = vmatprep.subr.bf16.mxu0 0
        %3954 = vmatpush1.bf16.msra.mxu0 0
        %3955 = vmatprep.subr.bf16.mxu0 0
        %3956 = vmatpush1.bf16.msra.mxu0 0
        %3957 = vmatprep.subr.bf16.mxu0 0
        %3958 = vmatpush1.bf16.msra.mxu0 0
        %3959 = vmatprep.subr.bf16.mxu0 0
        %3960 = vmatpush1.bf16.msra.mxu0 0
        %3961 = vmatprep.subr.bf16.mxu0 0
        %3962 = vmatpush1.bf16.msra.mxu0 0
        %3963 = vmatprep.subr.bf16.mxu0 0
        %3964 = vmatpush1.bf16.msra.mxu0 0
        %3965 = vmatprep.mubr.bf16.mxu0 0
        %3966 = vmatmul.mubr.bf16.gmra.mrb[0].mxu0 %v3875
        %v3967 = vpop.f32.mrb[0].mxu0
        %v3968 = vadd.f32 0.0, %v3967
        %v3969 = vpop.f32.mrb[0].mxu0
        %v3970 = vpop.f32.mrb[0].mxu0
        %v3971 = vadd.f32 0.0, %v3970
        %v3972 = vpop.f32.mrb[0].mxu0
        %3973 = vmatprep.mubr.bf16.mxu0 0
        %3974 = vmatmul.mubr.bf16.gmra.mrb[0].mxu0 %v3876
        %v3975 = vpop.f32.mrb[0].mxu0
        %v3976 = vadd.f32 0.0, %v3975
        %v3977 = vpop.f32.mrb[0].mxu0
        %v3978 = vpop.f32.mrb[0].mxu0
        %v3979 = vadd.f32 0.0, %v3978
        %v3980 = vpop.f32.mrb[0].mxu0
        %3981 = vmatprep.mubr.bf16.mxu0 0
        %3982 = vmatmul.mubr.bf16.gmra.mrb[0].mxu0 %v3877
        %v3983 = vpop.f32.mrb[0].mxu0
        %v3984 = vadd.f32 0.0, %v3983
        %v3985 = vpop.f32.mrb[0].mxu0
        %v3986 = vpop.f32.mrb[0].mxu0
        %v3987 = vadd.f32 0.0, %v3986
        %v3988 = vpop.f32.mrb[0].mxu0
        %3989 = vmatprep.mubr.bf16.mxu0 0
        %3990 = vmatmul.mubr.bf16.gmra.mrb[0].mxu0 %v3878
        %v3991 = vpop.f32.mrb[0].mxu0
        %v3992 = vadd.f32 0.0, %v3991
        %v3993 = vpop.f32.mrb[0].mxu0
        %v3994 = vpop.f32.mrb[0].mxu0
        %v3995 = vadd.f32 0.0, %v3994
        %v3996 = vpop.f32.mrb[0].mxu0
        %3997 = vmatprep.mubr.bf16.mxu0 0
        %3998 = vmatmul.mubr.bf16.gmra.mrb[0].mxu0 %v3879
        %v3999 = vpop.f32.mrb[0].mxu0
        %v4000 = vadd.f32 0.0, %v3999
        %v4001 = vpop.f32.mrb[0].mxu0
        %v4002 = vpop.f32.mrb[0].mxu0
        %v4003 = vadd.f32 0.0, %v4002
        %v4004 = vpop.f32.mrb[0].mxu0
        %4005 = vdwg.mxu0
        %v4006 = vadd.f32 %v3818, %v3968
        %v4007 = vadd.f32 %v3819, %v3971
        %v4008 = vadd.f32 %v3820, %v3976
        %v4009 = vadd.f32 %v3821, %v3979
        %v4010 = vadd.f32 %v3822, %v3984
        %v4011 = vadd.f32 %v3823, %v3987
        %v4012 = vadd.f32 %v3824, %v3992
        %v4013 = vadd.f32 %v3825, %v3995
        %v4014 = vadd.f32 %v3826, %v4000
        %v4015 = vadd.f32 %v3827, %v4003
        %v4016 = vld [vmem:[%s326] sm:$0xf]
        %v4017 = vld [vmem:[%s326 + $0x4] sm:$0xf]
        %v4018 = vld [vmem:[%s326 + $0x8] sm:$0xf]
        %v4019 = vld [vmem:[%s326 + $0xc] sm:$0xf]
        %v4020 = vld [vmem:[%s326 + $0x10] sm:$0xf]
        %v4021 = vld [vmem:[%s326 + $0x14] sm:$0xf]
        %v4022 = vld [vmem:[%s326 + $0x18] sm:$0xf]
        %v4023 = vld [vmem:[%s326 + $0x1c] sm:$0xf]
        %v4024 = vld [vmem:[%s326 + $0x20] sm:$0xf]
        %v4025 = vld [vmem:[%s326 + $0x24] sm:$0xf]
        %v4026 = vld [vmem:[%s326 + $0x28] sm:$0x1]
        %s4027 = scalar_lea.vmem [#allocation8], 1216
        %v4028 = vld [vmem:[%s4027] sm:$0xf]
        %v4029 = vld [vmem:[%s4027 + $0x4] sm:$0xf]
        %v4030 = vld [vmem:[%s4027 + $0x8] sm:$0xf]
        %v4031 = vld [vmem:[%s4027 + $0xc] sm:$0xf]
        %v4032 = vld [vmem:[%s4027 + $0x10] sm:$0xf]
        %v4033 = vld [vmem:[%s4027 + $0x14] sm:$0xf]
        %v4034 = vld [vmem:[%s4027 + $0x18] sm:$0xf]
        %v4035 = vld [vmem:[%s4027 + $0x1c] sm:$0xf]
        %v4036 = vld [vmem:[%s4027 + $0x20] sm:$0xf]
        %v4037 = vld [vmem:[%s4027 + $0x24] sm:$0xf]
        %v4038 = vld [vmem:[%s4027 + $0x28] sm:$0xf]
        %v4039 = vld [vmem:[%s4027 + $0x2c] sm:$0xf]
        %v4040 = vld [vmem:[%s4027 + $0x30] sm:$0xf]
        %v4041 = vld [vmem:[%s4027 + $0x34] sm:$0xf]
        %v4042 = vld [vmem:[%s4027 + $0x38] sm:$0xf]
        %v4043 = vld [vmem:[%s4027 + $0x3c] sm:$0xf]
        %v4055 = vunpack.c.l.b16 %v4016
        %v4056 = vunpack.c.l.b16 %v4017
        %v4057 = vunpack.c.l.b16 %v4018
        %v4058 = vunpack.c.l.b16 %v4019
        %v4059 = vunpack.c.l.b16 %v4020
        %v4060 = vunpack.c.l.b16 %v4021
        %v4061 = vunpack.c.l.b16 %v4022
        %v4062 = vunpack.c.l.b16 %v4023
        %v4063 = vunpack.c.l.b16 %v4024
        %v4064 = vunpack.c.l.b16 %v4025
        %v4065 = vunpack.c.l.b16 %v4026
        %v4066 = vpack.c.b16 %v4056, %v4055
        %v4067 = vpack.c.b16 %v4058, %v4057
        %v4068 = vpack.c.b16 %v4060, %v4059
        %v4069 = vpack.c.b16 %v4062, %v4061
        %v4070 = vpack.c.b16 %v4064, %v4063
        %v4071 = vpack.c.b16 %v4065, %v4065
        %v4073 = vshrl.u32 %v4066, 16
        %v4075 = vshll.u32 %v4066, 16
        %v4077 = vrot.slane %v4075, 1
        %v4078 = vor.u32 %v4073, %v4077
        %v4080 = vshll.u32 %v4067, 16
        %v4082 = vrot.slane %v4080, 1
        %v4083 = vsel %vm442, %v4078, %v4082
        %v4084 = vshrl.u32 %v4067, 16
        %v4086 = vor.u32 %v4084, %v4082
        %v4088 = vshll.u32 %v4068, 16
        %v4090 = vrot.slane %v4088, 1
        %v4091 = vsel %vm442, %v4086, %v4090
        %v4092 = vshrl.u32 %v4068, 16
        %v4094 = vor.u32 %v4092, %v4090
        %v4096 = vshll.u32 %v4069, 16
        %v4098 = vrot.slane %v4096, 1
        %v4099 = vsel %vm442, %v4094, %v4098
        %v4100 = vshrl.u32 %v4069, 16
        %v4102 = vor.u32 %v4100, %v4098
        %v4104 = vshll.u32 %v4070, 16
        %v4106 = vrot.slane %v4104, 1
        %v4107 = vsel %vm442, %v4102, %v4106
        %v4108 = vshrl.u32 %v4070, 16
        %v4110 = vor.u32 %v4108, %v4106
        %v4112 = vshll.u32 %v4071, 16
        %v4114 = vrot.slane %v4112, 1
        %v4115 = vsel %vm442, %v4110, %v4114
        %v4137 = vunpack.c.l.b16 %v4028
        %v4138 = vunpack.c.l.b16 %v4029
        %v4139 = vunpack.c.l.b16 %v4030
        %v4140 = vunpack.c.l.b16 %v4031
        %v4141 = vunpack.c.l.b16 %v4032
        %v4142 = vunpack.c.l.b16 %v4033
        %v4143 = vunpack.c.l.b16 %v4034
        %v4144 = vunpack.c.l.b16 %v4035
        %v4145 = vunpack.c.l.b16 %v4036
        %v4146 = vunpack.c.l.b16 %v4037
        %v4147 = vunpack.c.l.b16 %v4038
        %v4148 = vunpack.c.l.b16 %v4039
        %v4149 = vunpack.c.l.b16 %v4040
        %v4150 = vunpack.c.l.b16 %v4041
        %v4151 = vunpack.c.l.b16 %v4042
        %v4152 = vunpack.c.l.b16 %v4043
        %v4153 = vpack.c.b16 %v4138, %v4137
        %v4154 = vpack.c.b16 %v4140, %v4139
        %v4155 = vpack.c.b16 %v4142, %v4141
        %v4156 = vpack.c.b16 %v4144, %v4143
        %v4157 = vpack.c.b16 %v4146, %v4145
        %v4158 = vpack.c.b16 %v4148, %v4147
        %v4159 = vpack.c.b16 %v4150, %v4149
        %v4160 = vpack.c.b16 %v4152, %v4151
        %4169 = vmatprep.subr.bf16.mxu0 0
        %4170 = vmatpush1.bf16.msra.mxu0 %v4153
        %4171 = vmatprep.subr.bf16.mxu0 0
        %4172 = vmatpush1.bf16.msra.mxu0 %v4154
        %4173 = vmatprep.subr.bf16.mxu0 0
        %4174 = vmatpush1.bf16.msra.mxu0 %v4155
        %4175 = vmatprep.subr.bf16.mxu0 0
        %4176 = vmatpush1.bf16.msra.mxu0 %v4156
        %4177 = vmatprep.subr.bf16.mxu0 0
        %4178 = vmatpush1.bf16.msra.mxu0 %v4157
        %4179 = vmatprep.subr.bf16.mxu0 0
        %4180 = vmatpush1.bf16.msra.mxu0 %v4158
        %4181 = vmatprep.subr.bf16.mxu0 0
        %4182 = vmatpush1.bf16.msra.mxu0 %v4159
        %4183 = vmatprep.subr.bf16.mxu0 0
        %4184 = vmatpush1.bf16.msra.mxu0 %v4160
        %4185 = vmatprep.subr.bf16.mxu0 0
        %4186 = vmatpush1.bf16.msra.mxu0 0
        %4187 = vmatprep.subr.bf16.mxu0 0
        %4188 = vmatpush1.bf16.msra.mxu0 0
        %4189 = vmatprep.subr.bf16.mxu0 0
        %4190 = vmatpush1.bf16.msra.mxu0 0
        %4191 = vmatprep.subr.bf16.mxu0 0
        %4192 = vmatpush1.bf16.msra.mxu0 0
        %4193 = vmatprep.subr.bf16.mxu0 0
        %4194 = vmatpush1.bf16.msra.mxu0 0
        %4195 = vmatprep.subr.bf16.mxu0 0
        %4196 = vmatpush1.bf16.msra.mxu0 0
        %4197 = vmatprep.subr.bf16.mxu0 0
        %4198 = vmatpush1.bf16.msra.mxu0 0
        %4199 = vmatprep.subr.bf16.mxu0 0
        %4200 = vmatpush1.bf16.msra.mxu0 0
        %4201 = vmatprep.mubr.bf16.mxu0 0
        %4202 = vmatmul.mubr.bf16.gmra.mrb[0].mxu0 %v4083
        %v4203 = vpop.f32.mrb[0].mxu0
        %v4204 = vadd.f32 0.0, %v4203
        %v4205 = vpop.f32.mrb[0].mxu0
        %v4206 = vpop.f32.mrb[0].mxu0
        %v4207 = vadd.f32 0.0, %v4206
        %v4208 = vpop.f32.mrb[0].mxu0
        %4209 = vmatprep.mubr.bf16.mxu0 0
        %4210 = vmatmul.mubr.bf16.gmra.mrb[0].mxu0 %v4091
        %v4211 = vpop.f32.mrb[0].mxu0
        %v4212 = vadd.f32 0.0, %v4211
        %v4213 = vpop.f32.mrb[0].mxu0
        %v4214 = vpop.f32.mrb[0].mxu0
        %v4215 = vadd.f32 0.0, %v4214
        %v4216 = vpop.f32.mrb[0].mxu0
        %4217 = vmatprep.mubr.bf16.mxu0 0
        %4218 = vmatmul.mubr.bf16.gmra.mrb[0].mxu0 %v4099
        %v4219 = vpop.f32.mrb[0].mxu0
        %v4220 = vadd.f32 0.0, %v4219
        %v4221 = vpop.f32.mrb[0].mxu0
        %v4222 = vpop.f32.mrb[0].mxu0
        %v4223 = vadd.f32 0.0, %v4222
        %v4224 = vpop.f32.mrb[0].mxu0
        %4225 = vmatprep.mubr.bf16.mxu0 0
        %4226 = vmatmul.mubr.bf16.gmra.mrb[0].mxu0 %v4107
        %v4227 = vpop.f32.mrb[0].mxu0
        %v4228 = vadd.f32 0.0, %v4227
        %v4229 = vpop.f32.mrb[0].mxu0
        %v4230 = vpop.f32.mrb[0].mxu0
        %v4231 = vadd.f32 0.0, %v4230
        %v4232 = vpop.f32.mrb[0].mxu0
        %4233 = vmatprep.mubr.bf16.mxu0 0
        %4234 = vmatmul.mubr.bf16.gmra.mrb[0].mxu0 %v4115
        %v4235 = vpop.f32.mrb[0].mxu0
        %v4236 = vadd.f32 0.0, %v4235
        %v4237 = vpop.f32.mrb[0].mxu0
        %v4238 = vpop.f32.mrb[0].mxu0
        %v4239 = vadd.f32 0.0, %v4238
        %v4240 = vpop.f32.mrb[0].mxu0
        %4241 = vdwg.mxu0
        %v4242 = vadd.f32 %v4006, %v4204
        %v4243 = vadd.f32 %v4007, %v4207
        %v4244 = vadd.f32 %v4008, %v4212
        %v4245 = vadd.f32 %v4009, %v4215
        %v4246 = vadd.f32 %v4010, %v4220
        %v4247 = vadd.f32 %v4011, %v4223
        %v4248 = vadd.f32 %v4012, %v4228
        %v4249 = vadd.f32 %v4013, %v4231
        %v4250 = vadd.f32 %v4014, %v4236
        %v4251 = vadd.f32 %v4015, %v4239
        %v4252 = vld [vmem:[%s326] sm:$0xe]
        %s4253 = scalar_lea.vmem [#allocation8], 1280
        %v4254 = vld [vmem:[%s4253] sm:$0xf]
        %v4255 = vld [vmem:[%s4253 + $0x4] sm:$0xf]
        %v4256 = vld [vmem:[%s4253 + $0x8] sm:$0xf]
        %v4257 = vld [vmem:[%s4253 + $0xc] sm:$0xf]
        %v4258 = vld [vmem:[%s4253 + $0x10] sm:$0xf]
        %v4259 = vld [vmem:[%s4253 + $0x14] sm:$0xf]
        %v4260 = vld [vmem:[%s4253 + $0x18] sm:$0xf]
        %v4261 = vld [vmem:[%s4253 + $0x1c] sm:$0xf]
        %v4262 = vld [vmem:[%s4253 + $0x20] sm:$0xf]
        %v4263 = vld [vmem:[%s4253 + $0x24] sm:$0xf]
        %v4264 = vld [vmem:[%s4253 + $0x28] sm:$0xf]
        %v4265 = vld [vmem:[%s4253 + $0x2c] sm:$0xf]
        %v4266 = vld [vmem:[%s4253 + $0x30] sm:$0xf]
        %v4267 = vld [vmem:[%s4253 + $0x34] sm:$0xf]
        %v4268 = vld [vmem:[%s4253 + $0x38] sm:$0xf]
        %v4269 = vld [vmem:[%s4253 + $0x3c] sm:$0xf]
        %v4271 = vunpack.c.l.b16 %v4252
        %v4272 = vpack.c.b16 %v4056, %v4271
        %v4273 = vrot.slane %v4272, 1
        %v4274 = vrot.slane %v4067, 1
        %v4275 = vsel %vm760, %v4273, %v4274
        %v4276 = vrot.slane %v4068, 1
        %v4277 = vsel %vm760, %v4274, %v4276
        %v4278 = vrot.slane %v4069, 1
        %v4279 = vsel %vm760, %v4276, %v4278
        %v4280 = vrot.slane %v4070, 1
        %v4281 = vsel %vm760, %v4278, %v4280
        %v4282 = vrot.slane %v4071, 1
        %v4283 = vsel %vm760, %v4280, %v4282
        %v4305 = vunpack.c.l.b16 %v4254
        %v4306 = vunpack.c.l.b16 %v4255
        %v4307 = vunpack.c.l.b16 %v4256
        %v4308 = vunpack.c.l.b16 %v4257
        %v4309 = vunpack.c.l.b16 %v4258
        %v4310 = vunpack.c.l.b16 %v4259
        %v4311 = vunpack.c.l.b16 %v4260
        %v4312 = vunpack.c.l.b16 %v4261
        %v4313 = vunpack.c.l.b16 %v4262
        %v4314 = vunpack.c.l.b16 %v4263
        %v4315 = vunpack.c.l.b16 %v4264
        %v4316 = vunpack.c.l.b16 %v4265
        %v4317 = vunpack.c.l.b16 %v4266
        %v4318 = vunpack.c.l.b16 %v4267
        %v4319 = vunpack.c.l.b16 %v4268
        %v4320 = vunpack.c.l.b16 %v4269
        %v4321 = vpack.c.b16 %v4306, %v4305
        %v4322 = vpack.c.b16 %v4308, %v4307
        %v4323 = vpack.c.b16 %v4310, %v4309
        %v4324 = vpack.c.b16 %v4312, %v4311
        %v4325 = vpack.c.b16 %v4314, %v4313
        %v4326 = vpack.c.b16 %v4316, %v4315
        %v4327 = vpack.c.b16 %v4318, %v4317
        %v4328 = vpack.c.b16 %v4320, %v4319
        %4337 = vmatprep.subr.bf16.mxu0 0
        %4338 = vmatpush1.bf16.msra.mxu0 %v4321
        %4339 = vmatprep.subr.bf16.mxu0 0
        %4340 = vmatpush1.bf16.msra.mxu0 %v4322
        %4341 = vmatprep.subr.bf16.mxu0 0
        %4342 = vmatpush1.bf16.msra.mxu0 %v4323
        %4343 = vmatprep.subr.bf16.mxu0 0
        %4344 = vmatpush1.bf16.msra.mxu0 %v4324
        %4345 = vmatprep.subr.bf16.mxu0 0
        %4346 = vmatpush1.bf16.msra.mxu0 %v4325
        %4347 = vmatprep.subr.bf16.mxu0 0
        %4348 = vmatpush1.bf16.msra.mxu0 %v4326
        %4349 = vmatprep.subr.bf16.mxu0 0
        %4350 = vmatpush1.bf16.msra.mxu0 %v4327
        %4351 = vmatprep.subr.bf16.mxu0 0
        %4352 = vmatpush1.bf16.msra.mxu0 %v4328
        %4353 = vmatprep.subr.bf16.mxu0 0
        %4354 = vmatpush1.bf16.msra.mxu0 0
        %4355 = vmatprep.subr.bf16.mxu0 0
        %4356 = vmatpush1.bf16.msra.mxu0 0
        %4357 = vmatprep.subr.bf16.mxu0 0
        %4358 = vmatpush1.bf16.msra.mxu0 0
        %4359 = vmatprep.subr.bf16.mxu0 0
        %4360 = vmatpush1.bf16.msra.mxu0 0
        %4361 = vmatprep.subr.bf16.mxu0 0
        %4362 = vmatpush1.bf16.msra.mxu0 0
        %4363 = vmatprep.subr.bf16.mxu0 0
        %4364 = vmatpush1.bf16.msra.mxu0 0
        %4365 = vmatprep.subr.bf16.mxu0 0
        %4366 = vmatpush1.bf16.msra.mxu0 0
        %4367 = vmatprep.subr.bf16.mxu0 0
        %4368 = vmatpush1.bf16.msra.mxu0 0
        %4369 = vmatprep.mubr.bf16.mxu0 0
        %4370 = vmatmul.mubr.bf16.gmra.mrb[0].mxu0 %v4275
        %v4371 = vpop.f32.mrb[0].mxu0
        %v4372 = vadd.f32 0.0, %v4371
        %v4373 = vpop.f32.mrb[0].mxu0
        %v4374 = vpop.f32.mrb[0].mxu0
        %v4375 = vadd.f32 0.0, %v4374
        %v4376 = vpop.f32.mrb[0].mxu0
        %4377 = vmatprep.mubr.bf16.mxu0 0
        %4378 = vmatmul.mubr.bf16.gmra.mrb[0].mxu0 %v4277
        %v4379 = vpop.f32.mrb[0].mxu0
        %v4380 = vadd.f32 0.0, %v4379
        %v4381 = vpop.f32.mrb[0].mxu0
        %v4382 = vpop.f32.mrb[0].mxu0
        %v4383 = vadd.f32 0.0, %v4382
        %v4384 = vpop.f32.mrb[0].mxu0
        %4385 = vmatprep.mubr.bf16.mxu0 0
        %4386 = vmatmul.mubr.bf16.gmra.mrb[0].mxu0 %v4279
        %v4387 = vpop.f32.mrb[0].mxu0
        %v4388 = vadd.f32 0.0, %v4387
        %v4389 = vpop.f32.mrb[0].mxu0
        %v4390 = vpop.f32.mrb[0].mxu0
        %v4391 = vadd.f32 0.0, %v4390
        %v4392 = vpop.f32.mrb[0].mxu0
        %4393 = vmatprep.mubr.bf16.mxu0 0
        %4394 = vmatmul.mubr.bf16.gmra.mrb[0].mxu0 %v4281
        %v4395 = vpop.f32.mrb[0].mxu0
        %v4396 = vadd.f32 0.0, %v4395
        %v4397 = vpop.f32.mrb[0].mxu0
        %v4398 = vpop.f32.mrb[0].mxu0
        %v4399 = vadd.f32 0.0, %v4398
        %v4400 = vpop.f32.mrb[0].mxu0
        %4401 = vmatprep.mubr.bf16.mxu0 0
        %4402 = vmatmul.mubr.bf16.gmra.mrb[0].mxu0 %v4283
        %v4403 = vpop.f32.mrb[0].mxu0
        %v4404 = vadd.f32 0.0, %v4403
        %v4405 = vpop.f32.mrb[0].mxu0
        %v4406 = vpop.f32.mrb[0].mxu0
        %v4407 = vadd.f32 0.0, %v4406
        %v4408 = vpop.f32.mrb[0].mxu0
        %4409 = vdwg.mxu0
        %v4410 = vadd.f32 %v4242, %v4372
        %v4411 = vadd.f32 %v4243, %v4375
        %v4412 = vadd.f32 %v4244, %v4380
        %v4413 = vadd.f32 %v4245, %v4383
        %v4414 = vadd.f32 %v4246, %v4388
        %v4415 = vadd.f32 %v4247, %v4391
        %v4416 = vadd.f32 %v4248, %v4396
        %v4417 = vadd.f32 %v4249, %v4399
        %v4418 = vadd.f32 %v4250, %v4404
        %v4419 = vadd.f32 %v4251, %v4407
        %v4420 = vld [vmem:[%s326 + $0x4] sm:$0xe]
        %v4421 = vld [vmem:[%s326 + $0x8] sm:$0xf]
        %v4422 = vld [vmem:[%s326 + $0xc] sm:$0xf]
        %v4423 = vld [vmem:[%s326 + $0x10] sm:$0xf]
        %v4424 = vld [vmem:[%s326 + $0x14] sm:$0xf]
        %v4425 = vld [vmem:[%s326 + $0x18] sm:$0xf]
        %v4426 = vld [vmem:[%s326 + $0x1c] sm:$0xf]
        %v4427 = vld [vmem:[%s326 + $0x20] sm:$0xf]
        %v4428 = vld [vmem:[%s326 + $0x24] sm:$0xf]
        %v4429 = vld [vmem:[%s326 + $0x28] sm:$0xf]
        %v4430 = vld [vmem:[%s326 + $0x2c] sm:$0x1]
        %s4431 = scalar_lea.vmem [#allocation8], 1344
        %v4432 = vld [vmem:[%s4431] sm:$0xf]
        %v4433 = vld [vmem:[%s4431 + $0x4] sm:$0xf]
        %v4434 = vld [vmem:[%s4431 + $0x8] sm:$0xf]
        %v4435 = vld [vmem:[%s4431 + $0xc] sm:$0xf]
        %v4436 = vld [vmem:[%s4431 + $0x10] sm:$0xf]
        %v4437 = vld [vmem:[%s4431 + $0x14] sm:$0xf]
        %v4438 = vld [vmem:[%s4431 + $0x18] sm:$0xf]
        %v4439 = vld [vmem:[%s4431 + $0x1c] sm:$0xf]
        %v4440 = vld [vmem:[%s4431 + $0x20] sm:$0xf]
        %v4441 = vld [vmem:[%s4431 + $0x24] sm:$0xf]
        %v4442 = vld [vmem:[%s4431 + $0x28] sm:$0xf]
        %v4443 = vld [vmem:[%s4431 + $0x2c] sm:$0xf]
        %v4444 = vld [vmem:[%s4431 + $0x30] sm:$0xf]
        %v4445 = vld [vmem:[%s4431 + $0x34] sm:$0xf]
        %v4446 = vld [vmem:[%s4431 + $0x38] sm:$0xf]
        %v4447 = vld [vmem:[%s4431 + $0x3c] sm:$0xf]
        %v4459 = vunpack.c.l.b16 %v4420
        %v4460 = vunpack.c.l.b16 %v4421
        %v4461 = vunpack.c.l.b16 %v4422
        %v4462 = vunpack.c.l.b16 %v4423
        %v4463 = vunpack.c.l.b16 %v4424
        %v4464 = vunpack.c.l.b16 %v4425
        %v4465 = vunpack.c.l.b16 %v4426
        %v4466 = vunpack.c.l.b16 %v4427
        %v4467 = vunpack.c.l.b16 %v4428
        %v4468 = vunpack.c.l.b16 %v4429
        %v4469 = vunpack.c.l.b16 %v4430
        %v4470 = vpack.c.b16 %v4460, %v4459
        %v4471 = vpack.c.b16 %v4462, %v4461
        %v4472 = vpack.c.b16 %v4464, %v4463
        %v4473 = vpack.c.b16 %v4466, %v4465
        %v4474 = vpack.c.b16 %v4468, %v4467
        %v4475 = vpack.c.b16 %v4469, %v4469
        %v4476 = vrot.slane %v4470, 1
        %v4477 = vrot.slane %v4471, 1
        %v4478 = vsel %vm760, %v4476, %v4477
        %v4479 = vrot.slane %v4472, 1
        %v4480 = vsel %vm760, %v4477, %v4479
        %v4481 = vrot.slane %v4473, 1
        %v4482 = vsel %vm760, %v4479, %v4481
        %v4483 = vrot.slane %v4474, 1
        %v4484 = vsel %vm760, %v4481, %v4483
        %v4485 = vrot.slane %v4475, 1
        %v4486 = vsel %vm760, %v4483, %v4485
        %v4508 = vunpack.c.l.b16 %v4432
        %v4509 = vunpack.c.l.b16 %v4433
        %v4510 = vunpack.c.l.b16 %v4434
        %v4511 = vunpack.c.l.b16 %v4435
        %v4512 = vunpack.c.l.b16 %v4436
        %v4513 = vunpack.c.l.b16 %v4437
        %v4514 = vunpack.c.l.b16 %v4438
        %v4515 = vunpack.c.l.b16 %v4439
        %v4516 = vunpack.c.l.b16 %v4440
        %v4517 = vunpack.c.l.b16 %v4441
        %v4518 = vunpack.c.l.b16 %v4442
        %v4519 = vunpack.c.l.b16 %v4443
        %v4520 = vunpack.c.l.b16 %v4444
        %v4521 = vunpack.c.l.b16 %v4445
        %v4522 = vunpack.c.l.b16 %v4446
        %v4523 = vunpack.c.l.b16 %v4447
        %v4524 = vpack.c.b16 %v4509, %v4508
        %v4525 = vpack.c.b16 %v4511, %v4510
        %v4526 = vpack.c.b16 %v4513, %v4512
        %v4527 = vpack.c.b16 %v4515, %v4514
        %v4528 = vpack.c.b16 %v4517, %v4516
        %v4529 = vpack.c.b16 %v4519, %v4518
        %v4530 = vpack.c.b16 %v4521, %v4520
        %v4531 = vpack.c.b16 %v4523, %v4522
        %4540 = vmatprep.subr.bf16.mxu0 0
        %4541 = vmatpush1.bf16.msra.mxu0 %v4524
        %4542 = vmatprep.subr.bf16.mxu0 0
        %4543 = vmatpush1.bf16.msra.mxu0 %v4525
        %4544 = vmatprep.subr.bf16.mxu0 0
        %4545 = vmatpush1.bf16.msra.mxu0 %v4526
        %4546 = vmatprep.subr.bf16.mxu0 0
        %4547 = vmatpush1.bf16.msra.mxu0 %v4527
        %4548 = vmatprep.subr.bf16.mxu0 0
        %4549 = vmatpush1.bf16.msra.mxu0 %v4528
        %4550 = vmatprep.subr.bf16.mxu0 0
        %4551 = vmatpush1.bf16.msra.mxu0 %v4529
        %4552 = vmatprep.subr.bf16.mxu0 0
        %4553 = vmatpush1.bf16.msra.mxu0 %v4530
        %4554 = vmatprep.subr.bf16.mxu0 0
        %4555 = vmatpush1.bf16.msra.mxu0 %v4531
        %4556 = vmatprep.subr.bf16.mxu0 0
        %4557 = vmatpush1.bf16.msra.mxu0 0
        %4558 = vmatprep.subr.bf16.mxu0 0
        %4559 = vmatpush1.bf16.msra.mxu0 0
        %4560 = vmatprep.subr.bf16.mxu0 0
        %4561 = vmatpush1.bf16.msra.mxu0 0
        %4562 = vmatprep.subr.bf16.mxu0 0
        %4563 = vmatpush1.bf16.msra.mxu0 0
        %4564 = vmatprep.subr.bf16.mxu0 0
        %4565 = vmatpush1.bf16.msra.mxu0 0
        %4566 = vmatprep.subr.bf16.mxu0 0
        %4567 = vmatpush1.bf16.msra.mxu0 0
        %4568 = vmatprep.subr.bf16.mxu0 0
        %4569 = vmatpush1.bf16.msra.mxu0 0
        %4570 = vmatprep.subr.bf16.mxu0 0
        %4571 = vmatpush1.bf16.msra.mxu0 0
        %4572 = vmatprep.mubr.bf16.mxu0 0
        %4573 = vmatmul.mubr.bf16.gmra.mrb[0].mxu0 %v4478
        %v4574 = vpop.f32.mrb[0].mxu0
        %v4575 = vadd.f32 0.0, %v4574
        %v4576 = vpop.f32.mrb[0].mxu0
        %v4577 = vpop.f32.mrb[0].mxu0
        %v4578 = vadd.f32 0.0, %v4577
        %v4579 = vpop.f32.mrb[0].mxu0
        %4580 = vmatprep.mubr.bf16.mxu0 0
        %4581 = vmatmul.mubr.bf16.gmra.mrb[0].mxu0 %v4480
        %v4582 = vpop.f32.mrb[0].mxu0
        %v4583 = vadd.f32 0.0, %v4582
        %v4584 = vpop.f32.mrb[0].mxu0
        %v4585 = vpop.f32.mrb[0].mxu0
        %v4586 = vadd.f32 0.0, %v4585
        %v4587 = vpop.f32.mrb[0].mxu0
        %4588 = vmatprep.mubr.bf16.mxu0 0
        %4589 = vmatmul.mubr.bf16.gmra.mrb[0].mxu0 %v4482
        %v4590 = vpop.f32.mrb[0].mxu0
        %v4591 = vadd.f32 0.0, %v4590
        %v4592 = vpop.f32.mrb[0].mxu0
        %v4593 = vpop.f32.mrb[0].mxu0
        %v4594 = vadd.f32 0.0, %v4593
        %v4595 = vpop.f32.mrb[0].mxu0
        %4596 = vmatprep.mubr.bf16.mxu0 0
        %4597 = vmatmul.mubr.bf16.gmra.mrb[0].mxu0 %v4484
        %v4598 = vpop.f32.mrb[0].mxu0
        %v4599 = vadd.f32 0.0, %v4598
        %v4600 = vpop.f32.mrb[0].mxu0
        %v4601 = vpop.f32.mrb[0].mxu0
        %v4602 = vadd.f32 0.0, %v4601
        %v4603 = vpop.f32.mrb[0].mxu0
        %4604 = vmatprep.mubr.bf16.mxu0 0
        %4605 = vmatmul.mubr.bf16.gmra.mrb[0].mxu0 %v4486
        %v4606 = vpop.f32.mrb[0].mxu0
        %v4607 = vadd.f32 0.0, %v4606
        %v4608 = vpop.f32.mrb[0].mxu0
        %v4609 = vpop.f32.mrb[0].mxu0
        %v4610 = vadd.f32 0.0, %v4609
        %v4611 = vpop.f32.mrb[0].mxu0
        %4612 = vdwg.mxu0
        %v4613 = vadd.f32 %v4410, %v4575
        %v4614 = vadd.f32 %v4411, %v4578
        %v4615 = vadd.f32 %v4412, %v4583
        %v4616 = vadd.f32 %v4413, %v4586
        %v4617 = vadd.f32 %v4414, %v4591
        %v4618 = vadd.f32 %v4415, %v4594
        %v4619 = vadd.f32 %v4416, %v4599
        %v4620 = vadd.f32 %v4417, %v4602
        %v4621 = vadd.f32 %v4418, %v4607
        %v4622 = vadd.f32 %v4419, %v4610
        %v4623 = vld [vmem:[%s326 + $0x2c] sm:$0x3]
        %s4624 = scalar_lea.vmem [#allocation8], 1408
        %v4625 = vld [vmem:[%s4624] sm:$0xf]
        %v4626 = vld [vmem:[%s4624 + $0x4] sm:$0xf]
        %v4627 = vld [vmem:[%s4624 + $0x8] sm:$0xf]
        %v4628 = vld [vmem:[%s4624 + $0xc] sm:$0xf]
        %v4629 = vld [vmem:[%s4624 + $0x10] sm:$0xf]
        %v4630 = vld [vmem:[%s4624 + $0x14] sm:$0xf]
        %v4631 = vld [vmem:[%s4624 + $0x18] sm:$0xf]
        %v4632 = vld [vmem:[%s4624 + $0x1c] sm:$0xf]
        %v4633 = vld [vmem:[%s4624 + $0x20] sm:$0xf]
        %v4634 = vld [vmem:[%s4624 + $0x24] sm:$0xf]
        %v4635 = vld [vmem:[%s4624 + $0x28] sm:$0xf]
        %v4636 = vld [vmem:[%s4624 + $0x2c] sm:$0xf]
        %v4637 = vld [vmem:[%s4624 + $0x30] sm:$0xf]
        %v4638 = vld [vmem:[%s4624 + $0x34] sm:$0xf]
        %v4639 = vld [vmem:[%s4624 + $0x38] sm:$0xf]
        %v4640 = vld [vmem:[%s4624 + $0x3c] sm:$0xf]
        %v4642 = vunpack.c.l.b16 %v4623
        %v4643 = vpack.c.b16 %v4642, %v4642
        %v4645 = vshrl.u32 %v4470, 16
        %v4647 = vrot.slane %v4645, 1
        %v4648 = vshll.u32 %v4470, 16
        %v4650 = vrot.slane %v4648, 2
        %v4651 = vor.u32 %v4647, %v4650
        %v4653 = vshrl.u32 %v4471, 16
        %v4655 = vrot.slane %v4653, 1
        %v4656 = vshll.u32 %v4471, 16
        %v4658 = vrot.slane %v4656, 2
        %v4659 = vor.u32 %v4655, %v4658
        %v4660 = vsel %vm1132, %v4651, %v4659
        %v4662 = vshrl.u32 %v4472, 16
        %v4664 = vrot.slane %v4662, 1
        %v4665 = vshll.u32 %v4472, 16
        %v4667 = vrot.slane %v4665, 2
        %v4668 = vor.u32 %v4664, %v4667
        %v4669 = vsel %vm1132, %v4659, %v4668
        %v4671 = vshrl.u32 %v4473, 16
        %v4673 = vrot.slane %v4671, 1
        %v4674 = vshll.u32 %v4473, 16
        %v4676 = vrot.slane %v4674, 2
        %v4677 = vor.u32 %v4673, %v4676
        %v4678 = vsel %vm1132, %v4668, %v4677
        %v4680 = vshrl.u32 %v4474, 16
        %v4682 = vrot.slane %v4680, 1
        %v4683 = vshll.u32 %v4474, 16
        %v4685 = vrot.slane %v4683, 2
        %v4686 = vor.u32 %v4682, %v4685
        %v4687 = vsel %vm1132, %v4677, %v4686
        %v4689 = vshrl.u32 %v4643, 16
        %v4691 = vrot.slane %v4689, 1
        %v4692 = vshll.u32 %v4643, 16
        %v4694 = vrot.slane %v4692, 2
        %v4695 = vor.u32 %v4691, %v4694
        %v4696 = vsel %vm1132, %v4686, %v4695
        %v4718 = vunpack.c.l.b16 %v4625
        %v4719 = vunpack.c.l.b16 %v4626
        %v4720 = vunpack.c.l.b16 %v4627
        %v4721 = vunpack.c.l.b16 %v4628
        %v4722 = vunpack.c.l.b16 %v4629
        %v4723 = vunpack.c.l.b16 %v4630
        %v4724 = vunpack.c.l.b16 %v4631
        %v4725 = vunpack.c.l.b16 %v4632
        %v4726 = vunpack.c.l.b16 %v4633
        %v4727 = vunpack.c.l.b16 %v4634
        %v4728 = vunpack.c.l.b16 %v4635
        %v4729 = vunpack.c.l.b16 %v4636
        %v4730 = vunpack.c.l.b16 %v4637
        %v4731 = vunpack.c.l.b16 %v4638
        %v4732 = vunpack.c.l.b16 %v4639
        %v4733 = vunpack.c.l.b16 %v4640
        %v4734 = vpack.c.b16 %v4719, %v4718
        %v4735 = vpack.c.b16 %v4721, %v4720
        %v4736 = vpack.c.b16 %v4723, %v4722
        %v4737 = vpack.c.b16 %v4725, %v4724
        %v4738 = vpack.c.b16 %v4727, %v4726
        %v4739 = vpack.c.b16 %v4729, %v4728
        %v4740 = vpack.c.b16 %v4731, %v4730
        %v4741 = vpack.c.b16 %v4733, %v4732
        %4750 = vmatprep.subr.bf16.mxu0 0
        %4751 = vmatpush1.bf16.msra.mxu0 %v4734
        %4752 = vmatprep.subr.bf16.mxu0 0
        %4753 = vmatpush1.bf16.msra.mxu0 %v4735
        %4754 = vmatprep.subr.bf16.mxu0 0
        %4755 = vmatpush1.bf16.msra.mxu0 %v4736
        %4756 = vmatprep.subr.bf16.mxu0 0
        %4757 = vmatpush1.bf16.msra.mxu0 %v4737
        %4758 = vmatprep.subr.bf16.mxu0 0
        %4759 = vmatpush1.bf16.msra.mxu0 %v4738
        %4760 = vmatprep.subr.bf16.mxu0 0
        %4761 = vmatpush1.bf16.msra.mxu0 %v4739
        %4762 = vmatprep.subr.bf16.mxu0 0
        %4763 = vmatpush1.bf16.msra.mxu0 %v4740
        %4764 = vmatprep.subr.bf16.mxu0 0
        %4765 = vmatpush1.bf16.msra.mxu0 %v4741
        %4766 = vmatprep.subr.bf16.mxu0 0
        %4767 = vmatpush1.bf16.msra.mxu0 0
        %4768 = vmatprep.subr.bf16.mxu0 0
        %4769 = vmatpush1.bf16.msra.mxu0 0
        %4770 = vmatprep.subr.bf16.mxu0 0
        %4771 = vmatpush1.bf16.msra.mxu0 0
        %4772 = vmatprep.subr.bf16.mxu0 0
        %4773 = vmatpush1.bf16.msra.mxu0 0
        %4774 = vmatprep.subr.bf16.mxu0 0
        %4775 = vmatpush1.bf16.msra.mxu0 0
        %4776 = vmatprep.subr.bf16.mxu0 0
        %4777 = vmatpush1.bf16.msra.mxu0 0
        %4778 = vmatprep.subr.bf16.mxu0 0
        %4779 = vmatpush1.bf16.msra.mxu0 0
        %4780 = vmatprep.subr.bf16.mxu0 0
        %4781 = vmatpush1.bf16.msra.mxu0 0
        %4782 = vmatprep.mubr.bf16.mxu0 0
        %4783 = vmatmul.mubr.bf16.gmra.mrb[0].mxu0 %v4660
        %v4784 = vpop.f32.mrb[0].mxu0
        %v4785 = vadd.f32 0.0, %v4784
        %v4786 = vpop.f32.mrb[0].mxu0
        %v4787 = vpop.f32.mrb[0].mxu0
        %v4788 = vadd.f32 0.0, %v4787
        %v4789 = vpop.f32.mrb[0].mxu0
        %4790 = vmatprep.mubr.bf16.mxu0 0
        %4791 = vmatmul.mubr.bf16.gmra.mrb[0].mxu0 %v4669
        %v4792 = vpop.f32.mrb[0].mxu0
        %v4793 = vadd.f32 0.0, %v4792
        %v4794 = vpop.f32.mrb[0].mxu0
        %v4795 = vpop.f32.mrb[0].mxu0
        %v4796 = vadd.f32 0.0, %v4795
        %v4797 = vpop.f32.mrb[0].mxu0
        %4798 = vmatprep.mubr.bf16.mxu0 0
        %4799 = vmatmul.mubr.bf16.gmra.mrb[0].mxu0 %v4678
        %v4800 = vpop.f32.mrb[0].mxu0
        %v4801 = vadd.f32 0.0, %v4800
        %v4802 = vpop.f32.mrb[0].mxu0
        %v4803 = vpop.f32.mrb[0].mxu0
        %v4804 = vadd.f32 0.0, %v4803
        %v4805 = vpop.f32.mrb[0].mxu0
        %4806 = vmatprep.mubr.bf16.mxu0 0
        %4807 = vmatmul.mubr.bf16.gmra.mrb[0].mxu0 %v4687
        %v4808 = vpop.f32.mrb[0].mxu0
        %v4809 = vadd.f32 0.0, %v4808
        %v4810 = vpop.f32.mrb[0].mxu0
        %v4811 = vpop.f32.mrb[0].mxu0
        %v4812 = vadd.f32 0.0, %v4811
        %v4813 = vpop.f32.mrb[0].mxu0
        %4814 = vmatprep.mubr.bf16.mxu0 0
        %4815 = vmatmul.mubr.bf16.gmra.mrb[0].mxu0 %v4696
        %v4816 = vpop.f32.mrb[0].mxu0
        %v4817 = vadd.f32 0.0, %v4816
        %v4818 = vpop.f32.mrb[0].mxu0
        %v4819 = vpop.f32.mrb[0].mxu0
        %v4820 = vadd.f32 0.0, %v4819
        %v4821 = vpop.f32.mrb[0].mxu0
        %4822 = vdwg.mxu0
        %v4823 = vadd.f32 %v4613, %v4785
        %v4824 = vadd.f32 %v4614, %v4788
        %v4825 = vadd.f32 %v4615, %v4793
        %v4826 = vadd.f32 %v4616, %v4796
        %v4827 = vadd.f32 %v4617, %v4801
        %v4828 = vadd.f32 %v4618, %v4804
        %v4829 = vadd.f32 %v4619, %v4809
        %v4830 = vadd.f32 %v4620, %v4812
        %v4831 = vadd.f32 %v4621, %v4817
        %v4832 = vadd.f32 %v4622, %v4820
        %v4833 = vld [vmem:[%s326 + $0x4] sm:$0xc]
        %s4834 = scalar_lea.vmem [#allocation8], 1472
        %v4835 = vld [vmem:[%s4834] sm:$0xf]
        %v4836 = vld [vmem:[%s4834 + $0x4] sm:$0xf]
        %v4837 = vld [vmem:[%s4834 + $0x8] sm:$0xf]
        %v4838 = vld [vmem:[%s4834 + $0xc] sm:$0xf]
        %v4839 = vld [vmem:[%s4834 + $0x10] sm:$0xf]
        %v4840 = vld [vmem:[%s4834 + $0x14] sm:$0xf]
        %v4841 = vld [vmem:[%s4834 + $0x18] sm:$0xf]
        %v4842 = vld [vmem:[%s4834 + $0x1c] sm:$0xf]
        %v4843 = vld [vmem:[%s4834 + $0x20] sm:$0xf]
        %v4844 = vld [vmem:[%s4834 + $0x24] sm:$0xf]
        %v4845 = vld [vmem:[%s4834 + $0x28] sm:$0xf]
        %v4846 = vld [vmem:[%s4834 + $0x2c] sm:$0xf]
        %v4847 = vld [vmem:[%s4834 + $0x30] sm:$0xf]
        %v4848 = vld [vmem:[%s4834 + $0x34] sm:$0xf]
        %v4849 = vld [vmem:[%s4834 + $0x38] sm:$0xf]
        %v4850 = vld [vmem:[%s4834 + $0x3c] sm:$0xf]
        %v4852 = vunpack.c.l.b16 %v4833
        %v4853 = vpack.c.b16 %v4460, %v4852
        %v4854 = vrot.slane %v4853, 2
        %v4855 = vrot.slane %v4471, 2
        %v4856 = vsel %vm1343, %v4854, %v4855
        %v4857 = vrot.slane %v4472, 2
        %v4858 = vsel %vm1343, %v4855, %v4857
        %v4859 = vrot.slane %v4473, 2
        %v4860 = vsel %vm1343, %v4857, %v4859
        %v4861 = vrot.slane %v4474, 2
        %v4862 = vsel %vm1343, %v4859, %v4861
        %v4863 = vrot.slane %v4643, 2
        %v4864 = vsel %vm1343, %v4861, %v4863
        %v4886 = vunpack.c.l.b16 %v4835
        %v4887 = vunpack.c.l.b16 %v4836
        %v4888 = vunpack.c.l.b16 %v4837
        %v4889 = vunpack.c.l.b16 %v4838
        %v4890 = vunpack.c.l.b16 %v4839
        %v4891 = vunpack.c.l.b16 %v4840
        %v4892 = vunpack.c.l.b16 %v4841
        %v4893 = vunpack.c.l.b16 %v4842
        %v4894 = vunpack.c.l.b16 %v4843
        %v4895 = vunpack.c.l.b16 %v4844
        %v4896 = vunpack.c.l.b16 %v4845
        %v4897 = vunpack.c.l.b16 %v4846
        %v4898 = vunpack.c.l.b16 %v4847
        %v4899 = vunpack.c.l.b16 %v4848
        %v4900 = vunpack.c.l.b16 %v4849
        %v4901 = vunpack.c.l.b16 %v4850
        %v4902 = vpack.c.b16 %v4887, %v4886
        %v4903 = vpack.c.b16 %v4889, %v4888
        %v4904 = vpack.c.b16 %v4891, %v4890
        %v4905 = vpack.c.b16 %v4893, %v4892
        %v4906 = vpack.c.b16 %v4895, %v4894
        %v4907 = vpack.c.b16 %v4897, %v4896
        %v4908 = vpack.c.b16 %v4899, %v4898
        %v4909 = vpack.c.b16 %v4901, %v4900
        %4918 = vmatprep.subr.bf16.mxu0 0
        %4919 = vmatpush1.bf16.msra.mxu0 %v4902
        %4920 = vmatprep.subr.bf16.mxu0 0
        %4921 = vmatpush1.bf16.msra.mxu0 %v4903
        %4922 = vmatprep.subr.bf16.mxu0 0
        %4923 = vmatpush1.bf16.msra.mxu0 %v4904
        %4924 = vmatprep.subr.bf16.mxu0 0
        %4925 = vmatpush1.bf16.msra.mxu0 %v4905
        %4926 = vmatprep.subr.bf16.mxu0 0
        %4927 = vmatpush1.bf16.msra.mxu0 %v4906
        %4928 = vmatprep.subr.bf16.mxu0 0
        %4929 = vmatpush1.bf16.msra.mxu0 %v4907
        %4930 = vmatprep.subr.bf16.mxu0 0
        %4931 = vmatpush1.bf16.msra.mxu0 %v4908
        %4932 = vmatprep.subr.bf16.mxu0 0
        %4933 = vmatpush1.bf16.msra.mxu0 %v4909
        %4934 = vmatprep.subr.bf16.mxu0 0
        %4935 = vmatpush1.bf16.msra.mxu0 0
        %4936 = vmatprep.subr.bf16.mxu0 0
        %4937 = vmatpush1.bf16.msra.mxu0 0
        %4938 = vmatprep.subr.bf16.mxu0 0
        %4939 = vmatpush1.bf16.msra.mxu0 0
        %4940 = vmatprep.subr.bf16.mxu0 0
        %4941 = vmatpush1.bf16.msra.mxu0 0
        %4942 = vmatprep.subr.bf16.mxu0 0
        %4943 = vmatpush1.bf16.msra.mxu0 0
        %4944 = vmatprep.subr.bf16.mxu0 0
        %4945 = vmatpush1.bf16.msra.mxu0 0
        %4946 = vmatprep.subr.bf16.mxu0 0
        %4947 = vmatpush1.bf16.msra.mxu0 0
        %4948 = vmatprep.subr.bf16.mxu0 0
        %4949 = vmatpush1.bf16.msra.mxu0 0
        %4950 = vmatprep.mubr.bf16.mxu0 0
        %4951 = vmatmul.mubr.bf16.gmra.mrb[0].mxu0 %v4856
        %v4952 = vpop.f32.mrb[0].mxu0
        %v4953 = vadd.f32 0.0, %v4952
        %v4954 = vpop.f32.mrb[0].mxu0
        %v4955 = vpop.f32.mrb[0].mxu0
        %v4956 = vadd.f32 0.0, %v4955
        %v4957 = vpop.f32.mrb[0].mxu0
        %4958 = vmatprep.mubr.bf16.mxu0 0
        %4959 = vmatmul.mubr.bf16.gmra.mrb[0].mxu0 %v4858
        %v4960 = vpop.f32.mrb[0].mxu0
        %v4961 = vadd.f32 0.0, %v4960
        %v4962 = vpop.f32.mrb[0].mxu0
        %v4963 = vpop.f32.mrb[0].mxu0
        %v4964 = vadd.f32 0.0, %v4963
        %v4965 = vpop.f32.mrb[0].mxu0
        %4966 = vmatprep.mubr.bf16.mxu0 0
        %4967 = vmatmul.mubr.bf16.gmra.mrb[0].mxu0 %v4860
        %v4968 = vpop.f32.mrb[0].mxu0
        %v4969 = vadd.f32 0.0, %v4968
        %v4970 = vpop.f32.mrb[0].mxu0
        %v4971 = vpop.f32.mrb[0].mxu0
        %v4972 = vadd.f32 0.0, %v4971
        %v4973 = vpop.f32.mrb[0].mxu0
        %4974 = vmatprep.mubr.bf16.mxu0 0
        %4975 = vmatmul.mubr.bf16.gmra.mrb[0].mxu0 %v4862
        %v4976 = vpop.f32.mrb[0].mxu0
        %v4977 = vadd.f32 0.0, %v4976
        %v4978 = vpop.f32.mrb[0].mxu0
        %v4979 = vpop.f32.mrb[0].mxu0
        %v4980 = vadd.f32 0.0, %v4979
        %v4981 = vpop.f32.mrb[0].mxu0
        %4982 = vmatprep.mubr.bf16.mxu0 0
        %4983 = vmatmul.mubr.bf16.gmra.mrb[0].mxu0 %v4864
        %v4984 = vpop.f32.mrb[0].mxu0
        %v4985 = vadd.f32 0.0, %v4984
        %v4986 = vpop.f32.mrb[0].mxu0
        %v4987 = vpop.f32.mrb[0].mxu0
        %v4988 = vadd.f32 0.0, %v4987
        %v4989 = vpop.f32.mrb[0].mxu0
        %4990 = vdwg.mxu0
        %v4991 = vadd.f32 %v4823, %v4953
        %v4992 = vadd.f32 %v4824, %v4956
        %v4993 = vadd.f32 %v4825, %v4961
        %v4994 = vadd.f32 %v4826, %v4964
        %v4995 = vadd.f32 %v4827, %v4969
        %v4996 = vadd.f32 %v4828, %v4972
        %v4997 = vadd.f32 %v4829, %v4977
        %v4998 = vadd.f32 %v4830, %v4980
        %v4999 = vadd.f32 %v4831, %v4985
        %v5000 = vadd.f32 %v4832, %v4988
        %v5001 = vld [vmem:[%s326 + $0x8] sm:$0xc]
        %v5002 = vld [vmem:[%s326 + $0xc] sm:$0xf]
        %v5003 = vld [vmem:[%s326 + $0x10] sm:$0xf]
        %v5004 = vld [vmem:[%s326 + $0x14] sm:$0xf]
        %v5005 = vld [vmem:[%s326 + $0x18] sm:$0xf]
        %v5006 = vld [vmem:[%s326 + $0x1c] sm:$0xf]
        %v5007 = vld [vmem:[%s326 + $0x20] sm:$0xf]
        %v5008 = vld [vmem:[%s326 + $0x24] sm:$0xf]
        %v5009 = vld [vmem:[%s326 + $0x28] sm:$0xf]
        %v5010 = vld [vmem:[%s326 + $0x2c] sm:$0xf]
        %v5011 = vld [vmem:[%s326 + $0x30] sm:$0x3]
        %s5012 = scalar_lea.vmem [#allocation8], 1536
        %v5013 = vld [vmem:[%s5012] sm:$0xf]
        %v5014 = vld [vmem:[%s5012 + $0x4] sm:$0xf]
        %v5015 = vld [vmem:[%s5012 + $0x8] sm:$0xf]
        %v5016 = vld [vmem:[%s5012 + $0xc] sm:$0xf]
        %v5017 = vld [vmem:[%s5012 + $0x10] sm:$0xf]
        %v5018 = vld [vmem:[%s5012 + $0x14] sm:$0xf]
        %v5019 = vld [vmem:[%s5012 + $0x18] sm:$0xf]
        %v5020 = vld [vmem:[%s5012 + $0x1c] sm:$0xf]
        %v5021 = vld [vmem:[%s5012 + $0x20] sm:$0xf]
        %v5022 = vld [vmem:[%s5012 + $0x24] sm:$0xf]
        %v5023 = vld [vmem:[%s5012 + $0x28] sm:$0xf]
        %v5024 = vld [vmem:[%s5012 + $0x2c] sm:$0xf]
        %v5025 = vld [vmem:[%s5012 + $0x30] sm:$0xf]
        %v5026 = vld [vmem:[%s5012 + $0x34] sm:$0xf]
        %v5027 = vld [vmem:[%s5012 + $0x38] sm:$0xf]
        %v5028 = vld [vmem:[%s5012 + $0x3c] sm:$0xf]
        %v5040 = vunpack.c.l.b16 %v5001
        %v5041 = vunpack.c.l.b16 %v5002
        %v5042 = vunpack.c.l.b16 %v5003
        %v5043 = vunpack.c.l.b16 %v5004
        %v5044 = vunpack.c.l.b16 %v5005
        %v5045 = vunpack.c.l.b16 %v5006
        %v5046 = vunpack.c.l.b16 %v5007
        %v5047 = vunpack.c.l.b16 %v5008
        %v5048 = vunpack.c.l.b16 %v5009
        %v5049 = vunpack.c.l.b16 %v5010
        %v5050 = vunpack.c.l.b16 %v5011
        %v5051 = vpack.c.b16 %v5041, %v5040
        %v5052 = vpack.c.b16 %v5043, %v5042
        %v5053 = vpack.c.b16 %v5045, %v5044
        %v5054 = vpack.c.b16 %v5047, %v5046
        %v5055 = vpack.c.b16 %v5049, %v5048
        %v5056 = vpack.c.b16 %v5050, %v5050
        %v5057 = vrot.slane %v5051, 2
        %v5058 = vrot.slane %v5052, 2
        %v5059 = vsel %vm1343, %v5057, %v5058
        %v5060 = vrot.slane %v5053, 2
        %v5061 = vsel %vm1343, %v5058, %v5060
        %v5062 = vrot.slane %v5054, 2
        %v5063 = vsel %vm1343, %v5060, %v5062
        %v5064 = vrot.slane %v5055, 2
        %v5065 = vsel %vm1343, %v5062, %v5064
        %v5066 = vrot.slane %v5056, 2
        %v5067 = vsel %vm1343, %v5064, %v5066
        %v5089 = vunpack.c.l.b16 %v5013
        %v5090 = vunpack.c.l.b16 %v5014
        %v5091 = vunpack.c.l.b16 %v5015
        %v5092 = vunpack.c.l.b16 %v5016
        %v5093 = vunpack.c.l.b16 %v5017
        %v5094 = vunpack.c.l.b16 %v5018
        %v5095 = vunpack.c.l.b16 %v5019
        %v5096 = vunpack.c.l.b16 %v5020
        %v5097 = vunpack.c.l.b16 %v5021
        %v5098 = vunpack.c.l.b16 %v5022
        %v5099 = vunpack.c.l.b16 %v5023
        %v5100 = vunpack.c.l.b16 %v5024
        %v5101 = vunpack.c.l.b16 %v5025
        %v5102 = vunpack.c.l.b16 %v5026
        %v5103 = vunpack.c.l.b16 %v5027
        %v5104 = vunpack.c.l.b16 %v5028
        %v5105 = vpack.c.b16 %v5090, %v5089
        %v5106 = vpack.c.b16 %v5092, %v5091
        %v5107 = vpack.c.b16 %v5094, %v5093
        %v5108 = vpack.c.b16 %v5096, %v5095
        %v5109 = vpack.c.b16 %v5098, %v5097
        %v5110 = vpack.c.b16 %v5100, %v5099
        %v5111 = vpack.c.b16 %v5102, %v5101
        %v5112 = vpack.c.b16 %v5104, %v5103
        %5121 = vmatprep.subr.bf16.mxu0 0
        %5122 = vmatpush1.bf16.msra.mxu0 %v5105
        %5123 = vmatprep.subr.bf16.mxu0 0
        %5124 = vmatpush1.bf16.msra.mxu0 %v5106
        %5125 = vmatprep.subr.bf16.mxu0 0
        %5126 = vmatpush1.bf16.msra.mxu0 %v5107
        %5127 = vmatprep.subr.bf16.mxu0 0
        %5128 = vmatpush1.bf16.msra.mxu0 %v5108
        %5129 = vmatprep.subr.bf16.mxu0 0
        %5130 = vmatpush1.bf16.msra.mxu0 %v5109
        %5131 = vmatprep.subr.bf16.mxu0 0
        %5132 = vmatpush1.bf16.msra.mxu0 %v5110
        %5133 = vmatprep.subr.bf16.mxu0 0
        %5134 = vmatpush1.bf16.msra.mxu0 %v5111
        %5135 = vmatprep.subr.bf16.mxu0 0
        %5136 = vmatpush1.bf16.msra.mxu0 %v5112
        %5137 = vmatprep.subr.bf16.mxu0 0
        %5138 = vmatpush1.bf16.msra.mxu0 0
        %5139 = vmatprep.subr.bf16.mxu0 0
        %5140 = vmatpush1.bf16.msra.mxu0 0
        %5141 = vmatprep.subr.bf16.mxu0 0
        %5142 = vmatpush1.bf16.msra.mxu0 0
        %5143 = vmatprep.subr.bf16.mxu0 0
        %5144 = vmatpush1.bf16.msra.mxu0 0
        %5145 = vmatprep.subr.bf16.mxu0 0
        %5146 = vmatpush1.bf16.msra.mxu0 0
        %5147 = vmatprep.subr.bf16.mxu0 0
        %5148 = vmatpush1.bf16.msra.mxu0 0
        %5149 = vmatprep.subr.bf16.mxu0 0
        %5150 = vmatpush1.bf16.msra.mxu0 0
        %5151 = vmatprep.subr.bf16.mxu0 0
        %5152 = vmatpush1.bf16.msra.mxu0 0
        %5153 = vmatprep.mubr.bf16.mxu0 0
        %5154 = vmatmul.mubr.bf16.gmra.mrb[0].mxu0 %v5059
        %v5155 = vpop.f32.mrb[0].mxu0
        %v5156 = vadd.f32 0.0, %v5155
        %v5157 = vpop.f32.mrb[0].mxu0
        %v5158 = vpop.f32.mrb[0].mxu0
        %v5159 = vadd.f32 0.0, %v5158
        %v5160 = vpop.f32.mrb[0].mxu0
        %5161 = vmatprep.mubr.bf16.mxu0 0
        %5162 = vmatmul.mubr.bf16.gmra.mrb[0].mxu0 %v5061
        %v5163 = vpop.f32.mrb[0].mxu0
        %v5164 = vadd.f32 0.0, %v5163
        %v5165 = vpop.f32.mrb[0].mxu0
        %v5166 = vpop.f32.mrb[0].mxu0
        %v5167 = vadd.f32 0.0, %v5166
        %v5168 = vpop.f32.mrb[0].mxu0
        %5169 = vmatprep.mubr.bf16.mxu0 0
        %5170 = vmatmul.mubr.bf16.gmra.mrb[0].mxu0 %v5063
        %v5171 = vpop.f32.mrb[0].mxu0
        %v5172 = vadd.f32 0.0, %v5171
        %v5173 = vpop.f32.mrb[0].mxu0
        %v5174 = vpop.f32.mrb[0].mxu0
        %v5175 = vadd.f32 0.0, %v5174
        %v5176 = vpop.f32.mrb[0].mxu0
        %5177 = vmatprep.mubr.bf16.mxu0 0
        %5178 = vmatmul.mubr.bf16.gmra.mrb[0].mxu0 %v5065
        %v5179 = vpop.f32.mrb[0].mxu0
        %v5180 = vadd.f32 0.0, %v5179
        %v5181 = vpop.f32.mrb[0].mxu0
        %v5182 = vpop.f32.mrb[0].mxu0
        %v5183 = vadd.f32 0.0, %v5182
        %v5184 = vpop.f32.mrb[0].mxu0
        %5185 = vmatprep.mubr.bf16.mxu0 0
        %5186 = vmatmul.mubr.bf16.gmra.mrb[0].mxu0 %v5067
        %v5187 = vpop.f32.mrb[0].mxu0
        %v5188 = vadd.f32 0.0, %v5187
        %v5189 = vpop.f32.mrb[0].mxu0
        %v5190 = vpop.f32.mrb[0].mxu0
        %v5191 = vadd.f32 0.0, %v5190
        %v5192 = vpop.f32.mrb[0].mxu0
        %5193 = vdwg.mxu0
        %v5194 = vadd.f32 %v4991, %v5156
        %v5195 = vadd.f32 %v4992, %v5159
        %v5196 = vadd.f32 %v4993, %v5164
        %v5197 = vadd.f32 %v4994, %v5167
        %v5198 = vadd.f32 %v4995, %v5172
        %v5199 = vadd.f32 %v4996, %v5175
        %v5200 = vadd.f32 %v4997, %v5180
        %v5201 = vadd.f32 %v4998, %v5183
        %v5202 = vadd.f32 %v4999, %v5188
        %v5203 = vadd.f32 %v5000, %v5191
        %v5204 = vld [vmem:[%s326 + $0x30] sm:$0x7]
        %s5205 = scalar_lea.vmem [#allocation8], 1600
        %v5206 = vld [vmem:[%s5205] sm:$0xf]
        %v5207 = vld [vmem:[%s5205 + $0x4] sm:$0xf]
        %v5208 = vld [vmem:[%s5205 + $0x8] sm:$0xf]
        %v5209 = vld [vmem:[%s5205 + $0xc] sm:$0xf]
        %v5210 = vld [vmem:[%s5205 + $0x10] sm:$0xf]
        %v5211 = vld [vmem:[%s5205 + $0x14] sm:$0xf]
        %v5212 = vld [vmem:[%s5205 + $0x18] sm:$0xf]
        %v5213 = vld [vmem:[%s5205 + $0x1c] sm:$0xf]
        %v5214 = vld [vmem:[%s5205 + $0x20] sm:$0xf]
        %v5215 = vld [vmem:[%s5205 + $0x24] sm:$0xf]
        %v5216 = vld [vmem:[%s5205 + $0x28] sm:$0xf]
        %v5217 = vld [vmem:[%s5205 + $0x2c] sm:$0xf]
        %v5218 = vld [vmem:[%s5205 + $0x30] sm:$0xf]
        %v5219 = vld [vmem:[%s5205 + $0x34] sm:$0xf]
        %v5220 = vld [vmem:[%s5205 + $0x38] sm:$0xf]
        %v5221 = vld [vmem:[%s5205 + $0x3c] sm:$0xf]
        %v5223 = vunpack.c.l.b16 %v5204
        %v5224 = vpack.c.b16 %v5223, %v5223
        %v5226 = vshrl.u32 %v5051, 16
        %v5228 = vrot.slane %v5226, 2
        %v5229 = vshll.u32 %v5051, 16
        %v5231 = vrot.slane %v5229, 3
        %v5232 = vor.u32 %v5228, %v5231
        %v5234 = vshrl.u32 %v5052, 16
        %v5236 = vrot.slane %v5234, 2
        %v5237 = vshll.u32 %v5052, 16
        %v5239 = vrot.slane %v5237, 3
        %v5240 = vor.u32 %v5236, %v5239
        %v5241 = vsel %vm1715, %v5232, %v5240
        %v5243 = vshrl.u32 %v5053, 16
        %v5245 = vrot.slane %v5243, 2
        %v5246 = vshll.u32 %v5053, 16
        %v5248 = vrot.slane %v5246, 3
        %v5249 = vor.u32 %v5245, %v5248
        %v5250 = vsel %vm1715, %v5240, %v5249
        %v5252 = vshrl.u32 %v5054, 16
        %v5254 = vrot.slane %v5252, 2
        %v5255 = vshll.u32 %v5054, 16
        %v5257 = vrot.slane %v5255, 3
        %v5258 = vor.u32 %v5254, %v5257
        %v5259 = vsel %vm1715, %v5249, %v5258
        %v5261 = vshrl.u32 %v5055, 16
        %v5263 = vrot.slane %v5261, 2
        %v5264 = vshll.u32 %v5055, 16
        %v5266 = vrot.slane %v5264, 3
        %v5267 = vor.u32 %v5263, %v5266
        %v5268 = vsel %vm1715, %v5258, %v5267
        %v5270 = vshrl.u32 %v5224, 16
        %v5272 = vrot.slane %v5270, 2
        %v5273 = vshll.u32 %v5224, 16
        %v5275 = vrot.slane %v5273, 3
        %v5276 = vor.u32 %v5272, %v5275
        %v5277 = vsel %vm1715, %v5267, %v5276
        %v5299 = vunpack.c.l.b16 %v5206
        %v5300 = vunpack.c.l.b16 %v5207
        %v5301 = vunpack.c.l.b16 %v5208
        %v5302 = vunpack.c.l.b16 %v5209
        %v5303 = vunpack.c.l.b16 %v5210
        %v5304 = vunpack.c.l.b16 %v5211
        %v5305 = vunpack.c.l.b16 %v5212
        %v5306 = vunpack.c.l.b16 %v5213
        %v5307 = vunpack.c.l.b16 %v5214
        %v5308 = vunpack.c.l.b16 %v5215
        %v5309 = vunpack.c.l.b16 %v5216
        %v5310 = vunpack.c.l.b16 %v5217
        %v5311 = vunpack.c.l.b16 %v5218
        %v5312 = vunpack.c.l.b16 %v5219
        %v5313 = vunpack.c.l.b16 %v5220
        %v5314 = vunpack.c.l.b16 %v5221
        %v5315 = vpack.c.b16 %v5300, %v5299
        %v5316 = vpack.c.b16 %v5302, %v5301
        %v5317 = vpack.c.b16 %v5304, %v5303
        %v5318 = vpack.c.b16 %v5306, %v5305
        %v5319 = vpack.c.b16 %v5308, %v5307
        %v5320 = vpack.c.b16 %v5310, %v5309
        %v5321 = vpack.c.b16 %v5312, %v5311
        %v5322 = vpack.c.b16 %v5314, %v5313
        %5331 = vmatprep.subr.bf16.mxu0 0
        %5332 = vmatpush1.bf16.msra.mxu0 %v5315
        %5333 = vmatprep.subr.bf16.mxu0 0
        %5334 = vmatpush1.bf16.msra.mxu0 %v5316
        %5335 = vmatprep.subr.bf16.mxu0 0
        %5336 = vmatpush1.bf16.msra.mxu0 %v5317
        %5337 = vmatprep.subr.bf16.mxu0 0
        %5338 = vmatpush1.bf16.msra.mxu0 %v5318
        %5339 = vmatprep.subr.bf16.mxu0 0
        %5340 = vmatpush1.bf16.msra.mxu0 %v5319
        %5341 = vmatprep.subr.bf16.mxu0 0
        %5342 = vmatpush1.bf16.msra.mxu0 %v5320
        %5343 = vmatprep.subr.bf16.mxu0 0
        %5344 = vmatpush1.bf16.msra.mxu0 %v5321
        %5345 = vmatprep.subr.bf16.mxu0 0
        %5346 = vmatpush1.bf16.msra.mxu0 %v5322
        %5347 = vmatprep.subr.bf16.mxu0 0
        %5348 = vmatpush1.bf16.msra.mxu0 0
        %5349 = vmatprep.subr.bf16.mxu0 0
        %5350 = vmatpush1.bf16.msra.mxu0 0
        %5351 = vmatprep.subr.bf16.mxu0 0
        %5352 = vmatpush1.bf16.msra.mxu0 0
        %5353 = vmatprep.subr.bf16.mxu0 0
        %5354 = vmatpush1.bf16.msra.mxu0 0
        %5355 = vmatprep.subr.bf16.mxu0 0
        %5356 = vmatpush1.bf16.msra.mxu0 0
        %5357 = vmatprep.subr.bf16.mxu0 0
        %5358 = vmatpush1.bf16.msra.mxu0 0
        %5359 = vmatprep.subr.bf16.mxu0 0
        %5360 = vmatpush1.bf16.msra.mxu0 0
        %5361 = vmatprep.subr.bf16.mxu0 0
        %5362 = vmatpush1.bf16.msra.mxu0 0
        %5363 = vmatprep.mubr.bf16.mxu0 0
        %5364 = vmatmul.mubr.bf16.gmra.mrb[0].mxu0 %v5241
        %v5365 = vpop.f32.mrb[0].mxu0
        %v5366 = vadd.f32 0.0, %v5365
        %v5367 = vpop.f32.mrb[0].mxu0
        %v5368 = vpop.f32.mrb[0].mxu0
        %v5369 = vadd.f32 0.0, %v5368
        %v5370 = vpop.f32.mrb[0].mxu0
        %5371 = vmatprep.mubr.bf16.mxu0 0
        %5372 = vmatmul.mubr.bf16.gmra.mrb[0].mxu0 %v5250
        %v5373 = vpop.f32.mrb[0].mxu0
        %v5374 = vadd.f32 0.0, %v5373
        %v5375 = vpop.f32.mrb[0].mxu0
        %v5376 = vpop.f32.mrb[0].mxu0
        %v5377 = vadd.f32 0.0, %v5376
        %v5378 = vpop.f32.mrb[0].mxu0
        %5379 = vmatprep.mubr.bf16.mxu0 0
        %5380 = vmatmul.mubr.bf16.gmra.mrb[0].mxu0 %v5259
        %v5381 = vpop.f32.mrb[0].mxu0
        %v5382 = vadd.f32 0.0, %v5381
        %v5383 = vpop.f32.mrb[0].mxu0
        %v5384 = vpop.f32.mrb[0].mxu0
        %v5385 = vadd.f32 0.0, %v5384
        %v5386 = vpop.f32.mrb[0].mxu0
        %5387 = vmatprep.mubr.bf16.mxu0 0
        %5388 = vmatmul.mubr.bf16.gmra.mrb[0].mxu0 %v5268
        %v5389 = vpop.f32.mrb[0].mxu0
        %v5390 = vadd.f32 0.0, %v5389
        %v5391 = vpop.f32.mrb[0].mxu0
        %v5392 = vpop.f32.mrb[0].mxu0
        %v5393 = vadd.f32 0.0, %v5392
        %v5394 = vpop.f32.mrb[0].mxu0
        %5395 = vmatprep.mubr.bf16.mxu0 0
        %5396 = vmatmul.mubr.bf16.gmra.mrb[0].mxu0 %v5277
        %v5397 = vpop.f32.mrb[0].mxu0
        %v5398 = vadd.f32 0.0, %v5397
        %v5399 = vpop.f32.mrb[0].mxu0
        %v5400 = vpop.f32.mrb[0].mxu0
        %v5401 = vadd.f32 0.0, %v5400
        %v5402 = vpop.f32.mrb[0].mxu0
        %5403 = vdwg.mxu0
        %v5404 = vadd.f32 %v5194, %v5366
        %v5405 = vadd.f32 %v5195, %v5369
        %v5406 = vadd.f32 %v5196, %v5374
        %v5407 = vadd.f32 %v5197, %v5377
        %v5408 = vadd.f32 %v5198, %v5382
        %v5409 = vadd.f32 %v5199, %v5385
        %v5410 = vadd.f32 %v5200, %v5390
        %v5411 = vadd.f32 %v5201, %v5393
        %v5412 = vadd.f32 %v5202, %v5398
        %v5413 = vadd.f32 %v5203, %v5401
        %v5414 = vld [vmem:[%s326 + $0x8] sm:$0x8]
        %s5415 = scalar_lea.vmem [#allocation8], 1664
        %v5416 = vld [vmem:[%s5415] sm:$0xf]
        %v5417 = vld [vmem:[%s5415 + $0x4] sm:$0xf]
        %v5418 = vld [vmem:[%s5415 + $0x8] sm:$0xf]
        %v5419 = vld [vmem:[%s5415 + $0xc] sm:$0xf]
        %v5420 = vld [vmem:[%s5415 + $0x10] sm:$0xf]
        %v5421 = vld [vmem:[%s5415 + $0x14] sm:$0xf]
        %v5422 = vld [vmem:[%s5415 + $0x18] sm:$0xf]
        %v5423 = vld [vmem:[%s5415 + $0x1c] sm:$0xf]
        %v5424 = vld [vmem:[%s5415 + $0x20] sm:$0xf]
        %v5425 = vld [vmem:[%s5415 + $0x24] sm:$0xf]
        %v5426 = vld [vmem:[%s5415 + $0x28] sm:$0xf]
        %v5427 = vld [vmem:[%s5415 + $0x2c] sm:$0xf]
        %v5428 = vld [vmem:[%s5415 + $0x30] sm:$0xf]
        %v5429 = vld [vmem:[%s5415 + $0x34] sm:$0xf]
        %v5430 = vld [vmem:[%s5415 + $0x38] sm:$0xf]
        %v5431 = vld [vmem:[%s5415 + $0x3c] sm:$0xf]
        %v5433 = vunpack.c.l.b16 %v5414
        %v5434 = vpack.c.b16 %v5041, %v5433
        %v5435 = vrot.slane %v5434, 3
        %v5436 = vrot.slane %v5052, 3
        %v5437 = vsel %vm1926, %v5435, %v5436
        %v5438 = vrot.slane %v5053, 3
        %v5439 = vsel %vm1926, %v5436, %v5438
        %v5440 = vrot.slane %v5054, 3
        %v5441 = vsel %vm1926, %v5438, %v5440
        %v5442 = vrot.slane %v5055, 3
        %v5443 = vsel %vm1926, %v5440, %v5442
        %v5444 = vrot.slane %v5224, 3
        %v5445 = vsel %vm1926, %v5442, %v5444
        %v5467 = vunpack.c.l.b16 %v5416
        %v5468 = vunpack.c.l.b16 %v5417
        %v5469 = vunpack.c.l.b16 %v5418
        %v5470 = vunpack.c.l.b16 %v5419
        %v5471 = vunpack.c.l.b16 %v5420
        %v5472 = vunpack.c.l.b16 %v5421
        %v5473 = vunpack.c.l.b16 %v5422
        %v5474 = vunpack.c.l.b16 %v5423
        %v5475 = vunpack.c.l.b16 %v5424
        %v5476 = vunpack.c.l.b16 %v5425
        %v5477 = vunpack.c.l.b16 %v5426
        %v5478 = vunpack.c.l.b16 %v5427
        %v5479 = vunpack.c.l.b16 %v5428
        %v5480 = vunpack.c.l.b16 %v5429
        %v5481 = vunpack.c.l.b16 %v5430
        %v5482 = vunpack.c.l.b16 %v5431
        %v5483 = vpack.c.b16 %v5468, %v5467
        %v5484 = vpack.c.b16 %v5470, %v5469
        %v5485 = vpack.c.b16 %v5472, %v5471
        %v5486 = vpack.c.b16 %v5474, %v5473
        %v5487 = vpack.c.b16 %v5476, %v5475
        %v5488 = vpack.c.b16 %v5478, %v5477
        %v5489 = vpack.c.b16 %v5480, %v5479
        %v5490 = vpack.c.b16 %v5482, %v5481
        %5499 = vmatprep.subr.bf16.mxu0 0
        %5500 = vmatpush1.bf16.msra.mxu0 %v5483
        %5501 = vmatprep.subr.bf16.mxu0 0
        %5502 = vmatpush1.bf16.msra.mxu0 %v5484
        %5503 = vmatprep.subr.bf16.mxu0 0
        %5504 = vmatpush1.bf16.msra.mxu0 %v5485
        %5505 = vmatprep.subr.bf16.mxu0 0
        %5506 = vmatpush1.bf16.msra.mxu0 %v5486
        %5507 = vmatprep.subr.bf16.mxu0 0
        %5508 = vmatpush1.bf16.msra.mxu0 %v5487
        %5509 = vmatprep.subr.bf16.mxu0 0
        %5510 = vmatpush1.bf16.msra.mxu0 %v5488
        %5511 = vmatprep.subr.bf16.mxu0 0
        %5512 = vmatpush1.bf16.msra.mxu0 %v5489
        %5513 = vmatprep.subr.bf16.mxu0 0
        %5514 = vmatpush1.bf16.msra.mxu0 %v5490
        %5515 = vmatprep.subr.bf16.mxu0 0
        %5516 = vmatpush1.bf16.msra.mxu0 0
        %5517 = vmatprep.subr.bf16.mxu0 0
        %5518 = vmatpush1.bf16.msra.mxu0 0
        %5519 = vmatprep.subr.bf16.mxu0 0
        %5520 = vmatpush1.bf16.msra.mxu0 0
        %5521 = vmatprep.subr.bf16.mxu0 0
        %5522 = vmatpush1.bf16.msra.mxu0 0
        %5523 = vmatprep.subr.bf16.mxu0 0
        %5524 = vmatpush1.bf16.msra.mxu0 0
        %5525 = vmatprep.subr.bf16.mxu0 0
        %5526 = vmatpush1.bf16.msra.mxu0 0
        %5527 = vmatprep.subr.bf16.mxu0 0
        %5528 = vmatpush1.bf16.msra.mxu0 0
        %5529 = vmatprep.subr.bf16.mxu0 0
        %5530 = vmatpush1.bf16.msra.mxu0 0
        %5531 = vmatprep.mubr.bf16.mxu0 0
        %5532 = vmatmul.mubr.bf16.gmra.mrb[0].mxu0 %v5437
        %v5533 = vpop.f32.mrb[0].mxu0
        %v5534 = vadd.f32 0.0, %v5533
        %v5535 = vpop.f32.mrb[0].mxu0
        %v5536 = vpop.f32.mrb[0].mxu0
        %v5537 = vadd.f32 0.0, %v5536
        %v5538 = vpop.f32.mrb[0].mxu0
        %5539 = vmatprep.mubr.bf16.mxu0 0
        %5540 = vmatmul.mubr.bf16.gmra.mrb[0].mxu0 %v5439
        %v5541 = vpop.f32.mrb[0].mxu0
        %v5542 = vadd.f32 0.0, %v5541
        %v5543 = vpop.f32.mrb[0].mxu0
        %v5544 = vpop.f32.mrb[0].mxu0
        %v5545 = vadd.f32 0.0, %v5544
        %v5546 = vpop.f32.mrb[0].mxu0
        %5547 = vmatprep.mubr.bf16.mxu0 0
        %5548 = vmatmul.mubr.bf16.gmra.mrb[0].mxu0 %v5441
        %v5549 = vpop.f32.mrb[0].mxu0
        %v5550 = vadd.f32 0.0, %v5549
        %v5551 = vpop.f32.mrb[0].mxu0
        %v5552 = vpop.f32.mrb[0].mxu0
        %v5553 = vadd.f32 0.0, %v5552
        %v5554 = vpop.f32.mrb[0].mxu0
        %5555 = vmatprep.mubr.bf16.mxu0 0
        %5556 = vmatmul.mubr.bf16.gmra.mrb[0].mxu0 %v5443
        %v5557 = vpop.f32.mrb[0].mxu0
        %v5558 = vadd.f32 0.0, %v5557
        %v5559 = vpop.f32.mrb[0].mxu0
        %v5560 = vpop.f32.mrb[0].mxu0
        %v5561 = vadd.f32 0.0, %v5560
        %v5562 = vpop.f32.mrb[0].mxu0
        %5563 = vmatprep.mubr.bf16.mxu0 0
        %5564 = vmatmul.mubr.bf16.gmra.mrb[0].mxu0 %v5445
        %v5565 = vpop.f32.mrb[0].mxu0
        %v5566 = vadd.f32 0.0, %v5565
        %v5567 = vpop.f32.mrb[0].mxu0
        %v5568 = vpop.f32.mrb[0].mxu0
        %v5569 = vadd.f32 0.0, %v5568
        %v5570 = vpop.f32.mrb[0].mxu0
        %5571 = vdwg.mxu0
        %v5572 = vadd.f32 %v5404, %v5534
        %v5573 = vadd.f32 %v5405, %v5537
        %v5574 = vadd.f32 %v5406, %v5542
        %v5575 = vadd.f32 %v5407, %v5545
        %v5576 = vadd.f32 %v5408, %v5550
        %v5577 = vadd.f32 %v5409, %v5553
        %v5578 = vadd.f32 %v5410, %v5558
        %v5579 = vadd.f32 %v5411, %v5561
        %v5580 = vadd.f32 %v5412, %v5566
        %v5581 = vadd.f32 %v5413, %v5569
        %v5582 = vld [vmem:[%s4] sm:$0x1]
        %v5584 = vlaneseq
        %v5585 = vshrl.u32 %v5584, 7
        %v5586 = vsub.s32 0, %v5585
        %v5587 = vrot.slane %v5582, %v5586
        %v5589 = vadd.f32 %v5572, %v5587
        %v5590 = vadd.f32 %v5573, %v5587
        %v5591 = vadd.f32 %v5574, %v5587
        %v5592 = vadd.f32 %v5575, %v5587
        %v5593 = vadd.f32 %v5576, %v5587
        %v5594 = vadd.f32 %v5577, %v5587
        %v5595 = vadd.f32 %v5578, %v5587
        %v5596 = vadd.f32 %v5579, %v5587
        %v5597 = vadd.f32 %v5580, %v5587
        %v5598 = vadd.f32 %v5581, %v5587
        %v5599 = vmax.f32 %v5589, 0.0
        %v5600 = vmax.f32 %v5590, 0.0
        %v5601 = vmax.f32 %v5591, 0.0
        %v5602 = vmax.f32 %v5592, 0.0
        %v5603 = vmax.f32 %v5593, 0.0
        %v5604 = vmax.f32 %v5594, 0.0
        %v5605 = vmax.f32 %v5595, 0.0
        %v5606 = vmax.f32 %v5596, 0.0
        %v5607 = vmax.f32 %v5597, 0.0
        %v5608 = vmax.f32 %v5598, 0.0
        %v5609 = vpack.c.bf16 %v5600, %v5599
        %v5610 = vpack.c.bf16 %v5602, %v5601
        %v5611 = vpack.c.bf16 %v5604, %v5603
        %v5612 = vpack.c.bf16 %v5606, %v5605
        %v5613 = vpack.c.bf16 %v5608, %v5607
        %v5619 = vunpack.c.l.b16 %v5609
        %v5620 = vunpack.c.h.b16 %v5609
        %v5621 = vunpack.c.l.b16 %v5610
        %v5622 = vunpack.c.h.b16 %v5610
        %v5623 = vunpack.c.l.b16 %v5611
        %v5624 = vunpack.c.h.b16 %v5611
        %v5625 = vunpack.c.l.b16 %v5612
        %v5626 = vunpack.c.h.b16 %v5612
        %v5627 = vunpack.c.l.b16 %v5613
        %v5628 = vunpack.c.h.b16 %v5613
        %v5629 = vpack.c.b16 %v5619, %v5619
        %v5630 = vpack.c.b16 %v5620, %v5620
        %v5631 = vpack.c.b16 %v5621, %v5621
        %v5632 = vpack.c.b16 %v5622, %v5622
        %v5633 = vpack.c.b16 %v5623, %v5623
        %v5634 = vpack.c.b16 %v5624, %v5624
        %v5635 = vpack.c.b16 %v5625, %v5625
        %v5636 = vpack.c.b16 %v5626, %v5626
        %v5637 = vpack.c.b16 %v5627, %v5627
        %v5638 = vpack.c.b16 %v5628, %v5628
        %5649 = vst [vmem:[%s366] sm:$0xf] %v5629
        %5650 = vst [vmem:[%s366 + $0x4] sm:$0xf] %v5630
        %5651 = vst [vmem:[%s366 + $0x8] sm:$0xf] %v5631
        %5652 = vst [vmem:[%s366 + $0xc] sm:$0xf] %v5632
        %5653 = vst [vmem:[%s366 + $0x10] sm:$0xf] %v5633
        %5654 = vst [vmem:[%s366 + $0x14] sm:$0xf] %v5634
        %5655 = vst [vmem:[%s366 + $0x18] sm:$0xf] %v5635
        %5656 = vst [vmem:[%s366 + $0x1c] sm:$0xf] %v5636
        %5657 = vst [vmem:[%s366 + $0x20] sm:$0xf] %v5637
        %5658 = vst [vmem:[%s366 + $0x24] sm:$0xf] %v5638
        %s5659 = sand.u32 %s178, 1
        %s5660 = scalar_lea.sflag [#allocation4], %s5659
        %s5661 = sand.u32 %s178, 1
        %s5662 = smul.addr %s5661, 40
        %s5663 = scalar_lea.vmem [#allocation10], %s5662
        // Predicated region
        $region57: #{tpu_custom_call.1} parent=39 // pred_check
          %p5664 = pneg %p188
        $region58: #{tpu_custom_call.1} parent=39 // pred_check_branch
          %5666 = sbr.rel (%p5664) target = $region60
        $region59: #{tpu_custom_call.1} parent=39 // pred_region
          %s5668 = ssub.s32 640, 640
          %5669 = vsyncadd %s5660, %s5668
          %s5670 = smul.addr %s31, 10
          %s5671 = smul.addr %s30, 80
          %s5672 = sadd.s32 %s5670, %s5671
          %s5673 = smul.addr %s5672, 64
          %s5674 = scalar_lea.hbm %s5, %s5673
          %s5675 = sshll.u32 %s5663, 4
          %s5676 = int_to_ptr.vmem [resolvable:$true] %s5675
          %5681 = dma.vmem_to_hbm [thread:$0]  %s5676, 640, %s5674, %s5660, 64, 64, 4
        $region60: #{tpu_custom_call.1} parent=39 // pred_fallthru
          _
      $region40: #{tpu_custom_call.1} parent=5 // pred_fallthru
        _
      %p5682 = scmp.le.s32.totalorder 2, %s21
      // Predicated region
      $region61: #{tpu_custom_call.1} parent=5 // pred_check
        %p5683 = pneg %p5682
      $region62: #{tpu_custom_call.1} parent=5 // pred_check_branch
        %5685 = sbr.rel (%p5683) target = $region64
      $region63: #{tpu_custom_call.1} parent=5 // pred_region
        %s5686 = ssub.s32 %s21, 2
        // Predicated region
        $region65: #{tpu_custom_call.1} parent=63 // pred_check
          %p5687 = pneg %p194
        $region66: #{tpu_custom_call.1} parent=63 // pred_check_branch
          %5689 = sbr.rel (%p5687) target = $region68
        $region67: #{tpu_custom_call.1} parent=63 // pred_region
          %s5690 = sand.u32 %s179, 1
          %s5691 = scalar_lea.sflag [#allocation4], %s5690
          %s5692 = sand.u32 %s179, 1
          %s5693 = smul.addr %s5692, 40
          %s5694 = scalar_lea.vmem [#allocation10], %s5693
          %5695 = dma.done %s5691, 640
        $region68: #{tpu_custom_call.1} parent=63 // pred_fallthru
          _
      $region64: #{tpu_custom_call.1} parent=5 // pred_fallthru
        _
    $region6: #{tpu_custom_call.1} parent=1 // loop_footer
      %s25 = sadd.s32 1, %s21
    $region7: #{tpu_custom_call.1} parent=1 // loop_footer_branch
      %20 = sbr.rel target = $region3
    $region8: #{tpu_custom_call.1} parent=1 // loop_exit
      _
    %5696 = vsyncpa [#allocation3], 1
    %s5697 = scalar_lea.sflag [#allocation3], 1
    %5698 = vsyncpa %s5697, 1
    %5699 = vsyncpa [#allocation6], 1
    %s5700 = scalar_lea.sflag [#allocation6], 1
    %5701 = vsyncpa %s5700, 1
    %5702 = vsyncpa [#allocation9], 1
    %5703 = vsyncpa [#allocation4], 1
    %s5704 = scalar_lea.sflag [#allocation4], 1
    %5705 = vsyncpa %s5704, 1

</llo_original>
